<compile_context>
chip_gen: v7x
topology: tpu7x:2x2x1
jax: 0.10.0
libtpu: 0.0.40
codegen_flags: <defaults>
</compile_context>

<pallas_src>
import math

import jax
import jax.numpy as jnp
from jax.experimental import pallas as pl
from jax.experimental.pallas import tpu as pltpu

# ----------------------------- small ViT config -----------------------------
IMG = 32            # img_size
PATCH = 16          # patch_size (selects the patch_size==16 FPN branch)
IN_CHANS = 3
EMBED = 32          # embed_dim
DEPTH = 4
HEADS = 4
MLP_RATIO = 4.0
NUM_EXTRA_TOKENS = 1
OUT_FEATURES = ["layer0", "layer1", "layer2", "layer3"]
LN_EPS = 1e-6
BN_EPS = 1e-5

HP = IMG // PATCH
WP = IMG // PATCH
NUM_PATCHES = HP * WP
SEQ = NUM_PATCHES + NUM_EXTRA_TOKENS
HEAD_DIM = EMBED // HEADS
MLP_HIDDEN = int(EMBED * MLP_RATIO)
ATTN_SCALE = HEAD_DIM ** (-0.5)

NEG_INF = -1e30


# --------------------------- in-kernel math helpers --------------------------
def _ln(x, w, b):
    # PyTorch LayerNorm (biased variance), eps=1e-6; f32 throughout.
    mu = jnp.mean(x, axis=-1, keepdims=True)
    var = jnp.mean(jnp.square(x - mu), axis=-1, keepdims=True)
    return (x - mu) * jax.lax.rsqrt(var + LN_EPS) * w + b


def _erf(x):
    # Abramowitz & Stegun 7.1.26 rational approximation, |err| <= 1.5e-7.
    # Exact divide kept on purpose (torch-exact GELU parity).
    a1, a2, a3, a4, a5 = (0.254829592, -0.284496736, 1.421413741,
                          -1.453152027, 1.061405429)
    p_c = 0.3275911
    s = jnp.where(x >= 0.0, 1.0, -1.0)
    ax = jnp.abs(x)
    t = 1.0 / (1.0 + p_c * ax)
    poly = ((((a5 * t + a4) * t + a3) * t + a2) * t + a1) * t
    return s * (1.0 - poly * jnp.exp(-ax * ax))


def _gelu_exact(x):
    # Exact (erf-based) GELU to match torch.nn.GELU default.
    return 0.5 * x * (1.0 + _erf(x * 0.7071067811865476))


def _softmax_last(x):
    m = jnp.max(x, axis=-1, keepdims=True)
    e = jnp.exp(x - m)
    # Denominator >= 1 (max subtracted), so the EUP approx reciprocal is safe.
    return e * pl.reciprocal(jnp.sum(e, axis=-1, keepdims=True), approx=True)


# ------------------------- fused transformer trunk ---------------------------
def _trunk_kernel(x_ref, wqkv_ref, bqkv_ref, wproj_ref,
                  wfc1_ref, bfc1_ref, wfc2_ref, vec_ref,
                  feat_ref, osc_ref):
    """All DEPTH blocks in one gridless kernel.

    x_ref    : (M, EMBED) f32   tokens, M = B*SEQ (pos-embed already added)
    wqkv_ref : (DEPTH, EMBED, 3*EMBED) bf16  (ATTN_SCALE folded into q cols)
    bqkv_ref : (DEPTH, 1, 3*EMBED) f32
    wproj_ref: (DEPTH, EMBED, EMBED) bf16
    wfc1_ref : (DEPTH, EMBED, MLP_HIDDEN) bf16
    bfc1_ref : (DEPTH, 1, MLP_HIDDEN) f32
    wfc2_ref : (DEPTH, MLP_HIDDEN, EMBED) bf16
    vec_ref  : (DEPTH, 6, EMBED) f32  rows: ln1_w, ln1_b, proj_b, ln2_w, ln2_b, fc2_b
    feat_ref : (M, DEPTH*EMBED) f32  lane-dense per-layer snapshots
    osc_ref  : (M, EMBED) f32 VMEM scratch: per-head attention-output staging
    """
    M = x_ref.shape[0]
    B = M // SEQ
    tok = x_ref[...]

    # Block-diagonal additive mask built in-kernel (no (M,M) input DMA).
    # Unrolled per-batch comparisons avoid vector integer division.
    r = jax.lax.broadcasted_iota(jnp.int32, (M, M), 0)
    c = jax.lax.broadcasted_iota(jnp.int32, (M, M), 1)
    same = None
    for b in range(B):
        lo, hi = b * SEQ, (b + 1) * SEQ
        blk = (r >= lo) & (r < hi) & (c >= lo) & (c < hi)
        same = blk if same is None else (same | blk)
    mask = jnp.where(same, 0.0, NEG_INF).astype(jnp.float32)

    for d in range(DEPTH):
        vec = vec_ref[d]                      # (6, EMBED) f32
        ln1w, ln1b = vec[0:1, :], vec[1:2, :]
        projb = vec[2:3, :]
        ln2w, ln2b = vec[3:4, :], vec[4:5, :]
        fc2b = vec[5:6, :]

        # ---------------- attention (pre-LN) ----------------
        xn = _ln(tok, ln1w, ln1b)
        # one lane-dense fused QKV matmul per layer (bf16 operands, f32 acc)
        qkv = jnp.dot(xn.astype(jnp.bfloat16), wqkv_ref[d],
                      preferred_element_type=jnp.float32) + bqkv_ref[d]
        for h in range(HEADS):
            q = qkv[:, h * HEAD_DIM:(h + 1) * HEAD_DIM]
            k = qkv[:, EMBED + h * HEAD_DIM: EMBED + (h + 1) * HEAD_DIM]
            v = qkv[:, 2 * EMBED + h * HEAD_DIM: 2 * EMBED + (h + 1) * HEAD_DIM]
            # scale already folded into q; block-diag mask removes cross-batch
            # terms so the batch stays folded into the M dimension.
            logits = jax.lax.dot_general(
                q.astype(jnp.bfloat16), k.astype(jnp.bfloat16),
                (((1,), (1,)), ((), ())),
                preferred_element_type=jnp.float32) + mask
            p = _softmax_last(logits)
            o = jnp.dot(p.astype(jnp.bfloat16), v.astype(jnp.bfloat16),
                        preferred_element_type=jnp.float32)
            # stage head output at its lane offset; fused proj matmul follows
            osc_ref[:, h * HEAD_DIM:(h + 1) * HEAD_DIM] = o
        attn = jnp.dot(osc_ref[...].astype(jnp.bfloat16), wproj_ref[d],
                       preferred_element_type=jnp.float32) + projb
        tok = tok + attn

        # ---------------- MLP (pre-LN) ----------------
        yn = _ln(tok, ln2w, ln2b)
        hid = jnp.dot(yn.astype(jnp.bfloat16), wfc1_ref[d],
                      preferred_element_type=jnp.float32) + bfc1_ref[d]
        hid = _gelu_exact(hid)
        tok = tok + jnp.dot(hid.astype(jnp.bfloat16), wfc2_ref[d],
                            preferred_element_type=jnp.float32) + fc2b

        # layer-d snapshot at lanes [d*EMBED, (d+1)*EMBED) -> lane-dense slab
        feat_ref[:, d * EMBED:(d + 1) * EMBED] = tok


def pack_trunk_params(blocks):
    """Stack per-block params over DEPTH into few large slabs; bf16 matmul
    weights; ATTN_SCALE folded into the q columns of the fused qkv slab."""
    def stack(fn, dtype=None):
        arr = jnp.stack([fn(b) for b in blocks], axis=0)
        return arr.astype(dtype) if dtype is not None else arr

    def qkv_w(p):
        w = p['qkv_w']                                    # (E, 3E), (in, out)
        return jnp.concatenate([w[:, :EMBED] * ATTN_SCALE, w[:, EMBED:]], axis=1)

    def qkv_b(p):
        b = p['qkv_b']                                    # (1, 3E)
        return jnp.concatenate([b[:, :EMBED] * ATTN_SCALE, b[:, EMBED:]], axis=1)

    w_qkv = stack(qkv_w, jnp.bfloat16)                    # (D, E, 3E)
    b_qkv = stack(qkv_b)                                  # (D, 1, 3E) f32
    w_proj = stack(lambda p: p['proj_w'], jnp.bfloat16)   # (D, E, E)
    w_fc1 = stack(lambda p: p['fc1_w'], jnp.bfloat16)     # (D, E, H)
    b_fc1 = stack(lambda p: p['fc1_b'])                   # (D, 1, H) f32
    w_fc2 = stack(lambda p: p['fc2_w'], jnp.bfloat16)     # (D, H, E)
    vec = stack(lambda p: jnp.concatenate(
        [p['ln1_w'], p['ln1_b'], p['proj_b'],
         p['ln2_w'], p['ln2_b'], p['fc2_b']], axis=0))    # (D, 6, E) f32
    return (w_qkv, b_qkv, w_proj, w_fc1, b_fc1, w_fc2, vec)


def vit_trunk(tokens, packed):
    """tokens: (B, SEQ, EMBED) -> lane-dense feature slab (B*SEQ, DEPTH*EMBED)."""
    B = tokens.shape[0]
    M = B * SEQ
    x2d = tokens.reshape(M, EMBED)
    vmem = pl.BlockSpec(memory_space=pltpu.MemorySpace.VMEM)
    args = (x2d,) + tuple(packed)
    return pl.pallas_call(
        _trunk_kernel,
        out_shape=jax.ShapeDtypeStruct((M, DEPTH * EMBED), jnp.float32),
        in_specs=[vmem] * len(args),
        out_specs=vmem,
        scratch_shapes=[pltpu.VMEM((M, EMBED), jnp.float32)],
    )(*args)


# ------------------------------ glue (plain XLA) -----------------------------
def patch_embed(x, w, b):
    """Conv2d(k=PATCH, s=PATCH) == patchify + linear. x: (B, C, H, W) NCHW."""
    B, C, H, W = x.shape
    hp, wp = H // PATCH, W // PATCH
    xp = x.reshape(B, C, hp, PATCH, wp, PATCH)
    xp = jnp.transpose(xp, (0, 2, 4, 1, 3, 5)).reshape(B * hp * wp, C * PATCH * PATCH)
    w_flat = jnp.transpose(w.reshape(EMBED, C * PATCH * PATCH))   # (C*P*P, EMBED)
    y = jnp.dot(xp, w_flat) + b                                   # tiny GEMM -> XLA
    return y.reshape(B, hp * wp, EMBED)


def conv_transpose_2x2(x, w, b):
    """ConvTranspose2d(kernel=2, stride=2) as a matmul.
       x: (B, C, H, W); w: (C, E, 2, 2) (PyTorch ConvTranspose2d layout); b: (E,)."""
    B, C, H, W = x.shape
    E = w.shape[1]
    x_flat = jnp.transpose(x, (0, 2, 3, 1)).reshape(B * H * W, C)
    w_flat = w.reshape(C, E * 4)
    b_flat = jnp.repeat(b, 4)
    y_flat = jnp.dot(x_flat, w_flat) + b_flat                     # (B*H*W, E*4)
    y = y_flat.reshape(B, H, W, E, 2, 2)
    y = jnp.transpose(y, (0, 3, 1, 4, 2, 5)).reshape(B, E, 2 * H, 2 * W)
    return y


def batchnorm_eval(x, gamma, beta):
    # SyncBatchNorm, eval mode, fresh running stats (mean=0, var=1), eps=1e-5.
    inv = 1.0 / math.sqrt(1.0 + BN_EPS)
    return x * (gamma * inv)[None, :, None, None] + beta[None, :, None, None]


def maxpool2d(x, k):
    B, C, H, W = x.shape
    return x.reshape(B, C, H // k, k, W // k, k).max(axis=(3, 5))


# ------------------------------- parameters ----------------------------------
def init_params(key):
    keys = iter(jax.random.split(key, 64))

    def nrm(shape, std=0.02):
        return jax.random.normal(next(keys), shape, jnp.float32) * std

    p = {
        # PatchEmbed Conv2d weight (E, C, P, P) + bias
        'patch_w': nrm((EMBED, IN_CHANS, PATCH, PATCH)),
        'patch_b': jnp.zeros((EMBED,), jnp.float32),
        'cls_token': nrm((1, 1, EMBED)),
        'pos_embed': nrm((1, SEQ, EMBED)),
    }
    blocks = []
    for _ in range(DEPTH):
        blocks.append(dict(
            ln1_w=jnp.ones((1, EMBED), jnp.float32),
            ln1_b=jnp.zeros((1, EMBED), jnp.float32),
            qkv_w=nrm((EMBED, 3 * EMBED)),            # stored transposed (in, out)
            qkv_b=jnp.zeros((1, 3 * EMBED), jnp.float32),
            proj_w=nrm((EMBED, EMBED)),
            proj_b=jnp.zeros((1, EMBED), jnp.float32),
            ln2_w=jnp.ones((1, EMBED), jnp.float32),
            ln2_b=jnp.zeros((1, EMBED), jnp.float32),
            fc1_w=nrm((EMBED, MLP_HIDDEN)),
            fc1_b=jnp.zeros((1, MLP_HIDDEN), jnp.float32),
            fc2_w=nrm((MLP_HIDDEN, EMBED)),
            fc2_b=jnp.zeros((1, EMBED), jnp.float32),
        ))
    p['blocks'] = blocks
    # FPN (patch_size == 16 branch)
    p['fpn1_ct1_w'] = nrm((EMBED, EMBED, 2, 2))
    p['fpn1_ct1_b'] = jnp.zeros((EMBED,), jnp.float32)
    p['fpn1_bn_g'] = jnp.ones((EMBED,), jnp.float32)
    p['fpn1_bn_b'] = jnp.zeros((EMBED,), jnp.float32)
    p['fpn1_ct2_w'] = nrm((EMBED, EMBED, 2, 2))
    p['fpn1_ct2_b'] = jnp.zeros((EMBED,), jnp.float32)
    p['fpn2_ct_w'] = nrm((EMBED, EMBED, 2, 2))
    p['fpn2_ct_b'] = jnp.zeros((EMBED,), jnp.float32)
    return p


# --------------------------------- forward -----------------------------------
def vit_forward(x, params):
    B = x.shape[0]
    # prepare_tokens: patch embed -> [cls] + patches -> + pos_embed (square img,
    # so interpolate_pos_encoding returns pos_embed unchanged); pos_drop = id.
    tokens = patch_embed(x, params['patch_w'], params['patch_b'])      # (B, NP, E)
    cls = jnp.broadcast_to(params['cls_token'], (B, 1, EMBED))
    tokens = jnp.concatenate([cls, tokens], axis=1) + params['pos_embed']

    # fused 4-block trunk (single gridless pallas_call)
    packed = pack_trunk_params(params['blocks'])
    slab = vit_trunk(tokens, packed)                  # (B*SEQ, DEPTH*EMBED)

    out_indices = [int(name[5:]) for name in OUT_FEATURES]
    features = []
    for i in out_indices:
        snap = slab[:, i * EMBED:(i + 1) * EMBED].reshape(B, SEQ, EMBED)
        xp = jnp.transpose(snap[:, NUM_EXTRA_TOKENS:, :], (0, 2, 1))
        features.append(xp.reshape(B, EMBED, HP, WP))

    def fpn1(f):
        f = conv_transpose_2x2(f, params['fpn1_ct1_w'], params['fpn1_ct1_b'])
        f = batchnorm_eval(f, params['fpn1_bn_g'], params['fpn1_bn_b'])
        f = jax.nn.gelu(f, approximate=False)
        return conv_transpose_2x2(f, params['fpn1_ct2_w'], params['fpn1_ct2_b'])

    def fpn2(f):
        return conv_transpose_2x2(f, params['fpn2_ct_w'], params['fpn2_ct_b'])

    ops = [fpn1, fpn2, lambda f: f, lambda f: maxpool2d(f, 2)]
    features = [ops[i](f) for i, f in enumerate(features)]
    return {name: feat for name, feat in zip(OUT_FEATURES, features)}


if __name__ == "__main__":
    key = jax.random.PRNGKey(0)
    pkey, xkey = jax.random.split(key)
    params = init_params(pkey)
    x = jax.random.normal(xkey, (2, IN_CHANS, IMG, IMG), jnp.float32)

    out = jax.jit(lambda inp: vit_forward(inp, params))(x)
    jax.block_until_ready(out)

    assert out['layer0'].shape == (2, EMBED, 4 * HP, 4 * WP)   # fpn1: 2x ConvT
    assert out['layer1'].shape == (2, EMBED, 2 * HP, 2 * WP)   # fpn2: ConvT
    assert out['layer2'].shape == (2, EMBED, HP, WP)           # fpn3: identity
    assert out['layer3'].shape == (2, EMBED, HP // 2, WP // 2) # fpn4: maxpool
    assert all(bool(jnp.all(jnp.isfinite(v))) for v in out.values())
    print("KERNEL_OK")
</pallas_src>

<mosaic_0001>
module attributes {stable_mosaic.version = 11 : i64} {
  func.func @_trunk_kernel(%arg0: memref<10x32xf32, #tpu.memory_space<vmem>>, %arg1: memref<4x32x96xbf16, #tpu.memory_space<vmem>>, %arg2: memref<4x1x96xf32, #tpu.memory_space<vmem>>, %arg3: memref<4x32x32xbf16, #tpu.memory_space<vmem>>, %arg4: memref<4x32x128xbf16, #tpu.memory_space<vmem>>, %arg5: memref<4x1x128xf32, #tpu.memory_space<vmem>>, %arg6: memref<4x128x32xbf16, #tpu.memory_space<vmem>>, %arg7: memref<4x6x32xf32, #tpu.memory_space<vmem>>, %arg8: memref<10x128xf32, #tpu.memory_space<vmem>>, %arg9: memref<10x32xf32, #tpu.memory_space<vmem>>) attributes {dimension_semantics = [], scalar_prefetch = 0 : i64, scratch_operands = 1 : i64, tpu.core_type = #tpu.core_type<tc>} {
    %c0 = arith.constant 0 : index
    %c0_0 = arith.constant 0 : index
    %0 = vector.load %arg0[%c0, %c0_0] : memref<10x32xf32, #tpu.memory_space<vmem>>, vector<10x32xf32>
    %1 = tpu.iota {dimensions = array<i32: 0>} : vector<10x10xi32>
    %2 = tpu.iota {dimensions = array<i32: 1>} : vector<10x10xi32>
    %c0_i32 = arith.constant 0 : i32
    %3 = vector.broadcast %c0_i32 : i32 to vector<10x10xi32>
    %4 = arith.cmpi sge, %1, %3 : vector<10x10xi32>
    %c5_i32 = arith.constant 5 : i32
    %5 = vector.broadcast %c5_i32 : i32 to vector<10x10xi32>
    %6 = arith.cmpi slt, %1, %5 : vector<10x10xi32>
    %7 = arith.andi %4, %6 : vector<10x10xi1>
    %c0_i32_1 = arith.constant 0 : i32
    %8 = vector.broadcast %c0_i32_1 : i32 to vector<10x10xi32>
    %9 = arith.cmpi sge, %2, %8 : vector<10x10xi32>
    %10 = arith.andi %7, %9 : vector<10x10xi1>
    %c5_i32_2 = arith.constant 5 : i32
    %11 = vector.broadcast %c5_i32_2 : i32 to vector<10x10xi32>
    %12 = arith.cmpi slt, %2, %11 : vector<10x10xi32>
    %13 = arith.andi %10, %12 : vector<10x10xi1>
    %c5_i32_3 = arith.constant 5 : i32
    %14 = vector.broadcast %c5_i32_3 : i32 to vector<10x10xi32>
    %15 = arith.cmpi sge, %1, %14 : vector<10x10xi32>
    %c10_i32 = arith.constant 10 : i32
    %16 = vector.broadcast %c10_i32 : i32 to vector<10x10xi32>
    %17 = arith.cmpi slt, %1, %16 : vector<10x10xi32>
    %18 = arith.andi %15, %17 : vector<10x10xi1>
    %c5_i32_4 = arith.constant 5 : i32
    %19 = vector.broadcast %c5_i32_4 : i32 to vector<10x10xi32>
    %20 = arith.cmpi sge, %2, %19 : vector<10x10xi32>
    %21 = arith.andi %18, %20 : vector<10x10xi1>
    %c10_i32_5 = arith.constant 10 : i32
    %22 = vector.broadcast %c10_i32_5 : i32 to vector<10x10xi32>
    %23 = arith.cmpi slt, %2, %22 : vector<10x10xi32>
    %24 = arith.andi %21, %23 : vector<10x10xi1>
    %25 = arith.ori %13, %24 : vector<10x10xi1>
    %cst = arith.constant 0.000000e+00 : f32
    %cst_6 = arith.constant -1.000000e+30 : f32
    %26 = vector.broadcast %cst : f32 to vector<10x10xf32>
    %27 = vector.broadcast %cst_6 : f32 to vector<10x10xf32>
    %28 = arith.select %25, %26, %27 : vector<10x10xi1>, vector<10x10xf32>
    %c0_7 = arith.constant 0 : index
    %c0_8 = arith.constant 0 : index
    %c0_9 = arith.constant 0 : index
    %29 = vector.load %arg7[%c0_7, %c0_8, %c0_9] : memref<4x6x32xf32, #tpu.memory_space<vmem>>, vector<1x6x32xf32>
    %30 = vector.shape_cast %29 : vector<1x6x32xf32> to vector<6x32xf32>
    %31 = vector.extract_strided_slice %30 {offsets = [0, 0], sizes = [1, 32], strides = [1, 1]} : vector<6x32xf32> to vector<1x32xf32>
    %32 = vector.extract_strided_slice %30 {offsets = [1, 0], sizes = [1, 32], strides = [1, 1]} : vector<6x32xf32> to vector<1x32xf32>
    %33 = vector.extract_strided_slice %30 {offsets = [2, 0], sizes = [1, 32], strides = [1, 1]} : vector<6x32xf32> to vector<1x32xf32>
    %34 = vector.extract_strided_slice %30 {offsets = [3, 0], sizes = [1, 32], strides = [1, 1]} : vector<6x32xf32> to vector<1x32xf32>
    %35 = vector.extract_strided_slice %30 {offsets = [4, 0], sizes = [1, 32], strides = [1, 1]} : vector<6x32xf32> to vector<1x32xf32>
    %36 = vector.extract_strided_slice %30 {offsets = [5, 0], sizes = [1, 32], strides = [1, 1]} : vector<6x32xf32> to vector<1x32xf32>
    %cst_10 = arith.constant dense<0.000000e+00> : vector<10xf32>
    %37 = vector.multi_reduction <add>, %0, %cst_10 [1] : vector<10x32xf32> to vector<10xf32>
    %38 = vector.shape_cast %37 : vector<10xf32> to vector<10x1xf32>
    %cst_11 = arith.constant 3.200000e+01 : f32
    %39 = vector.broadcast %cst_11 : f32 to vector<10x1xf32>
    %40 = arith.divf %38, %39 : vector<10x1xf32>
    %41 = vector.broadcast %40 : vector<10x1xf32> to vector<10x32xf32>
    %42 = arith.subf %0, %41 : vector<10x32xf32>
    %43 = arith.mulf %42, %42 : vector<10x32xf32>
    %cst_12 = arith.constant dense<0.000000e+00> : vector<10xf32>
    %44 = vector.multi_reduction <add>, %43, %cst_12 [1] : vector<10x32xf32> to vector<10xf32>
    %45 = vector.shape_cast %44 : vector<10xf32> to vector<10x1xf32>
    %cst_13 = arith.constant 3.200000e+01 : f32
    %46 = vector.broadcast %cst_13 : f32 to vector<10x1xf32>
    %47 = arith.divf %45, %46 : vector<10x1xf32>
    %48 = vector.broadcast %40 : vector<10x1xf32> to vector<10x32xf32>
    %49 = arith.subf %0, %48 : vector<10x32xf32>
    %cst_14 = arith.constant 9.99999997E-7 : f32
    %50 = vector.broadcast %cst_14 : f32 to vector<10x1xf32>
    %51 = arith.addf %47, %50 : vector<10x1xf32>
    %52 = math.rsqrt %51 : vector<10x1xf32>
    %53 = vector.broadcast %52 : vector<10x1xf32> to vector<10x32xf32>
    %54 = arith.mulf %49, %53 : vector<10x32xf32>
    %55 = vector.broadcast %31 : vector<1x32xf32> to vector<10x32xf32>
    %56 = arith.mulf %54, %55 : vector<10x32xf32>
    %57 = vector.broadcast %32 : vector<1x32xf32> to vector<10x32xf32>
    %58 = arith.addf %56, %57 : vector<10x32xf32>
    %59 = arith.truncf %58 : vector<10x32xf32> to vector<10x32xbf16>
    %c0_15 = arith.constant 0 : index
    %c0_16 = arith.constant 0 : index
    %c0_17 = arith.constant 0 : index
    %60 = vector.load %arg1[%c0_15, %c0_16, %c0_17] : memref<4x32x96xbf16, #tpu.memory_space<vmem>>, vector<1x32x96xbf16>
    %61 = vector.shape_cast %60 : vector<1x32x96xbf16> to vector<32x96xbf16>
    %cst_18 = arith.constant dense<0.000000e+00> : vector<10x96xf32>
    %62 = tpu.matmul %59, %61, %cst_18 {dimension_numbers = #tpu.dot_dimension_numbers<[1], [0], [0], [1], [0, 0, 1, 1], [], []>} : vector<10x32xbf16>, vector<32x96xbf16>, vector<10x96xf32> -> vector<10x96xf32>
    %c0_19 = arith.constant 0 : index
    %c0_20 = arith.constant 0 : index
    %c0_21 = arith.constant 0 : index
    %63 = vector.load %arg2[%c0_19, %c0_20, %c0_21] : memref<4x1x96xf32, #tpu.memory_space<vmem>>, vector<1x1x96xf32>
    %64 = vector.shape_cast %63 : vector<1x1x96xf32> to vector<1x96xf32>
    %65 = vector.broadcast %64 : vector<1x96xf32> to vector<10x96xf32>
    %66 = arith.addf %62, %65 : vector<10x96xf32>
    %67 = vector.extract_strided_slice %66 {offsets = [0, 0], sizes = [10, 8], strides = [1, 1]} : vector<10x96xf32> to vector<10x8xf32>
    %68 = vector.extract_strided_slice %66 {offsets = [0, 32], sizes = [10, 8], strides = [1, 1]} : vector<10x96xf32> to vector<10x8xf32>
    %69 = vector.extract_strided_slice %66 {offsets = [0, 64], sizes = [10, 8], strides = [1, 1]} : vector<10x96xf32> to vector<10x8xf32>
    %70 = arith.truncf %67 : vector<10x8xf32> to vector<10x8xbf16>
    %71 = arith.truncf %68 : vector<10x8xf32> to vector<10x8xbf16>
    %cst_22 = arith.constant dense<0.000000e+00> : vector<10x10xf32>
    %72 = tpu.matmul %70, %71, %cst_22 {dimension_numbers = #tpu.dot_dimension_numbers<[1], [1], [0], [0], [0, 0, 1, 0], [], []>} : vector<10x8xbf16>, vector<10x8xbf16>, vector<10x10xf32> -> vector<10x10xf32>
    %73 = arith.addf %72, %28 : vector<10x10xf32>
    %cst_23 = arith.constant dense<0xFF800000> : vector<10xf32>
    %74 = vector.multi_reduction <maximumf>, %73, %cst_23 [1] : vector<10x10xf32> to vector<10xf32>
    %75 = vector.shape_cast %74 : vector<10xf32> to vector<10x1xf32>
    %76 = vector.broadcast %75 : vector<10x1xf32> to vector<10x10xf32>
    %77 = arith.subf %73, %76 : vector<10x10xf32>
    %78 = math.exp %77 : vector<10x10xf32>
    %cst_24 = arith.constant dense<0.000000e+00> : vector<10xf32>
    %79 = vector.multi_reduction <add>, %78, %cst_24 [1] : vector<10x10xf32> to vector<10xf32>
    %80 = vector.shape_cast %79 : vector<10xf32> to vector<10x1xf32>
    %81 = tpu.reciprocal %80 {approx = true} : vector<10x1xf32> -> vector<10x1xf32>
    %82 = vector.broadcast %81 : vector<10x1xf32> to vector<10x10xf32>
    %83 = arith.mulf %78, %82 : vector<10x10xf32>
    %84 = arith.truncf %83 : vector<10x10xf32> to vector<10x10xbf16>
    %85 = arith.truncf %69 : vector<10x8xf32> to vector<10x8xbf16>
    %cst_25 = arith.constant dense<0.000000e+00> : vector<10x8xf32>
    %86 = tpu.matmul %84, %85, %cst_25 {dimension_numbers = #tpu.dot_dimension_numbers<[1], [0], [0], [1], [0, 0, 1, 1], [], []>} : vector<10x10xbf16>, vector<10x8xbf16>, vector<10x8xf32> -> vector<10x8xf32>
    %c0_26 = arith.constant 0 : index
    %c0_27 = arith.constant 0 : index
    %87 = vector.load %arg9[%c0_26, %c0_27] : memref<10x32xf32, #tpu.memory_space<vmem>>, vector<10x8xf32>
    tpu.vector_store %arg9[%c0_26, %c0_27], %86 {strides = array<i32>} : memref<10x32xf32, #tpu.memory_space<vmem>>, vector<10x8xf32>,
    %88 = vector.extract_strided_slice %66 {offsets = [0, 8], sizes = [10, 8], strides = [1, 1]} : vector<10x96xf32> to vector<10x8xf32>
    %89 = vector.extract_strided_slice %66 {offsets = [0, 40], sizes = [10, 8], strides = [1, 1]} : vector<10x96xf32> to vector<10x8xf32>
    %90 = vector.extract_strided_slice %66 {offsets = [0, 72], sizes = [10, 8], strides = [1, 1]} : vector<10x96xf32> to vector<10x8xf32>
    %91 = arith.truncf %88 : vector<10x8xf32> to vector<10x8xbf16>
    %92 = arith.truncf %89 : vector<10x8xf32> to vector<10x8xbf16>
    %cst_28 = arith.constant dense<0.000000e+00> : vector<10x10xf32>
    %93 = tpu.matmul %91, %92, %cst_28 {dimension_numbers = #tpu.dot_dimension_numbers<[1], [1], [0], [0], [0, 0, 1, 0], [], []>} : vector<10x8xbf16>, vector<10x8xbf16>, vector<10x10xf32> -> vector<10x10xf32>
    %94 = arith.addf %93, %28 : vector<10x10xf32>
    %cst_29 = arith.constant dense<0xFF800000> : vector<10xf32>
    %95 = vector.multi_reduction <maximumf>, %94, %cst_29 [1] : vector<10x10xf32> to vector<10xf32>
    %96 = vector.shape_cast %95 : vector<10xf32> to vector<10x1xf32>
    %97 = vector.broadcast %96 : vector<10x1xf32> to vector<10x10xf32>
    %98 = arith.subf %94, %97 : vector<10x10xf32>
    %99 = math.exp %98 : vector<10x10xf32>
    %cst_30 = arith.constant dense<0.000000e+00> : vector<10xf32>
    %100 = vector.multi_reduction <add>, %99, %cst_30 [1] : vector<10x10xf32> to vector<10xf32>
    %101 = vector.shape_cast %100 : vector<10xf32> to vector<10x1xf32>
    %102 = tpu.reciprocal %101 {approx = true} : vector<10x1xf32> -> vector<10x1xf32>
    %103 = vector.broadcast %102 : vector<10x1xf32> to vector<10x10xf32>
    %104 = arith.mulf %99, %103 : vector<10x10xf32>
    %105 = arith.truncf %104 : vector<10x10xf32> to vector<10x10xbf16>
    %106 = arith.truncf %90 : vector<10x8xf32> to vector<10x8xbf16>
    %cst_31 = arith.constant dense<0.000000e+00> : vector<10x8xf32>
    %107 = tpu.matmul %105, %106, %cst_31 {dimension_numbers = #tpu.dot_dimension_numbers<[1], [0], [0], [1], [0, 0, 1, 1], [], []>} : vector<10x10xbf16>, vector<10x8xbf16>, vector<10x8xf32> -> vector<10x8xf32>
    %c0_32 = arith.constant 0 : index
    %c8 = arith.constant 8 : index
    %108 = vector.load %arg9[%c0_32, %c8] : memref<10x32xf32, #tpu.memory_space<vmem>>, vector<10x8xf32>
    tpu.vector_store %arg9[%c0_32, %c8], %107 {strides = array<i32>} : memref<10x32xf32, #tpu.memory_space<vmem>>, vector<10x8xf32>,
    %109 = vector.extract_strided_slice %66 {offsets = [0, 16], sizes = [10, 8], strides = [1, 1]} : vector<10x96xf32> to vector<10x8xf32>
    %110 = vector.extract_strided_slice %66 {offsets = [0, 48], sizes = [10, 8], strides = [1, 1]} : vector<10x96xf32> to vector<10x8xf32>
    %111 = vector.extract_strided_slice %66 {offsets = [0, 80], sizes = [10, 8], strides = [1, 1]} : vector<10x96xf32> to vector<10x8xf32>
    %112 = arith.truncf %109 : vector<10x8xf32> to vector<10x8xbf16>
    %113 = arith.truncf %110 : vector<10x8xf32> to vector<10x8xbf16>
    %cst_33 = arith.constant dense<0.000000e+00> : vector<10x10xf32>
    %114 = tpu.matmul %112, %113, %cst_33 {dimension_numbers = #tpu.dot_dimension_numbers<[1], [1], [0], [0], [0, 0, 1, 0], [], []>} : vector<10x8xbf16>, vector<10x8xbf16>, vector<10x10xf32> -> vector<10x10xf32>
    %115 = arith.addf %114, %28 : vector<10x10xf32>
    %cst_34 = arith.constant dense<0xFF800000> : vector<10xf32>
    %116 = vector.multi_reduction <maximumf>, %115, %cst_34 [1] : vector<10x10xf32> to vector<10xf32>
    %117 = vector.shape_cast %116 : vector<10xf32> to vector<10x1xf32>
    %118 = vector.broadcast %117 : vector<10x1xf32> to vector<10x10xf32>
    %119 = arith.subf %115, %118 : vector<10x10xf32>
    %120 = math.exp %119 : vector<10x10xf32>
    %cst_35 = arith.constant dense<0.000000e+00> : vector<10xf32>
    %121 = vector.multi_reduction <add>, %120, %cst_35 [1] : vector<10x10xf32> to vector<10xf32>
    %122 = vector.shape_cast %121 : vector<10xf32> to vector<10x1xf32>
    %123 = tpu.reciprocal %122 {approx = true} : vector<10x1xf32> -> vector<10x1xf32>
    %124 = vector.broadcast %123 : vector<10x1xf32> to vector<10x10xf32>
    %125 = arith.mulf %120, %124 : vector<10x10xf32>
    %126 = arith.truncf %125 : vector<10x10xf32> to vector<10x10xbf16>
    %127 = arith.truncf %111 : vector<10x8xf32> to vector<10x8xbf16>
    %cst_36 = arith.constant dense<0.000000e+00> : vector<10x8xf32>
    %128 = tpu.matmul %126, %127, %cst_36 {dimension_numbers = #tpu.dot_dimension_numbers<[1], [0], [0], [1], [0, 0, 1, 1], [], []>} : vector<10x10xbf16>, vector<10x8xbf16>, vector<10x8xf32> -> vector<10x8xf32>
    %c0_37 = arith.constant 0 : index
    %c16 = arith.constant 16 : index
    %129 = vector.load %arg9[%c0_37, %c16] : memref<10x32xf32, #tpu.memory_space<vmem>>, vector<10x8xf32>
    tpu.vector_store %arg9[%c0_37, %c16], %128 {strides = array<i32>} : memref<10x32xf32, #tpu.memory_space<vmem>>, vector<10x8xf32>,
    %130 = vector.extract_strided_slice %66 {offsets = [0, 24], sizes = [10, 8], strides = [1, 1]} : vector<10x96xf32> to vector<10x8xf32>
    %131 = vector.extract_strided_slice %66 {offsets = [0, 56], sizes = [10, 8], strides = [1, 1]} : vector<10x96xf32> to vector<10x8xf32>
    %132 = vector.extract_strided_slice %66 {offsets = [0, 88], sizes = [10, 8], strides = [1, 1]} : vector<10x96xf32> to vector<10x8xf32>
    %133 = arith.truncf %130 : vector<10x8xf32> to vector<10x8xbf16>
    %134 = arith.truncf %131 : vector<10x8xf32> to vector<10x8xbf16>
    %cst_38 = arith.constant dense<0.000000e+00> : vector<10x10xf32>
    %135 = tpu.matmul %133, %134, %cst_38 {dimension_numbers = #tpu.dot_dimension_numbers<[1], [1], [0], [0], [0, 0, 1, 0], [], []>} : vector<10x8xbf16>, vector<10x8xbf16>, vector<10x10xf32> -> vector<10x10xf32>
    %136 = arith.addf %135, %28 : vector<10x10xf32>
    %cst_39 = arith.constant dense<0xFF800000> : vector<10xf32>
    %137 = vector.multi_reduction <maximumf>, %136, %cst_39 [1] : vector<10x10xf32> to vector<10xf32>
    %138 = vector.shape_cast %137 : vector<10xf32> to vector<10x1xf32>
    %139 = vector.broadcast %138 : vector<10x1xf32> to vector<10x10xf32>
    %140 = arith.subf %136, %139 : vector<10x10xf32>
    %141 = math.exp %140 : vector<10x10xf32>
    %cst_40 = arith.constant dense<0.000000e+00> : vector<10xf32>
    %142 = vector.multi_reduction <add>, %141, %cst_40 [1] : vector<10x10xf32> to vector<10xf32>
    %143 = vector.shape_cast %142 : vector<10xf32> to vector<10x1xf32>
    %144 = tpu.reciprocal %143 {approx = true} : vector<10x1xf32> -> vector<10x1xf32>
    %145 = vector.broadcast %144 : vector<10x1xf32> to vector<10x10xf32>
    %146 = arith.mulf %141, %145 : vector<10x10xf32>
    %147 = arith.truncf %146 : vector<10x10xf32> to vector<10x10xbf16>
    %148 = arith.truncf %132 : vector<10x8xf32> to vector<10x8xbf16>
    %cst_41 = arith.constant dense<0.000000e+00> : vector<10x8xf32>
    %149 = tpu.matmul %147, %148, %cst_41 {dimension_numbers = #tpu.dot_dimension_numbers<[1], [0], [0], [1], [0, 0, 1, 1], [], []>} : vector<10x10xbf16>, vector<10x8xbf16>, vector<10x8xf32> -> vector<10x8xf32>
    %c0_42 = arith.constant 0 : index
    %c24 = arith.constant 24 : index
    %150 = vector.load %arg9[%c0_42, %c24] : memref<10x32xf32, #tpu.memory_space<vmem>>, vector<10x8xf32>
    tpu.vector_store %arg9[%c0_42, %c24], %149 {strides = array<i32>} : memref<10x32xf32, #tpu.memory_space<vmem>>, vector<10x8xf32>,
    %c0_43 = arith.constant 0 : index
    %c0_44 = arith.constant 0 : index
    %151 = vector.load %arg9[%c0_43, %c0_44] : memref<10x32xf32, #tpu.memory_space<vmem>>, vector<10x32xf32>
    %152 = arith.truncf %151 : vector<10x32xf32> to vector<10x32xbf16>
    %c0_45 = arith.constant 0 : index
    %c0_46 = arith.constant 0 : index
    %c0_47 = arith.constant 0 : index
    %153 = vector.load %arg3[%c0_45, %c0_46, %c0_47] : memref<4x32x32xbf16, #tpu.memory_space<vmem>>, vector<1x32x32xbf16>
    %154 = vector.shape_cast %153 : vector<1x32x32xbf16> to vector<32x32xbf16>
    %cst_48 = arith.constant dense<0.000000e+00> : vector<10x32xf32>
    %155 = tpu.matmul %152, %154, %cst_48 {dimension_numbers = #tpu.dot_dimension_numbers<[1], [0], [0], [1], [0, 0, 1, 1], [], []>} : vector<10x32xbf16>, vector<32x32xbf16>, vector<10x32xf32> -> vector<10x32xf32>
    %156 = vector.broadcast %33 : vector<1x32xf32> to vector<10x32xf32>
    %157 = arith.addf %155, %156 : vector<10x32xf32>
    %158 = arith.addf %0, %157 : vector<10x32xf32>
    %cst_49 = arith.constant dense<0.000000e+00> : vector<10xf32>
    %159 = vector.multi_reduction <add>, %158, %cst_49 [1] : vector<10x32xf32> to vector<10xf32>
    %160 = vector.shape_cast %159 : vector<10xf32> to vector<10x1xf32>
    %cst_50 = arith.constant 3.200000e+01 : f32
    %161 = vector.broadcast %cst_50 : f32 to vector<10x1xf32>
    %162 = arith.divf %160, %161 : vector<10x1xf32>
    %163 = vector.broadcast %162 : vector<10x1xf32> to vector<10x32xf32>
    %164 = arith.subf %158, %163 : vector<10x32xf32>
    %165 = arith.mulf %164, %164 : vector<10x32xf32>
    %cst_51 = arith.constant dense<0.000000e+00> : vector<10xf32>
    %166 = vector.multi_reduction <add>, %165, %cst_51 [1] : vector<10x32xf32> to vector<10xf32>
    %167 = vector.shape_cast %166 : vector<10xf32> to vector<10x1xf32>
    %cst_52 = arith.constant 3.200000e+01 : f32
    %168 = vector.broadcast %cst_52 : f32 to vector<10x1xf32>
    %169 = arith.divf %167, %168 : vector<10x1xf32>
    %170 = vector.broadcast %162 : vector<10x1xf32> to vector<10x32xf32>
    %171 = arith.subf %158, %170 : vector<10x32xf32>
    %cst_53 = arith.constant 9.99999997E-7 : f32
    %172 = vector.broadcast %cst_53 : f32 to vector<10x1xf32>
    %173 = arith.addf %169, %172 : vector<10x1xf32>
    %174 = math.rsqrt %173 : vector<10x1xf32>
    %175 = vector.broadcast %174 : vector<10x1xf32> to vector<10x32xf32>
    %176 = arith.mulf %171, %175 : vector<10x32xf32>
    %177 = vector.broadcast %34 : vector<1x32xf32> to vector<10x32xf32>
    %178 = arith.mulf %176, %177 : vector<10x32xf32>
    %179 = vector.broadcast %35 : vector<1x32xf32> to vector<10x32xf32>
    %180 = arith.addf %178, %179 : vector<10x32xf32>
    %181 = arith.truncf %180 : vector<10x32xf32> to vector<10x32xbf16>
    %c0_54 = arith.constant 0 : index
    %c0_55 = arith.constant 0 : index
    %c0_56 = arith.constant 0 : index
    %182 = vector.load %arg4[%c0_54, %c0_55, %c0_56] : memref<4x32x128xbf16, #tpu.memory_space<vmem>>, vector<1x32x128xbf16>
    %183 = vector.shape_cast %182 : vector<1x32x128xbf16> to vector<32x128xbf16>
    %cst_57 = arith.constant dense<0.000000e+00> : vector<10x128xf32>
    %184 = tpu.matmul %181, %183, %cst_57 {dimension_numbers = #tpu.dot_dimension_numbers<[1], [0], [0], [1], [0, 0, 1, 1], [], []>} : vector<10x32xbf16>, vector<32x128xbf16>, vector<10x128xf32> -> vector<10x128xf32>
    %c0_58 = arith.constant 0 : index
    %c0_59 = arith.constant 0 : index
    %c0_60 = arith.constant 0 : index
    %185 = vector.load %arg5[%c0_58, %c0_59, %c0_60] : memref<4x1x128xf32, #tpu.memory_space<vmem>>, vector<1x1x128xf32>
    %186 = vector.shape_cast %185 : vector<1x1x128xf32> to vector<1x128xf32>
    %187 = vector.broadcast %186 : vector<1x128xf32> to vector<10x128xf32>
    %188 = arith.addf %184, %187 : vector<10x128xf32>
    %cst_61 = arith.constant 5.000000e-01 : f32
    %189 = vector.broadcast %cst_61 : f32 to vector<10x128xf32>
    %190 = arith.mulf %189, %188 : vector<10x128xf32>
    %cst_62 = arith.constant 0.707106769 : f32
    %191 = vector.broadcast %cst_62 : f32 to vector<10x128xf32>
    %192 = arith.mulf %188, %191 : vector<10x128xf32>
    %cst_63 = arith.constant 0.000000e+00 : f32
    %193 = vector.broadcast %cst_63 : f32 to vector<10x128xf32>
    %194 = arith.cmpf oge, %192, %193 : vector<10x128xf32>
    %cst_64 = arith.constant 1.000000e+00 : f32
    %cst_65 = arith.constant -1.000000e+00 : f32
    %195 = vector.broadcast %cst_64 : f32 to vector<10x128xf32>
    %196 = vector.broadcast %cst_65 : f32 to vector<10x128xf32>
    %197 = arith.select %194, %195, %196 : vector<10x128xi1>, vector<10x128xf32>
    %198 = math.absf %192 : vector<10x128xf32>
    %cst_66 = arith.constant 0.327591091 : f32
    %199 = vector.broadcast %cst_66 : f32 to vector<10x128xf32>
    %200 = arith.mulf %199, %198 : vector<10x128xf32>
    %cst_67 = arith.constant 1.000000e+00 : f32
    %201 = vector.broadcast %cst_67 : f32 to vector<10x128xf32>
    %202 = arith.addf %201, %200 : vector<10x128xf32>
    %cst_68 = arith.constant 1.000000e+00 : f32
    %203 = vector.broadcast %cst_68 : f32 to vector<10x128xf32>
    %204 = arith.divf %203, %202 : vector<10x128xf32>
    %cst_69 = arith.constant 1.06140542 : f32
    %205 = vector.broadcast %cst_69 : f32 to vector<10x128xf32>
    %206 = arith.mulf %205, %204 : vector<10x128xf32>
    %cst_70 = arith.constant -1.45315206 : f32
    %207 = vector.broadcast %cst_70 : f32 to vector<10x128xf32>
    %208 = arith.addf %206, %207 : vector<10x128xf32>
    %209 = arith.mulf %208, %204 : vector<10x128xf32>
    %cst_71 = arith.constant 1.42141378 : f32
    %210 = vector.broadcast %cst_71 : f32 to vector<10x128xf32>
    %211 = arith.addf %209, %210 : vector<10x128xf32>
    %212 = arith.mulf %211, %204 : vector<10x128xf32>
    %cst_72 = arith.constant -0.284496725 : f32
    %213 = vector.broadcast %cst_72 : f32 to vector<10x128xf32>
    %214 = arith.addf %212, %213 : vector<10x128xf32>
    %215 = arith.mulf %214, %204 : vector<10x128xf32>
    %cst_73 = arith.constant 0.254829586 : f32
    %216 = vector.broadcast %cst_73 : f32 to vector<10x128xf32>
    %217 = arith.addf %215, %216 : vector<10x128xf32>
    %218 = arith.mulf %217, %204 : vector<10x128xf32>
    %cst_74 = arith.constant 0.000000e+00 : f32
    %219 = vector.broadcast %cst_74 : f32 to vector<10x128xf32>
    %220 = arith.subf %219, %198 : vector<10x128xf32>
    %221 = arith.mulf %220, %198 : vector<10x128xf32>
    %222 = math.exp %221 : vector<10x128xf32>
    %223 = arith.mulf %218, %222 : vector<10x128xf32>
    %cst_75 = arith.constant 1.000000e+00 : f32
    %224 = vector.broadcast %cst_75 : f32 to vector<10x128xf32>
    %225 = arith.subf %224, %223 : vector<10x128xf32>
    %226 = arith.mulf %197, %225 : vector<10x128xf32>
    %cst_76 = arith.constant 1.000000e+00 : f32
    %227 = vector.broadcast %cst_76 : f32 to vector<10x128xf32>
    %228 = arith.addf %227, %226 : vector<10x128xf32>
    %229 = arith.mulf %190, %228 : vector<10x128xf32>
    %230 = arith.truncf %229 : vector<10x128xf32> to vector<10x128xbf16>
    %c0_77 = arith.constant 0 : index
    %c0_78 = arith.constant 0 : index
    %c0_79 = arith.constant 0 : index
    %231 = vector.load %arg6[%c0_77, %c0_78, %c0_79] : memref<4x128x32xbf16, #tpu.memory_space<vmem>>, vector<1x128x32xbf16>
    %232 = vector.shape_cast %231 : vector<1x128x32xbf16> to vector<128x32xbf16>
    %cst_80 = arith.constant dense<0.000000e+00> : vector<10x32xf32>
    %233 = tpu.matmul %230, %232, %cst_80 {dimension_numbers = #tpu.dot_dimension_numbers<[1], [0], [0], [1], [0, 0, 1, 1], [], []>} : vector<10x128xbf16>, vector<128x32xbf16>, vector<10x32xf32> -> vector<10x32xf32>
    %234 = arith.addf %158, %233 : vector<10x32xf32>
    %235 = vector.broadcast %36 : vector<1x32xf32> to vector<10x32xf32>
    %236 = arith.addf %234, %235 : vector<10x32xf32>
    %c0_81 = arith.constant 0 : index
    %c0_82 = arith.constant 0 : index
    %237 = vector.load %arg8[%c0_81, %c0_82] : memref<10x128xf32, #tpu.memory_space<vmem>>, vector<10x32xf32>
    tpu.vector_store %arg8[%c0_81, %c0_82], %236 {strides = array<i32>} : memref<10x128xf32, #tpu.memory_space<vmem>>, vector<10x32xf32>,
    %c1 = arith.constant 1 : index
    %c0_83 = arith.constant 0 : index
    %c0_84 = arith.constant 0 : index
    %238 = vector.load %arg7[%c1, %c0_83, %c0_84] : memref<4x6x32xf32, #tpu.memory_space<vmem>>, vector<1x6x32xf32>
    %239 = vector.shape_cast %238 : vector<1x6x32xf32> to vector<6x32xf32>
    %240 = vector.extract_strided_slice %239 {offsets = [0, 0], sizes = [1, 32], strides = [1, 1]} : vector<6x32xf32> to vector<1x32xf32>
    %241 = vector.extract_strided_slice %239 {offsets = [1, 0], sizes = [1, 32], strides = [1, 1]} : vector<6x32xf32> to vector<1x32xf32>
    %242 = vector.extract_strided_slice %239 {offsets = [2, 0], sizes = [1, 32], strides = [1, 1]} : vector<6x32xf32> to vector<1x32xf32>
    %243 = vector.extract_strided_slice %239 {offsets = [3, 0], sizes = [1, 32], strides = [1, 1]} : vector<6x32xf32> to vector<1x32xf32>
    %244 = vector.extract_strided_slice %239 {offsets = [4, 0], sizes = [1, 32], strides = [1, 1]} : vector<6x32xf32> to vector<1x32xf32>
    %245 = vector.extract_strided_slice %239 {offsets = [5, 0], sizes = [1, 32], strides = [1, 1]} : vector<6x32xf32> to vector<1x32xf32>
    %cst_85 = arith.constant dense<0.000000e+00> : vector<10xf32>
    %246 = vector.multi_reduction <add>, %236, %cst_85 [1] : vector<10x32xf32> to vector<10xf32>
    %247 = vector.shape_cast %246 : vector<10xf32> to vector<10x1xf32>
    %cst_86 = arith.constant 3.200000e+01 : f32
    %248 = vector.broadcast %cst_86 : f32 to vector<10x1xf32>
    %249 = arith.divf %247, %248 : vector<10x1xf32>
    %250 = vector.broadcast %249 : vector<10x1xf32> to vector<10x32xf32>
    %251 = arith.subf %236, %250 : vector<10x32xf32>
    %252 = arith.mulf %251, %251 : vector<10x32xf32>
    %cst_87 = arith.constant dense<0.000000e+00> : vector<10xf32>
    %253 = vector.multi_reduction <add>, %252, %cst_87 [1] : vector<10x32xf32> to vector<10xf32>
    %254 = vector.shape_cast %253 : vector<10xf32> to vector<10x1xf32>
    %cst_88 = arith.constant 3.200000e+01 : f32
    %255 = vector.broadcast %cst_88 : f32 to vector<10x1xf32>
    %256 = arith.divf %254, %255 : vector<10x1xf32>
    %257 = vector.broadcast %249 : vector<10x1xf32> to vector<10x32xf32>
    %258 = arith.subf %236, %257 : vector<10x32xf32>
    %cst_89 = arith.constant 9.99999997E-7 : f32
    %259 = vector.broadcast %cst_89 : f32 to vector<10x1xf32>
    %260 = arith.addf %256, %259 : vector<10x1xf32>
    %261 = math.rsqrt %260 : vector<10x1xf32>
    %262 = vector.broadcast %261 : vector<10x1xf32> to vector<10x32xf32>
    %263 = arith.mulf %258, %262 : vector<10x32xf32>
    %264 = vector.broadcast %240 : vector<1x32xf32> to vector<10x32xf32>
    %265 = arith.mulf %263, %264 : vector<10x32xf32>
    %266 = vector.broadcast %241 : vector<1x32xf32> to vector<10x32xf32>
    %267 = arith.addf %265, %266 : vector<10x32xf32>
    %268 = arith.truncf %267 : vector<10x32xf32> to vector<10x32xbf16>
    %c1_90 = arith.constant 1 : index
    %c0_91 = arith.constant 0 : index
    %c0_92 = arith.constant 0 : index
    %269 = vector.load %arg1[%c1_90, %c0_91, %c0_92] : memref<4x32x96xbf16, #tpu.memory_space<vmem>>, vector<1x32x96xbf16>
    %270 = vector.shape_cast %269 : vector<1x32x96xbf16> to vector<32x96xbf16>
    %cst_93 = arith.constant dense<0.000000e+00> : vector<10x96xf32>
    %271 = tpu.matmul %268, %270, %cst_93 {dimension_numbers = #tpu.dot_dimension_numbers<[1], [0], [0], [1], [0, 0, 1, 1], [], []>} : vector<10x32xbf16>, vector<32x96xbf16>, vector<10x96xf32> -> vector<10x96xf32>
    %c1_94 = arith.constant 1 : index
    %c0_95 = arith.constant 0 : index
    %c0_96 = arith.constant 0 : index
    %272 = vector.load %arg2[%c1_94, %c0_95, %c0_96] : memref<4x1x96xf32, #tpu.memory_space<vmem>>, vector<1x1x96xf32>
    %273 = vector.shape_cast %272 : vector<1x1x96xf32> to vector<1x96xf32>
    %274 = vector.broadcast %273 : vector<1x96xf32> to vector<10x96xf32>
    %275 = arith.addf %271, %274 : vector<10x96xf32>
    %276 = vector.extract_strided_slice %275 {offsets = [0, 0], sizes = [10, 8], strides = [1, 1]} : vector<10x96xf32> to vector<10x8xf32>
    %277 = vector.extract_strided_slice %275 {offsets = [0, 32], sizes = [10, 8], strides = [1, 1]} : vector<10x96xf32> to vector<10x8xf32>
    %278 = vector.extract_strided_slice %275 {offsets = [0, 64], sizes = [10, 8], strides = [1, 1]} : vector<10x96xf32> to vector<10x8xf32>
    %279 = arith.truncf %276 : vector<10x8xf32> to vector<10x8xbf16>
    %280 = arith.truncf %277 : vector<10x8xf32> to vector<10x8xbf16>
    %cst_97 = arith.constant dense<0.000000e+00> : vector<10x10xf32>
    %281 = tpu.matmul %279, %280, %cst_97 {dimension_numbers = #tpu.dot_dimension_numbers<[1], [1], [0], [0], [0, 0, 1, 0], [], []>} : vector<10x8xbf16>, vector<10x8xbf16>, vector<10x10xf32> -> vector<10x10xf32>
    %282 = arith.addf %281, %28 : vector<10x10xf32>
    %cst_98 = arith.constant dense<0xFF800000> : vector<10xf32>
    %283 = vector.multi_reduction <maximumf>, %282, %cst_98 [1] : vector<10x10xf32> to vector<10xf32>
    %284 = vector.shape_cast %283 : vector<10xf32> to vector<10x1xf32>
    %285 = vector.broadcast %284 : vector<10x1xf32> to vector<10x10xf32>
    %286 = arith.subf %282, %285 : vector<10x10xf32>
    %287 = math.exp %286 : vector<10x10xf32>
    %cst_99 = arith.constant dense<0.000000e+00> : vector<10xf32>
    %288 = vector.multi_reduction <add>, %287, %cst_99 [1] : vector<10x10xf32> to vector<10xf32>
    %289 = vector.shape_cast %288 : vector<10xf32> to vector<10x1xf32>
    %290 = tpu.reciprocal %289 {approx = true} : vector<10x1xf32> -> vector<10x1xf32>
    %291 = vector.broadcast %290 : vector<10x1xf32> to vector<10x10xf32>
    %292 = arith.mulf %287, %291 : vector<10x10xf32>
    %293 = arith.truncf %292 : vector<10x10xf32> to vector<10x10xbf16>
    %294 = arith.truncf %278 : vector<10x8xf32> to vector<10x8xbf16>
    %cst_100 = arith.constant dense<0.000000e+00> : vector<10x8xf32>
    %295 = tpu.matmul %293, %294, %cst_100 {dimension_numbers = #tpu.dot_dimension_numbers<[1], [0], [0], [1], [0, 0, 1, 1], [], []>} : vector<10x10xbf16>, vector<10x8xbf16>, vector<10x8xf32> -> vector<10x8xf32>
    %c0_101 = arith.constant 0 : index
    %c0_102 = arith.constant 0 : index
    %296 = vector.load %arg9[%c0_101, %c0_102] : memref<10x32xf32, #tpu.memory_space<vmem>>, vector<10x8xf32>
    tpu.vector_store %arg9[%c0_101, %c0_102], %295 {strides = array<i32>} : memref<10x32xf32, #tpu.memory_space<vmem>>, vector<10x8xf32>,
    %297 = vector.extract_strided_slice %275 {offsets = [0, 8], sizes = [10, 8], strides = [1, 1]} : vector<10x96xf32> to vector<10x8xf32>
    %298 = vector.extract_strided_slice %275 {offsets = [0, 40], sizes = [10, 8], strides = [1, 1]} : vector<10x96xf32> to vector<10x8xf32>
    %299 = vector.extract_strided_slice %275 {offsets = [0, 72], sizes = [10, 8], strides = [1, 1]} : vector<10x96xf32> to vector<10x8xf32>
    %300 = arith.truncf %297 : vector<10x8xf32> to vector<10x8xbf16>
    %301 = arith.truncf %298 : vector<10x8xf32> to vector<10x8xbf16>
    %cst_103 = arith.constant dense<0.000000e+00> : vector<10x10xf32>
    %302 = tpu.matmul %300, %301, %cst_103 {dimension_numbers = #tpu.dot_dimension_numbers<[1], [1], [0], [0], [0, 0, 1, 0], [], []>} : vector<10x8xbf16>, vector<10x8xbf16>, vector<10x10xf32> -> vector<10x10xf32>
    %303 = arith.addf %302, %28 : vector<10x10xf32>
    %cst_104 = arith.constant dense<0xFF800000> : vector<10xf32>
    %304 = vector.multi_reduction <maximumf>, %303, %cst_104 [1] : vector<10x10xf32> to vector<10xf32>
    %305 = vector.shape_cast %304 : vector<10xf32> to vector<10x1xf32>
    %306 = vector.broadcast %305 : vector<10x1xf32> to vector<10x10xf32>
    %307 = arith.subf %303, %306 : vector<10x10xf32>
    %308 = math.exp %307 : vector<10x10xf32>
    %cst_105 = arith.constant dense<0.000000e+00> : vector<10xf32>
    %309 = vector.multi_reduction <add>, %308, %cst_105 [1] : vector<10x10xf32> to vector<10xf32>
    %310 = vector.shape_cast %309 : vector<10xf32> to vector<10x1xf32>
    %311 = tpu.reciprocal %310 {approx = true} : vector<10x1xf32> -> vector<10x1xf32>
    %312 = vector.broadcast %311 : vector<10x1xf32> to vector<10x10xf32>
    %313 = arith.mulf %308, %312 : vector<10x10xf32>
    %314 = arith.truncf %313 : vector<10x10xf32> to vector<10x10xbf16>
    %315 = arith.truncf %299 : vector<10x8xf32> to vector<10x8xbf16>
    %cst_106 = arith.constant dense<0.000000e+00> : vector<10x8xf32>
    %316 = tpu.matmul %314, %315, %cst_106 {dimension_numbers = #tpu.dot_dimension_numbers<[1], [0], [0], [1], [0, 0, 1, 1], [], []>} : vector<10x10xbf16>, vector<10x8xbf16>, vector<10x8xf32> -> vector<10x8xf32>
    %c0_107 = arith.constant 0 : index
    %c8_108 = arith.constant 8 : index
    %317 = vector.load %arg9[%c0_107, %c8_108] : memref<10x32xf32, #tpu.memory_space<vmem>>, vector<10x8xf32>
    tpu.vector_store %arg9[%c0_107, %c8_108], %316 {strides = array<i32>} : memref<10x32xf32, #tpu.memory_space<vmem>>, vector<10x8xf32>,
    %318 = vector.extract_strided_slice %275 {offsets = [0, 16], sizes = [10, 8], strides = [1, 1]} : vector<10x96xf32> to vector<10x8xf32>
    %319 = vector.extract_strided_slice %275 {offsets = [0, 48], sizes = [10, 8], strides = [1, 1]} : vector<10x96xf32> to vector<10x8xf32>
    %320 = vector.extract_strided_slice %275 {offsets = [0, 80], sizes = [10, 8], strides = [1, 1]} : vector<10x96xf32> to vector<10x8xf32>
    %321 = arith.truncf %318 : vector<10x8xf32> to vector<10x8xbf16>
    %322 = arith.truncf %319 : vector<10x8xf32> to vector<10x8xbf16>
    %cst_109 = arith.constant dense<0.000000e+00> : vector<10x10xf32>
    %323 = tpu.matmul %321, %322, %cst_109 {dimension_numbers = #tpu.dot_dimension_numbers<[1], [1], [0], [0], [0, 0, 1, 0], [], []>} : vector<10x8xbf16>, vector<10x8xbf16>, vector<10x10xf32> -> vector<10x10xf32>
    %324 = arith.addf %323, %28 : vector<10x10xf32>
    %cst_110 = arith.constant dense<0xFF800000> : vector<10xf32>
    %325 = vector.multi_reduction <maximumf>, %324, %cst_110 [1] : vector<10x10xf32> to vector<10xf32>
    %326 = vector.shape_cast %325 : vector<10xf32> to vector<10x1xf32>
    %327 = vector.broadcast %326 : vector<10x1xf32> to vector<10x10xf32>
    %328 = arith.subf %324, %327 : vector<10x10xf32>
    %329 = math.exp %328 : vector<10x10xf32>
    %cst_111 = arith.constant dense<0.000000e+00> : vector<10xf32>
    %330 = vector.multi_reduction <add>, %329, %cst_111 [1] : vector<10x10xf32> to vector<10xf32>
    %331 = vector.shape_cast %330 : vector<10xf32> to vector<10x1xf32>
    %332 = tpu.reciprocal %331 {approx = true} : vector<10x1xf32> -> vector<10x1xf32>
    %333 = vector.broadcast %332 : vector<10x1xf32> to vector<10x10xf32>
    %334 = arith.mulf %329, %333 : vector<10x10xf32>
    %335 = arith.truncf %334 : vector<10x10xf32> to vector<10x10xbf16>
    %336 = arith.truncf %320 : vector<10x8xf32> to vector<10x8xbf16>
    %cst_112 = arith.constant dense<0.000000e+00> : vector<10x8xf32>
    %337 = tpu.matmul %335, %336, %cst_112 {dimension_numbers = #tpu.dot_dimension_numbers<[1], [0], [0], [1], [0, 0, 1, 1], [], []>} : vector<10x10xbf16>, vector<10x8xbf16>, vector<10x8xf32> -> vector<10x8xf32>
    %c0_113 = arith.constant 0 : index
    %c16_114 = arith.constant 16 : index
    %338 = vector.load %arg9[%c0_113, %c16_114] : memref<10x32xf32, #tpu.memory_space<vmem>>, vector<10x8xf32>
    tpu.vector_store %arg9[%c0_113, %c16_114], %337 {strides = array<i32>} : memref<10x32xf32, #tpu.memory_space<vmem>>, vector<10x8xf32>,
    %339 = vector.extract_strided_slice %275 {offsets = [0, 24], sizes = [10, 8], strides = [1, 1]} : vector<10x96xf32> to vector<10x8xf32>
    %340 = vector.extract_strided_slice %275 {offsets = [0, 56], sizes = [10, 8], strides = [1, 1]} : vector<10x96xf32> to vector<10x8xf32>
    %341 = vector.extract_strided_slice %275 {offsets = [0, 88], sizes = [10, 8], strides = [1, 1]} : vector<10x96xf32> to vector<10x8xf32>
    %342 = arith.truncf %339 : vector<10x8xf32> to vector<10x8xbf16>
    %343 = arith.truncf %340 : vector<10x8xf32> to vector<10x8xbf16>
    %cst_115 = arith.constant dense<0.000000e+00> : vector<10x10xf32>
    %344 = tpu.matmul %342, %343, %cst_115 {dimension_numbers = #tpu.dot_dimension_numbers<[1], [1], [0], [0], [0, 0, 1, 0], [], []>} : vector<10x8xbf16>, vector<10x8xbf16>, vector<10x10xf32> -> vector<10x10xf32>
    %345 = arith.addf %344, %28 : vector<10x10xf32>
    %cst_116 = arith.constant dense<0xFF800000> : vector<10xf32>
    %346 = vector.multi_reduction <maximumf>, %345, %cst_116 [1] : vector<10x10xf32> to vector<10xf32>
    %347 = vector.shape_cast %346 : vector<10xf32> to vector<10x1xf32>
    %348 = vector.broadcast %347 : vector<10x1xf32> to vector<10x10xf32>
    %349 = arith.subf %345, %348 : vector<10x10xf32>
    %350 = math.exp %349 : vector<10x10xf32>
    %cst_117 = arith.constant dense<0.000000e+00> : vector<10xf32>
    %351 = vector.multi_reduction <add>, %350, %cst_117 [1] : vector<10x10xf32> to vector<10xf32>
    %352 = vector.shape_cast %351 : vector<10xf32> to vector<10x1xf32>
    %353 = tpu.reciprocal %352 {approx = true} : vector<10x1xf32> -> vector<10x1xf32>
    %354 = vector.broadcast %353 : vector<10x1xf32> to vector<10x10xf32>
    %355 = arith.mulf %350, %354 : vector<10x10xf32>
    %356 = arith.truncf %355 : vector<10x10xf32> to vector<10x10xbf16>
    %357 = arith.truncf %341 : vector<10x8xf32> to vector<10x8xbf16>
    %cst_118 = arith.constant dense<0.000000e+00> : vector<10x8xf32>
    %358 = tpu.matmul %356, %357, %cst_118 {dimension_numbers = #tpu.dot_dimension_numbers<[1], [0], [0], [1], [0, 0, 1, 1], [], []>} : vector<10x10xbf16>, vector<10x8xbf16>, vector<10x8xf32> -> vector<10x8xf32>
    %c0_119 = arith.constant 0 : index
    %c24_120 = arith.constant 24 : index
    %359 = vector.load %arg9[%c0_119, %c24_120] : memref<10x32xf32, #tpu.memory_space<vmem>>, vector<10x8xf32>
    tpu.vector_store %arg9[%c0_119, %c24_120], %358 {strides = array<i32>} : memref<10x32xf32, #tpu.memory_space<vmem>>, vector<10x8xf32>,
    %c0_121 = arith.constant 0 : index
    %c0_122 = arith.constant 0 : index
    %360 = vector.load %arg9[%c0_121, %c0_122] : memref<10x32xf32, #tpu.memory_space<vmem>>, vector<10x32xf32>
    %361 = arith.truncf %360 : vector<10x32xf32> to vector<10x32xbf16>
    %c1_123 = arith.constant 1 : index
    %c0_124 = arith.constant 0 : index
    %c0_125 = arith.constant 0 : index
    %362 = vector.load %arg3[%c1_123, %c0_124, %c0_125] : memref<4x32x32xbf16, #tpu.memory_space<vmem>>, vector<1x32x32xbf16>
    %363 = vector.shape_cast %362 : vector<1x32x32xbf16> to vector<32x32xbf16>
    %cst_126 = arith.constant dense<0.000000e+00> : vector<10x32xf32>
    %364 = tpu.matmul %361, %363, %cst_126 {dimension_numbers = #tpu.dot_dimension_numbers<[1], [0], [0], [1], [0, 0, 1, 1], [], []>} : vector<10x32xbf16>, vector<32x32xbf16>, vector<10x32xf32> -> vector<10x32xf32>
    %365 = vector.broadcast %242 : vector<1x32xf32> to vector<10x32xf32>
    %366 = arith.addf %364, %365 : vector<10x32xf32>
    %367 = arith.addf %236, %366 : vector<10x32xf32>
    %cst_127 = arith.constant dense<0.000000e+00> : vector<10xf32>
    %368 = vector.multi_reduction <add>, %367, %cst_127 [1] : vector<10x32xf32> to vector<10xf32>
    %369 = vector.shape_cast %368 : vector<10xf32> to vector<10x1xf32>
    %cst_128 = arith.constant 3.200000e+01 : f32
    %370 = vector.broadcast %cst_128 : f32 to vector<10x1xf32>
    %371 = arith.divf %369, %370 : vector<10x1xf32>
    %372 = vector.broadcast %371 : vector<10x1xf32> to vector<10x32xf32>
    %373 = arith.subf %367, %372 : vector<10x32xf32>
    %374 = arith.mulf %373, %373 : vector<10x32xf32>
    %cst_129 = arith.constant dense<0.000000e+00> : vector<10xf32>
    %375 = vector.multi_reduction <add>, %374, %cst_129 [1] : vector<10x32xf32> to vector<10xf32>
    %376 = vector.shape_cast %375 : vector<10xf32> to vector<10x1xf32>
    %cst_130 = arith.constant 3.200000e+01 : f32
    %377 = vector.broadcast %cst_130 : f32 to vector<10x1xf32>
    %378 = arith.divf %376, %377 : vector<10x1xf32>
    %379 = vector.broadcast %371 : vector<10x1xf32> to vector<10x32xf32>
    %380 = arith.subf %367, %379 : vector<10x32xf32>
    %cst_131 = arith.constant 9.99999997E-7 : f32
    %381 = vector.broadcast %cst_131 : f32 to vector<10x1xf32>
    %382 = arith.addf %378, %381 : vector<10x1xf32>
    %383 = math.rsqrt %382 : vector<10x1xf32>
    %384 = vector.broadcast %383 : vector<10x1xf32> to vector<10x32xf32>
    %385 = arith.mulf %380, %384 : vector<10x32xf32>
    %386 = vector.broadcast %243 : vector<1x32xf32> to vector<10x32xf32>
    %387 = arith.mulf %385, %386 : vector<10x32xf32>
    %388 = vector.broadcast %244 : vector<1x32xf32> to vector<10x32xf32>
    %389 = arith.addf %387, %388 : vector<10x32xf32>
    %390 = arith.truncf %389 : vector<10x32xf32> to vector<10x32xbf16>
    %c1_132 = arith.constant 1 : index
    %c0_133 = arith.constant 0 : index
    %c0_134 = arith.constant 0 : index
    %391 = vector.load %arg4[%c1_132, %c0_133, %c0_134] : memref<4x32x128xbf16, #tpu.memory_space<vmem>>, vector<1x32x128xbf16>
    %392 = vector.shape_cast %391 : vector<1x32x128xbf16> to vector<32x128xbf16>
    %cst_135 = arith.constant dense<0.000000e+00> : vector<10x128xf32>
    %393 = tpu.matmul %390, %392, %cst_135 {dimension_numbers = #tpu.dot_dimension_numbers<[1], [0], [0], [1], [0, 0, 1, 1], [], []>} : vector<10x32xbf16>, vector<32x128xbf16>, vector<10x128xf32> -> vector<10x128xf32>
    %c1_136 = arith.constant 1 : index
    %c0_137 = arith.constant 0 : index
    %c0_138 = arith.constant 0 : index
    %394 = vector.load %arg5[%c1_136, %c0_137, %c0_138] : memref<4x1x128xf32, #tpu.memory_space<vmem>>, vector<1x1x128xf32>
    %395 = vector.shape_cast %394 : vector<1x1x128xf32> to vector<1x128xf32>
    %396 = vector.broadcast %395 : vector<1x128xf32> to vector<10x128xf32>
    %397 = arith.addf %393, %396 : vector<10x128xf32>
    %cst_139 = arith.constant 5.000000e-01 : f32
    %398 = vector.broadcast %cst_139 : f32 to vector<10x128xf32>
    %399 = arith.mulf %398, %397 : vector<10x128xf32>
    %cst_140 = arith.constant 0.707106769 : f32
    %400 = vector.broadcast %cst_140 : f32 to vector<10x128xf32>
    %401 = arith.mulf %397, %400 : vector<10x128xf32>
    %cst_141 = arith.constant 0.000000e+00 : f32
    %402 = vector.broadcast %cst_141 : f32 to vector<10x128xf32>
    %403 = arith.cmpf oge, %401, %402 : vector<10x128xf32>
    %cst_142 = arith.constant 1.000000e+00 : f32
    %cst_143 = arith.constant -1.000000e+00 : f32
    %404 = vector.broadcast %cst_142 : f32 to vector<10x128xf32>
    %405 = vector.broadcast %cst_143 : f32 to vector<10x128xf32>
    %406 = arith.select %403, %404, %405 : vector<10x128xi1>, vector<10x128xf32>
    %407 = math.absf %401 : vector<10x128xf32>
    %cst_144 = arith.constant 0.327591091 : f32
    %408 = vector.broadcast %cst_144 : f32 to vector<10x128xf32>
    %409 = arith.mulf %408, %407 : vector<10x128xf32>
    %cst_145 = arith.constant 1.000000e+00 : f32
    %410 = vector.broadcast %cst_145 : f32 to vector<10x128xf32>
    %411 = arith.addf %410, %409 : vector<10x128xf32>
    %cst_146 = arith.constant 1.000000e+00 : f32
    %412 = vector.broadcast %cst_146 : f32 to vector<10x128xf32>
    %413 = arith.divf %412, %411 : vector<10x128xf32>
    %cst_147 = arith.constant 1.06140542 : f32
    %414 = vector.broadcast %cst_147 : f32 to vector<10x128xf32>
    %415 = arith.mulf %414, %413 : vector<10x128xf32>
    %cst_148 = arith.constant -1.45315206 : f32
    %416 = vector.broadcast %cst_148 : f32 to vector<10x128xf32>
    %417 = arith.addf %415, %416 : vector<10x128xf32>
    %418 = arith.mulf %417, %413 : vector<10x128xf32>
    %cst_149 = arith.constant 1.42141378 : f32
    %419 = vector.broadcast %cst_149 : f32 to vector<10x128xf32>
    %420 = arith.addf %418, %419 : vector<10x128xf32>
    %421 = arith.mulf %420, %413 : vector<10x128xf32>
    %cst_150 = arith.constant -0.284496725 : f32
    %422 = vector.broadcast %cst_150 : f32 to vector<10x128xf32>
    %423 = arith.addf %421, %422 : vector<10x128xf32>
    %424 = arith.mulf %423, %413 : vector<10x128xf32>
    %cst_151 = arith.constant 0.254829586 : f32
    %425 = vector.broadcast %cst_151 : f32 to vector<10x128xf32>
    %426 = arith.addf %424, %425 : vector<10x128xf32>
    %427 = arith.mulf %426, %413 : vector<10x128xf32>
    %cst_152 = arith.constant 0.000000e+00 : f32
    %428 = vector.broadcast %cst_152 : f32 to vector<10x128xf32>
    %429 = arith.subf %428, %407 : vector<10x128xf32>
    %430 = arith.mulf %429, %407 : vector<10x128xf32>
    %431 = math.exp %430 : vector<10x128xf32>
    %432 = arith.mulf %427, %431 : vector<10x128xf32>
    %cst_153 = arith.constant 1.000000e+00 : f32
    %433 = vector.broadcast %cst_153 : f32 to vector<10x128xf32>
    %434 = arith.subf %433, %432 : vector<10x128xf32>
    %435 = arith.mulf %406, %434 : vector<10x128xf32>
    %cst_154 = arith.constant 1.000000e+00 : f32
    %436 = vector.broadcast %cst_154 : f32 to vector<10x128xf32>
    %437 = arith.addf %436, %435 : vector<10x128xf32>
    %438 = arith.mulf %399, %437 : vector<10x128xf32>
    %439 = arith.truncf %438 : vector<10x128xf32> to vector<10x128xbf16>
    %c1_155 = arith.constant 1 : index
    %c0_156 = arith.constant 0 : index
    %c0_157 = arith.constant 0 : index
    %440 = vector.load %arg6[%c1_155, %c0_156, %c0_157] : memref<4x128x32xbf16, #tpu.memory_space<vmem>>, vector<1x128x32xbf16>
    %441 = vector.shape_cast %440 : vector<1x128x32xbf16> to vector<128x32xbf16>
    %cst_158 = arith.constant dense<0.000000e+00> : vector<10x32xf32>
    %442 = tpu.matmul %439, %441, %cst_158 {dimension_numbers = #tpu.dot_dimension_numbers<[1], [0], [0], [1], [0, 0, 1, 1], [], []>} : vector<10x128xbf16>, vector<128x32xbf16>, vector<10x32xf32> -> vector<10x32xf32>
    %443 = arith.addf %367, %442 : vector<10x32xf32>
    %444 = vector.broadcast %245 : vector<1x32xf32> to vector<10x32xf32>
    %445 = arith.addf %443, %444 : vector<10x32xf32>
    %c0_159 = arith.constant 0 : index
    %c32 = arith.constant 32 : index
    %446 = vector.load %arg8[%c0_159, %c32] : memref<10x128xf32, #tpu.memory_space<vmem>>, vector<10x32xf32>
    tpu.vector_store %arg8[%c0_159, %c32], %445 {strides = array<i32>} : memref<10x128xf32, #tpu.memory_space<vmem>>, vector<10x32xf32>,
    %c2 = arith.constant 2 : index
    %c0_160 = arith.constant 0 : index
    %c0_161 = arith.constant 0 : index
    %447 = vector.load %arg7[%c2, %c0_160, %c0_161] : memref<4x6x32xf32, #tpu.memory_space<vmem>>, vector<1x6x32xf32>
    %448 = vector.shape_cast %447 : vector<1x6x32xf32> to vector<6x32xf32>
    %449 = vector.extract_strided_slice %448 {offsets = [0, 0], sizes = [1, 32], strides = [1, 1]} : vector<6x32xf32> to vector<1x32xf32>
    %450 = vector.extract_strided_slice %448 {offsets = [1, 0], sizes = [1, 32], strides = [1, 1]} : vector<6x32xf32> to vector<1x32xf32>
    %451 = vector.extract_strided_slice %448 {offsets = [2, 0], sizes = [1, 32], strides = [1, 1]} : vector<6x32xf32> to vector<1x32xf32>
    %452 = vector.extract_strided_slice %448 {offsets = [3, 0], sizes = [1, 32], strides = [1, 1]} : vector<6x32xf32> to vector<1x32xf32>
    %453 = vector.extract_strided_slice %448 {offsets = [4, 0], sizes = [1, 32], strides = [1, 1]} : vector<6x32xf32> to vector<1x32xf32>
    %454 = vector.extract_strided_slice %448 {offsets = [5, 0], sizes = [1, 32], strides = [1, 1]} : vector<6x32xf32> to vector<1x32xf32>
    %cst_162 = arith.constant dense<0.000000e+00> : vector<10xf32>
    %455 = vector.multi_reduction <add>, %445, %cst_162 [1] : vector<10x32xf32> to vector<10xf32>
    %456 = vector.shape_cast %455 : vector<10xf32> to vector<10x1xf32>
    %cst_163 = arith.constant 3.200000e+01 : f32
    %457 = vector.broadcast %cst_163 : f32 to vector<10x1xf32>
    %458 = arith.divf %456, %457 : vector<10x1xf32>
    %459 = vector.broadcast %458 : vector<10x1xf32> to vector<10x32xf32>
    %460 = arith.subf %445, %459 : vector<10x32xf32>
    %461 = arith.mulf %460, %460 : vector<10x32xf32>
    %cst_164 = arith.constant dense<0.000000e+00> : vector<10xf32>
    %462 = vector.multi_reduction <add>, %461, %cst_164 [1] : vector<10x32xf32> to vector<10xf32>
    %463 = vector.shape_cast %462 : vector<10xf32> to vector<10x1xf32>
    %cst_165 = arith.constant 3.200000e+01 : f32
    %464 = vector.broadcast %cst_165 : f32 to vector<10x1xf32>
    %465 = arith.divf %463, %464 : vector<10x1xf32>
    %466 = vector.broadcast %458 : vector<10x1xf32> to vector<10x32xf32>
    %467 = arith.subf %445, %466 : vector<10x32xf32>
    %cst_166 = arith.constant 9.99999997E-7 : f32
    %468 = vector.broadcast %cst_166 : f32 to vector<10x1xf32>
    %469 = arith.addf %465, %468 : vector<10x1xf32>
    %470 = math.rsqrt %469 : vector<10x1xf32>
    %471 = vector.broadcast %470 : vector<10x1xf32> to vector<10x32xf32>
    %472 = arith.mulf %467, %471 : vector<10x32xf32>
    %473 = vector.broadcast %449 : vector<1x32xf32> to vector<10x32xf32>
    %474 = arith.mulf %472, %473 : vector<10x32xf32>
    %475 = vector.broadcast %450 : vector<1x32xf32> to vector<10x32xf32>
    %476 = arith.addf %474, %475 : vector<10x32xf32>
    %477 = arith.truncf %476 : vector<10x32xf32> to vector<10x32xbf16>
    %c2_167 = arith.constant 2 : index
    %c0_168 = arith.constant 0 : index
    %c0_169 = arith.constant 0 : index
    %478 = vector.load %arg1[%c2_167, %c0_168, %c0_169] : memref<4x32x96xbf16, #tpu.memory_space<vmem>>, vector<1x32x96xbf16>
    %479 = vector.shape_cast %478 : vector<1x32x96xbf16> to vector<32x96xbf16>
    %cst_170 = arith.constant dense<0.000000e+00> : vector<10x96xf32>
    %480 = tpu.matmul %477, %479, %cst_170 {dimension_numbers = #tpu.dot_dimension_numbers<[1], [0], [0], [1], [0, 0, 1, 1], [], []>} : vector<10x32xbf16>, vector<32x96xbf16>, vector<10x96xf32> -> vector<10x96xf32>
    %c2_171 = arith.constant 2 : index
    %c0_172 = arith.constant 0 : index
    %c0_173 = arith.constant 0 : index
    %481 = vector.load %arg2[%c2_171, %c0_172, %c0_173] : memref<4x1x96xf32, #tpu.memory_space<vmem>>, vector<1x1x96xf32>
    %482 = vector.shape_cast %481 : vector<1x1x96xf32> to vector<1x96xf32>
    %483 = vector.broadcast %482 : vector<1x96xf32> to vector<10x96xf32>
    %484 = arith.addf %480, %483 : vector<10x96xf32>
    %485 = vector.extract_strided_slice %484 {offsets = [0, 0], sizes = [10, 8], strides = [1, 1]} : vector<10x96xf32> to vector<10x8xf32>
    %486 = vector.extract_strided_slice %484 {offsets = [0, 32], sizes = [10, 8], strides = [1, 1]} : vector<10x96xf32> to vector<10x8xf32>
    %487 = vector.extract_strided_slice %484 {offsets = [0, 64], sizes = [10, 8], strides = [1, 1]} : vector<10x96xf32> to vector<10x8xf32>
    %488 = arith.truncf %485 : vector<10x8xf32> to vector<10x8xbf16>
    %489 = arith.truncf %486 : vector<10x8xf32> to vector<10x8xbf16>
    %cst_174 = arith.constant dense<0.000000e+00> : vector<10x10xf32>
    %490 = tpu.matmul %488, %489, %cst_174 {dimension_numbers = #tpu.dot_dimension_numbers<[1], [1], [0], [0], [0, 0, 1, 0], [], []>} : vector<10x8xbf16>, vector<10x8xbf16>, vector<10x10xf32> -> vector<10x10xf32>
    %491 = arith.addf %490, %28 : vector<10x10xf32>
    %cst_175 = arith.constant dense<0xFF800000> : vector<10xf32>
    %492 = vector.multi_reduction <maximumf>, %491, %cst_175 [1] : vector<10x10xf32> to vector<10xf32>
    %493 = vector.shape_cast %492 : vector<10xf32> to vector<10x1xf32>
    %494 = vector.broadcast %493 : vector<10x1xf32> to vector<10x10xf32>
    %495 = arith.subf %491, %494 : vector<10x10xf32>
    %496 = math.exp %495 : vector<10x10xf32>
    %cst_176 = arith.constant dense<0.000000e+00> : vector<10xf32>
    %497 = vector.multi_reduction <add>, %496, %cst_176 [1] : vector<10x10xf32> to vector<10xf32>
    %498 = vector.shape_cast %497 : vector<10xf32> to vector<10x1xf32>
    %499 = tpu.reciprocal %498 {approx = true} : vector<10x1xf32> -> vector<10x1xf32>
    %500 = vector.broadcast %499 : vector<10x1xf32> to vector<10x10xf32>
    %501 = arith.mulf %496, %500 : vector<10x10xf32>
    %502 = arith.truncf %501 : vector<10x10xf32> to vector<10x10xbf16>
    %503 = arith.truncf %487 : vector<10x8xf32> to vector<10x8xbf16>
    %cst_177 = arith.constant dense<0.000000e+00> : vector<10x8xf32>
    %504 = tpu.matmul %502, %503, %cst_177 {dimension_numbers = #tpu.dot_dimension_numbers<[1], [0], [0], [1], [0, 0, 1, 1], [], []>} : vector<10x10xbf16>, vector<10x8xbf16>, vector<10x8xf32> -> vector<10x8xf32>
    %c0_178 = arith.constant 0 : index
    %c0_179 = arith.constant 0 : index
    %505 = vector.load %arg9[%c0_178, %c0_179] : memref<10x32xf32, #tpu.memory_space<vmem>>, vector<10x8xf32>
    tpu.vector_store %arg9[%c0_178, %c0_179], %504 {strides = array<i32>} : memref<10x32xf32, #tpu.memory_space<vmem>>, vector<10x8xf32>,
    %506 = vector.extract_strided_slice %484 {offsets = [0, 8], sizes = [10, 8], strides = [1, 1]} : vector<10x96xf32> to vector<10x8xf32>
    %507 = vector.extract_strided_slice %484 {offsets = [0, 40], sizes = [10, 8], strides = [1, 1]} : vector<10x96xf32> to vector<10x8xf32>
    %508 = vector.extract_strided_slice %484 {offsets = [0, 72], sizes = [10, 8], strides = [1, 1]} : vector<10x96xf32> to vector<10x8xf32>
    %509 = arith.truncf %506 : vector<10x8xf32> to vector<10x8xbf16>
    %510 = arith.truncf %507 : vector<10x8xf32> to vector<10x8xbf16>
    %cst_180 = arith.constant dense<0.000000e+00> : vector<10x10xf32>
    %511 = tpu.matmul %509, %510, %cst_180 {dimension_numbers = #tpu.dot_dimension_numbers<[1], [1], [0], [0], [0, 0, 1, 0], [], []>} : vector<10x8xbf16>, vector<10x8xbf16>, vector<10x10xf32> -> vector<10x10xf32>
    %512 = arith.addf %511, %28 : vector<10x10xf32>
    %cst_181 = arith.constant dense<0xFF800000> : vector<10xf32>
    %513 = vector.multi_reduction <maximumf>, %512, %cst_181 [1] : vector<10x10xf32> to vector<10xf32>
    %514 = vector.shape_cast %513 : vector<10xf32> to vector<10x1xf32>
    %515 = vector.broadcast %514 : vector<10x1xf32> to vector<10x10xf32>
    %516 = arith.subf %512, %515 : vector<10x10xf32>
    %517 = math.exp %516 : vector<10x10xf32>
    %cst_182 = arith.constant dense<0.000000e+00> : vector<10xf32>
    %518 = vector.multi_reduction <add>, %517, %cst_182 [1] : vector<10x10xf32> to vector<10xf32>
    %519 = vector.shape_cast %518 : vector<10xf32> to vector<10x1xf32>
    %520 = tpu.reciprocal %519 {approx = true} : vector<10x1xf32> -> vector<10x1xf32>
    %521 = vector.broadcast %520 : vector<10x1xf32> to vector<10x10xf32>
    %522 = arith.mulf %517, %521 : vector<10x10xf32>
    %523 = arith.truncf %522 : vector<10x10xf32> to vector<10x10xbf16>
    %524 = arith.truncf %508 : vector<10x8xf32> to vector<10x8xbf16>
    %cst_183 = arith.constant dense<0.000000e+00> : vector<10x8xf32>
    %525 = tpu.matmul %523, %524, %cst_183 {dimension_numbers = #tpu.dot_dimension_numbers<[1], [0], [0], [1], [0, 0, 1, 1], [], []>} : vector<10x10xbf16>, vector<10x8xbf16>, vector<10x8xf32> -> vector<10x8xf32>
    %c0_184 = arith.constant 0 : index
    %c8_185 = arith.constant 8 : index
    %526 = vector.load %arg9[%c0_184, %c8_185] : memref<10x32xf32, #tpu.memory_space<vmem>>, vector<10x8xf32>
    tpu.vector_store %arg9[%c0_184, %c8_185], %525 {strides = array<i32>} : memref<10x32xf32, #tpu.memory_space<vmem>>, vector<10x8xf32>,
    %527 = vector.extract_strided_slice %484 {offsets = [0, 16], sizes = [10, 8], strides = [1, 1]} : vector<10x96xf32> to vector<10x8xf32>
    %528 = vector.extract_strided_slice %484 {offsets = [0, 48], sizes = [10, 8], strides = [1, 1]} : vector<10x96xf32> to vector<10x8xf32>
    %529 = vector.extract_strided_slice %484 {offsets = [0, 80], sizes = [10, 8], strides = [1, 1]} : vector<10x96xf32> to vector<10x8xf32>
    %530 = arith.truncf %527 : vector<10x8xf32> to vector<10x8xbf16>
    %531 = arith.truncf %528 : vector<10x8xf32> to vector<10x8xbf16>
    %cst_186 = arith.constant dense<0.000000e+00> : vector<10x10xf32>
    %532 = tpu.matmul %530, %531, %cst_186 {dimension_numbers = #tpu.dot_dimension_numbers<[1], [1], [0], [0], [0, 0, 1, 0], [], []>} : vector<10x8xbf16>, vector<10x8xbf16>, vector<10x10xf32> -> vector<10x10xf32>
    %533 = arith.addf %532, %28 : vector<10x10xf32>
    %cst_187 = arith.constant dense<0xFF800000> : vector<10xf32>
    %534 = vector.multi_reduction <maximumf>, %533, %cst_187 [1] : vector<10x10xf32> to vector<10xf32>
    %535 = vector.shape_cast %534 : vector<10xf32> to vector<10x1xf32>
    %536 = vector.broadcast %535 : vector<10x1xf32> to vector<10x10xf32>
    %537 = arith.subf %533, %536 : vector<10x10xf32>
    %538 = math.exp %537 : vector<10x10xf32>
    %cst_188 = arith.constant dense<0.000000e+00> : vector<10xf32>
    %539 = vector.multi_reduction <add>, %538, %cst_188 [1] : vector<10x10xf32> to vector<10xf32>
    %540 = vector.shape_cast %539 : vector<10xf32> to vector<10x1xf32>
    %541 = tpu.reciprocal %540 {approx = true} : vector<10x1xf32> -> vector<10x1xf32>
    %542 = vector.broadcast %541 : vector<10x1xf32> to vector<10x10xf32>
    %543 = arith.mulf %538, %542 : vector<10x10xf32>
    %544 = arith.truncf %543 : vector<10x10xf32> to vector<10x10xbf16>
    %545 = arith.truncf %529 : vector<10x8xf32> to vector<10x8xbf16>
    %cst_189 = arith.constant dense<0.000000e+00> : vector<10x8xf32>
    %546 = tpu.matmul %544, %545, %cst_189 {dimension_numbers = #tpu.dot_dimension_numbers<[1], [0], [0], [1], [0, 0, 1, 1], [], []>} : vector<10x10xbf16>, vector<10x8xbf16>, vector<10x8xf32> -> vector<10x8xf32>
    %c0_190 = arith.constant 0 : index
    %c16_191 = arith.constant 16 : index
    %547 = vector.load %arg9[%c0_190, %c16_191] : memref<10x32xf32, #tpu.memory_space<vmem>>, vector<10x8xf32>
    tpu.vector_store %arg9[%c0_190, %c16_191], %546 {strides = array<i32>} : memref<10x32xf32, #tpu.memory_space<vmem>>, vector<10x8xf32>,
    %548 = vector.extract_strided_slice %484 {offsets = [0, 24], sizes = [10, 8], strides = [1, 1]} : vector<10x96xf32> to vector<10x8xf32>
    %549 = vector.extract_strided_slice %484 {offsets = [0, 56], sizes = [10, 8], strides = [1, 1]} : vector<10x96xf32> to vector<10x8xf32>
    %550 = vector.extract_strided_slice %484 {offsets = [0, 88], sizes = [10, 8], strides = [1, 1]} : vector<10x96xf32> to vector<10x8xf32>
    %551 = arith.truncf %548 : vector<10x8xf32> to vector<10x8xbf16>
    %552 = arith.truncf %549 : vector<10x8xf32> to vector<10x8xbf16>
    %cst_192 = arith.constant dense<0.000000e+00> : vector<10x10xf32>
    %553 = tpu.matmul %551, %552, %cst_192 {dimension_numbers = #tpu.dot_dimension_numbers<[1], [1], [0], [0], [0, 0, 1, 0], [], []>} : vector<10x8xbf16>, vector<10x8xbf16>, vector<10x10xf32> -> vector<10x10xf32>
    %554 = arith.addf %553, %28 : vector<10x10xf32>
    %cst_193 = arith.constant dense<0xFF800000> : vector<10xf32>
    %555 = vector.multi_reduction <maximumf>, %554, %cst_193 [1] : vector<10x10xf32> to vector<10xf32>
    %556 = vector.shape_cast %555 : vector<10xf32> to vector<10x1xf32>
    %557 = vector.broadcast %556 : vector<10x1xf32> to vector<10x10xf32>
    %558 = arith.subf %554, %557 : vector<10x10xf32>
    %559 = math.exp %558 : vector<10x10xf32>
    %cst_194 = arith.constant dense<0.000000e+00> : vector<10xf32>
    %560 = vector.multi_reduction <add>, %559, %cst_194 [1] : vector<10x10xf32> to vector<10xf32>
    %561 = vector.shape_cast %560 : vector<10xf32> to vector<10x1xf32>
    %562 = tpu.reciprocal %561 {approx = true} : vector<10x1xf32> -> vector<10x1xf32>
    %563 = vector.broadcast %562 : vector<10x1xf32> to vector<10x10xf32>
    %564 = arith.mulf %559, %563 : vector<10x10xf32>
    %565 = arith.truncf %564 : vector<10x10xf32> to vector<10x10xbf16>
    %566 = arith.truncf %550 : vector<10x8xf32> to vector<10x8xbf16>
    %cst_195 = arith.constant dense<0.000000e+00> : vector<10x8xf32>
    %567 = tpu.matmul %565, %566, %cst_195 {dimension_numbers = #tpu.dot_dimension_numbers<[1], [0], [0], [1], [0, 0, 1, 1], [], []>} : vector<10x10xbf16>, vector<10x8xbf16>, vector<10x8xf32> -> vector<10x8xf32>
    %c0_196 = arith.constant 0 : index
    %c24_197 = arith.constant 24 : index
    %568 = vector.load %arg9[%c0_196, %c24_197] : memref<10x32xf32, #tpu.memory_space<vmem>>, vector<10x8xf32>
    tpu.vector_store %arg9[%c0_196, %c24_197], %567 {strides = array<i32>} : memref<10x32xf32, #tpu.memory_space<vmem>>, vector<10x8xf32>,
    %c0_198 = arith.constant 0 : index
    %c0_199 = arith.constant 0 : index
    %569 = vector.load %arg9[%c0_198, %c0_199] : memref<10x32xf32, #tpu.memory_space<vmem>>, vector<10x32xf32>
    %570 = arith.truncf %569 : vector<10x32xf32> to vector<10x32xbf16>
    %c2_200 = arith.constant 2 : index
    %c0_201 = arith.constant 0 : index
    %c0_202 = arith.constant 0 : index
    %571 = vector.load %arg3[%c2_200, %c0_201, %c0_202] : memref<4x32x32xbf16, #tpu.memory_space<vmem>>, vector<1x32x32xbf16>
    %572 = vector.shape_cast %571 : vector<1x32x32xbf16> to vector<32x32xbf16>
    %cst_203 = arith.constant dense<0.000000e+00> : vector<10x32xf32>
    %573 = tpu.matmul %570, %572, %cst_203 {dimension_numbers = #tpu.dot_dimension_numbers<[1], [0], [0], [1], [0, 0, 1, 1], [], []>} : vector<10x32xbf16>, vector<32x32xbf16>, vector<10x32xf32> -> vector<10x32xf32>
    %574 = vector.broadcast %451 : vector<1x32xf32> to vector<10x32xf32>
    %575 = arith.addf %573, %574 : vector<10x32xf32>
    %576 = arith.addf %445, %575 : vector<10x32xf32>
    %cst_204 = arith.constant dense<0.000000e+00> : vector<10xf32>
    %577 = vector.multi_reduction <add>, %576, %cst_204 [1] : vector<10x32xf32> to vector<10xf32>
    %578 = vector.shape_cast %577 : vector<10xf32> to vector<10x1xf32>
    %cst_205 = arith.constant 3.200000e+01 : f32
    %579 = vector.broadcast %cst_205 : f32 to vector<10x1xf32>
    %580 = arith.divf %578, %579 : vector<10x1xf32>
    %581 = vector.broadcast %580 : vector<10x1xf32> to vector<10x32xf32>
    %582 = arith.subf %576, %581 : vector<10x32xf32>
    %583 = arith.mulf %582, %582 : vector<10x32xf32>
    %cst_206 = arith.constant dense<0.000000e+00> : vector<10xf32>
    %584 = vector.multi_reduction <add>, %583, %cst_206 [1] : vector<10x32xf32> to vector<10xf32>
    %585 = vector.shape_cast %584 : vector<10xf32> to vector<10x1xf32>
    %cst_207 = arith.constant 3.200000e+01 : f32
    %586 = vector.broadcast %cst_207 : f32 to vector<10x1xf32>
    %587 = arith.divf %585, %586 : vector<10x1xf32>
    %588 = vector.broadcast %580 : vector<10x1xf32> to vector<10x32xf32>
    %589 = arith.subf %576, %588 : vector<10x32xf32>
    %cst_208 = arith.constant 9.99999997E-7 : f32
    %590 = vector.broadcast %cst_208 : f32 to vector<10x1xf32>
    %591 = arith.addf %587, %590 : vector<10x1xf32>
    %592 = math.rsqrt %591 : vector<10x1xf32>
    %593 = vector.broadcast %592 : vector<10x1xf32> to vector<10x32xf32>
    %594 = arith.mulf %589, %593 : vector<10x32xf32>
    %595 = vector.broadcast %452 : vector<1x32xf32> to vector<10x32xf32>
    %596 = arith.mulf %594, %595 : vector<10x32xf32>
    %597 = vector.broadcast %453 : vector<1x32xf32> to vector<10x32xf32>
    %598 = arith.addf %596, %597 : vector<10x32xf32>
    %599 = arith.truncf %598 : vector<10x32xf32> to vector<10x32xbf16>
    %c2_209 = arith.constant 2 : index
    %c0_210 = arith.constant 0 : index
    %c0_211 = arith.constant 0 : index
    %600 = vector.load %arg4[%c2_209, %c0_210, %c0_211] : memref<4x32x128xbf16, #tpu.memory_space<vmem>>, vector<1x32x128xbf16>
    %601 = vector.shape_cast %600 : vector<1x32x128xbf16> to vector<32x128xbf16>
    %cst_212 = arith.constant dense<0.000000e+00> : vector<10x128xf32>
    %602 = tpu.matmul %599, %601, %cst_212 {dimension_numbers = #tpu.dot_dimension_numbers<[1], [0], [0], [1], [0, 0, 1, 1], [], []>} : vector<10x32xbf16>, vector<32x128xbf16>, vector<10x128xf32> -> vector<10x128xf32>
    %c2_213 = arith.constant 2 : index
    %c0_214 = arith.constant 0 : index
    %c0_215 = arith.constant 0 : index
    %603 = vector.load %arg5[%c2_213, %c0_214, %c0_215] : memref<4x1x128xf32, #tpu.memory_space<vmem>>, vector<1x1x128xf32>
    %604 = vector.shape_cast %603 : vector<1x1x128xf32> to vector<1x128xf32>
    %605 = vector.broadcast %604 : vector<1x128xf32> to vector<10x128xf32>
    %606 = arith.addf %602, %605 : vector<10x128xf32>
    %cst_216 = arith.constant 5.000000e-01 : f32
    %607 = vector.broadcast %cst_216 : f32 to vector<10x128xf32>
    %608 = arith.mulf %607, %606 : vector<10x128xf32>
    %cst_217 = arith.constant 0.707106769 : f32
    %609 = vector.broadcast %cst_217 : f32 to vector<10x128xf32>
    %610 = arith.mulf %606, %609 : vector<10x128xf32>
    %cst_218 = arith.constant 0.000000e+00 : f32
    %611 = vector.broadcast %cst_218 : f32 to vector<10x128xf32>
    %612 = arith.cmpf oge, %610, %611 : vector<10x128xf32>
    %cst_219 = arith.constant 1.000000e+00 : f32
    %cst_220 = arith.constant -1.000000e+00 : f32
    %613 = vector.broadcast %cst_219 : f32 to vector<10x128xf32>
    %614 = vector.broadcast %cst_220 : f32 to vector<10x128xf32>
    %615 = arith.select %612, %613, %614 : vector<10x128xi1>, vector<10x128xf32>
    %616 = math.absf %610 : vector<10x128xf32>
    %cst_221 = arith.constant 0.327591091 : f32
    %617 = vector.broadcast %cst_221 : f32 to vector<10x128xf32>
    %618 = arith.mulf %617, %616 : vector<10x128xf32>
    %cst_222 = arith.constant 1.000000e+00 : f32
    %619 = vector.broadcast %cst_222 : f32 to vector<10x128xf32>
    %620 = arith.addf %619, %618 : vector<10x128xf32>
    %cst_223 = arith.constant 1.000000e+00 : f32
    %621 = vector.broadcast %cst_223 : f32 to vector<10x128xf32>
    %622 = arith.divf %621, %620 : vector<10x128xf32>
    %cst_224 = arith.constant 1.06140542 : f32
    %623 = vector.broadcast %cst_224 : f32 to vector<10x128xf32>
    %624 = arith.mulf %623, %622 : vector<10x128xf32>
    %cst_225 = arith.constant -1.45315206 : f32
    %625 = vector.broadcast %cst_225 : f32 to vector<10x128xf32>
    %626 = arith.addf %624, %625 : vector<10x128xf32>
    %627 = arith.mulf %626, %622 : vector<10x128xf32>
    %cst_226 = arith.constant 1.42141378 : f32
    %628 = vector.broadcast %cst_226 : f32 to vector<10x128xf32>
    %629 = arith.addf %627, %628 : vector<10x128xf32>
    %630 = arith.mulf %629, %622 : vector<10x128xf32>
    %cst_227 = arith.constant -0.284496725 : f32
    %631 = vector.broadcast %cst_227 : f32 to vector<10x128xf32>
    %632 = arith.addf %630, %631 : vector<10x128xf32>
    %633 = arith.mulf %632, %622 : vector<10x128xf32>
    %cst_228 = arith.constant 0.254829586 : f32
    %634 = vector.broadcast %cst_228 : f32 to vector<10x128xf32>
    %635 = arith.addf %633, %634 : vector<10x128xf32>
    %636 = arith.mulf %635, %622 : vector<10x128xf32>
    %cst_229 = arith.constant 0.000000e+00 : f32
    %637 = vector.broadcast %cst_229 : f32 to vector<10x128xf32>
    %638 = arith.subf %637, %616 : vector<10x128xf32>
    %639 = arith.mulf %638, %616 : vector<10x128xf32>
    %640 = math.exp %639 : vector<10x128xf32>
    %641 = arith.mulf %636, %640 : vector<10x128xf32>
    %cst_230 = arith.constant 1.000000e+00 : f32
    %642 = vector.broadcast %cst_230 : f32 to vector<10x128xf32>
    %643 = arith.subf %642, %641 : vector<10x128xf32>
    %644 = arith.mulf %615, %643 : vector<10x128xf32>
    %cst_231 = arith.constant 1.000000e+00 : f32
    %645 = vector.broadcast %cst_231 : f32 to vector<10x128xf32>
    %646 = arith.addf %645, %644 : vector<10x128xf32>
    %647 = arith.mulf %608, %646 : vector<10x128xf32>
    %648 = arith.truncf %647 : vector<10x128xf32> to vector<10x128xbf16>
    %c2_232 = arith.constant 2 : index
    %c0_233 = arith.constant 0 : index
    %c0_234 = arith.constant 0 : index
    %649 = vector.load %arg6[%c2_232, %c0_233, %c0_234] : memref<4x128x32xbf16, #tpu.memory_space<vmem>>, vector<1x128x32xbf16>
    %650 = vector.shape_cast %649 : vector<1x128x32xbf16> to vector<128x32xbf16>
    %cst_235 = arith.constant dense<0.000000e+00> : vector<10x32xf32>
    %651 = tpu.matmul %648, %650, %cst_235 {dimension_numbers = #tpu.dot_dimension_numbers<[1], [0], [0], [1], [0, 0, 1, 1], [], []>} : vector<10x128xbf16>, vector<128x32xbf16>, vector<10x32xf32> -> vector<10x32xf32>
    %652 = arith.addf %576, %651 : vector<10x32xf32>
    %653 = vector.broadcast %454 : vector<1x32xf32> to vector<10x32xf32>
    %654 = arith.addf %652, %653 : vector<10x32xf32>
    %c0_236 = arith.constant 0 : index
    %c64 = arith.constant 64 : index
    %655 = vector.load %arg8[%c0_236, %c64] : memref<10x128xf32, #tpu.memory_space<vmem>>, vector<10x32xf32>
    tpu.vector_store %arg8[%c0_236, %c64], %654 {strides = array<i32>} : memref<10x128xf32, #tpu.memory_space<vmem>>, vector<10x32xf32>,
    %c3 = arith.constant 3 : index
    %c0_237 = arith.constant 0 : index
    %c0_238 = arith.constant 0 : index
    %656 = vector.load %arg7[%c3, %c0_237, %c0_238] : memref<4x6x32xf32, #tpu.memory_space<vmem>>, vector<1x6x32xf32>
    %657 = vector.shape_cast %656 : vector<1x6x32xf32> to vector<6x32xf32>
    %658 = vector.extract_strided_slice %657 {offsets = [0, 0], sizes = [1, 32], strides = [1, 1]} : vector<6x32xf32> to vector<1x32xf32>
    %659 = vector.extract_strided_slice %657 {offsets = [1, 0], sizes = [1, 32], strides = [1, 1]} : vector<6x32xf32> to vector<1x32xf32>
    %660 = vector.extract_strided_slice %657 {offsets = [2, 0], sizes = [1, 32], strides = [1, 1]} : vector<6x32xf32> to vector<1x32xf32>
    %661 = vector.extract_strided_slice %657 {offsets = [3, 0], sizes = [1, 32], strides = [1, 1]} : vector<6x32xf32> to vector<1x32xf32>
    %662 = vector.extract_strided_slice %657 {offsets = [4, 0], sizes = [1, 32], strides = [1, 1]} : vector<6x32xf32> to vector<1x32xf32>
    %663 = vector.extract_strided_slice %657 {offsets = [5, 0], sizes = [1, 32], strides = [1, 1]} : vector<6x32xf32> to vector<1x32xf32>
    %cst_239 = arith.constant dense<0.000000e+00> : vector<10xf32>
    %664 = vector.multi_reduction <add>, %654, %cst_239 [1] : vector<10x32xf32> to vector<10xf32>
    %665 = vector.shape_cast %664 : vector<10xf32> to vector<10x1xf32>
    %cst_240 = arith.constant 3.200000e+01 : f32
    %666 = vector.broadcast %cst_240 : f32 to vector<10x1xf32>
    %667 = arith.divf %665, %666 : vector<10x1xf32>
    %668 = vector.broadcast %667 : vector<10x1xf32> to vector<10x32xf32>
    %669 = arith.subf %654, %668 : vector<10x32xf32>
    %670 = arith.mulf %669, %669 : vector<10x32xf32>
    %cst_241 = arith.constant dense<0.000000e+00> : vector<10xf32>
    %671 = vector.multi_reduction <add>, %670, %cst_241 [1] : vector<10x32xf32> to vector<10xf32>
    %672 = vector.shape_cast %671 : vector<10xf32> to vector<10x1xf32>
    %cst_242 = arith.constant 3.200000e+01 : f32
    %673 = vector.broadcast %cst_242 : f32 to vector<10x1xf32>
    %674 = arith.divf %672, %673 : vector<10x1xf32>
    %675 = vector.broadcast %667 : vector<10x1xf32> to vector<10x32xf32>
    %676 = arith.subf %654, %675 : vector<10x32xf32>
    %cst_243 = arith.constant 9.99999997E-7 : f32
    %677 = vector.broadcast %cst_243 : f32 to vector<10x1xf32>
    %678 = arith.addf %674, %677 : vector<10x1xf32>
    %679 = math.rsqrt %678 : vector<10x1xf32>
    %680 = vector.broadcast %679 : vector<10x1xf32> to vector<10x32xf32>
    %681 = arith.mulf %676, %680 : vector<10x32xf32>
    %682 = vector.broadcast %658 : vector<1x32xf32> to vector<10x32xf32>
    %683 = arith.mulf %681, %682 : vector<10x32xf32>
    %684 = vector.broadcast %659 : vector<1x32xf32> to vector<10x32xf32>
    %685 = arith.addf %683, %684 : vector<10x32xf32>
    %686 = arith.truncf %685 : vector<10x32xf32> to vector<10x32xbf16>
    %c3_244 = arith.constant 3 : index
    %c0_245 = arith.constant 0 : index
    %c0_246 = arith.constant 0 : index
    %687 = vector.load %arg1[%c3_244, %c0_245, %c0_246] : memref<4x32x96xbf16, #tpu.memory_space<vmem>>, vector<1x32x96xbf16>
    %688 = vector.shape_cast %687 : vector<1x32x96xbf16> to vector<32x96xbf16>
    %cst_247 = arith.constant dense<0.000000e+00> : vector<10x96xf32>
    %689 = tpu.matmul %686, %688, %cst_247 {dimension_numbers = #tpu.dot_dimension_numbers<[1], [0], [0], [1], [0, 0, 1, 1], [], []>} : vector<10x32xbf16>, vector<32x96xbf16>, vector<10x96xf32> -> vector<10x96xf32>
    %c3_248 = arith.constant 3 : index
    %c0_249 = arith.constant 0 : index
    %c0_250 = arith.constant 0 : index
    %690 = vector.load %arg2[%c3_248, %c0_249, %c0_250] : memref<4x1x96xf32, #tpu.memory_space<vmem>>, vector<1x1x96xf32>
    %691 = vector.shape_cast %690 : vector<1x1x96xf32> to vector<1x96xf32>
    %692 = vector.broadcast %691 : vector<1x96xf32> to vector<10x96xf32>
    %693 = arith.addf %689, %692 : vector<10x96xf32>
    %694 = vector.extract_strided_slice %693 {offsets = [0, 0], sizes = [10, 8], strides = [1, 1]} : vector<10x96xf32> to vector<10x8xf32>
    %695 = vector.extract_strided_slice %693 {offsets = [0, 32], sizes = [10, 8], strides = [1, 1]} : vector<10x96xf32> to vector<10x8xf32>
    %696 = vector.extract_strided_slice %693 {offsets = [0, 64], sizes = [10, 8], strides = [1, 1]} : vector<10x96xf32> to vector<10x8xf32>
    %697 = arith.truncf %694 : vector<10x8xf32> to vector<10x8xbf16>
    %698 = arith.truncf %695 : vector<10x8xf32> to vector<10x8xbf16>
    %cst_251 = arith.constant dense<0.000000e+00> : vector<10x10xf32>
    %699 = tpu.matmul %697, %698, %cst_251 {dimension_numbers = #tpu.dot_dimension_numbers<[1], [1], [0], [0], [0, 0, 1, 0], [], []>} : vector<10x8xbf16>, vector<10x8xbf16>, vector<10x10xf32> -> vector<10x10xf32>
    %700 = arith.addf %699, %28 : vector<10x10xf32>
    %cst_252 = arith.constant dense<0xFF800000> : vector<10xf32>
    %701 = vector.multi_reduction <maximumf>, %700, %cst_252 [1] : vector<10x10xf32> to vector<10xf32>
    %702 = vector.shape_cast %701 : vector<10xf32> to vector<10x1xf32>
    %703 = vector.broadcast %702 : vector<10x1xf32> to vector<10x10xf32>
    %704 = arith.subf %700, %703 : vector<10x10xf32>
    %705 = math.exp %704 : vector<10x10xf32>
    %cst_253 = arith.constant dense<0.000000e+00> : vector<10xf32>
    %706 = vector.multi_reduction <add>, %705, %cst_253 [1] : vector<10x10xf32> to vector<10xf32>
    %707 = vector.shape_cast %706 : vector<10xf32> to vector<10x1xf32>
    %708 = tpu.reciprocal %707 {approx = true} : vector<10x1xf32> -> vector<10x1xf32>
    %709 = vector.broadcast %708 : vector<10x1xf32> to vector<10x10xf32>
    %710 = arith.mulf %705, %709 : vector<10x10xf32>
    %711 = arith.truncf %710 : vector<10x10xf32> to vector<10x10xbf16>
    %712 = arith.truncf %696 : vector<10x8xf32> to vector<10x8xbf16>
    %cst_254 = arith.constant dense<0.000000e+00> : vector<10x8xf32>
    %713 = tpu.matmul %711, %712, %cst_254 {dimension_numbers = #tpu.dot_dimension_numbers<[1], [0], [0], [1], [0, 0, 1, 1], [], []>} : vector<10x10xbf16>, vector<10x8xbf16>, vector<10x8xf32> -> vector<10x8xf32>
    %c0_255 = arith.constant 0 : index
    %c0_256 = arith.constant 0 : index
    %714 = vector.load %arg9[%c0_255, %c0_256] : memref<10x32xf32, #tpu.memory_space<vmem>>, vector<10x8xf32>
    tpu.vector_store %arg9[%c0_255, %c0_256], %713 {strides = array<i32>} : memref<10x32xf32, #tpu.memory_space<vmem>>, vector<10x8xf32>,
    %715 = vector.extract_strided_slice %693 {offsets = [0, 8], sizes = [10, 8], strides = [1, 1]} : vector<10x96xf32> to vector<10x8xf32>
    %716 = vector.extract_strided_slice %693 {offsets = [0, 40], sizes = [10, 8], strides = [1, 1]} : vector<10x96xf32> to vector<10x8xf32>
    %717 = vector.extract_strided_slice %693 {offsets = [0, 72], sizes = [10, 8], strides = [1, 1]} : vector<10x96xf32> to vector<10x8xf32>
    %718 = arith.truncf %715 : vector<10x8xf32> to vector<10x8xbf16>
    %719 = arith.truncf %716 : vector<10x8xf32> to vector<10x8xbf16>
    %cst_257 = arith.constant dense<0.000000e+00> : vector<10x10xf32>
    %720 = tpu.matmul %718, %719, %cst_257 {dimension_numbers = #tpu.dot_dimension_numbers<[1], [1], [0], [0], [0, 0, 1, 0], [], []>} : vector<10x8xbf16>, vector<10x8xbf16>, vector<10x10xf32> -> vector<10x10xf32>
    %721 = arith.addf %720, %28 : vector<10x10xf32>
    %cst_258 = arith.constant dense<0xFF800000> : vector<10xf32>
    %722 = vector.multi_reduction <maximumf>, %721, %cst_258 [1] : vector<10x10xf32> to vector<10xf32>
    %723 = vector.shape_cast %722 : vector<10xf32> to vector<10x1xf32>
    %724 = vector.broadcast %723 : vector<10x1xf32> to vector<10x10xf32>
    %725 = arith.subf %721, %724 : vector<10x10xf32>
    %726 = math.exp %725 : vector<10x10xf32>
    %cst_259 = arith.constant dense<0.000000e+00> : vector<10xf32>
    %727 = vector.multi_reduction <add>, %726, %cst_259 [1] : vector<10x10xf32> to vector<10xf32>
    %728 = vector.shape_cast %727 : vector<10xf32> to vector<10x1xf32>
    %729 = tpu.reciprocal %728 {approx = true} : vector<10x1xf32> -> vector<10x1xf32>
    %730 = vector.broadcast %729 : vector<10x1xf32> to vector<10x10xf32>
    %731 = arith.mulf %726, %730 : vector<10x10xf32>
    %732 = arith.truncf %731 : vector<10x10xf32> to vector<10x10xbf16>
    %733 = arith.truncf %717 : vector<10x8xf32> to vector<10x8xbf16>
    %cst_260 = arith.constant dense<0.000000e+00> : vector<10x8xf32>
    %734 = tpu.matmul %732, %733, %cst_260 {dimension_numbers = #tpu.dot_dimension_numbers<[1], [0], [0], [1], [0, 0, 1, 1], [], []>} : vector<10x10xbf16>, vector<10x8xbf16>, vector<10x8xf32> -> vector<10x8xf32>
    %c0_261 = arith.constant 0 : index
    %c8_262 = arith.constant 8 : index
    %735 = vector.load %arg9[%c0_261, %c8_262] : memref<10x32xf32, #tpu.memory_space<vmem>>, vector<10x8xf32>
    tpu.vector_store %arg9[%c0_261, %c8_262], %734 {strides = array<i32>} : memref<10x32xf32, #tpu.memory_space<vmem>>, vector<10x8xf32>,
    %736 = vector.extract_strided_slice %693 {offsets = [0, 16], sizes = [10, 8], strides = [1, 1]} : vector<10x96xf32> to vector<10x8xf32>
    %737 = vector.extract_strided_slice %693 {offsets = [0, 48], sizes = [10, 8], strides = [1, 1]} : vector<10x96xf32> to vector<10x8xf32>
    %738 = vector.extract_strided_slice %693 {offsets = [0, 80], sizes = [10, 8], strides = [1, 1]} : vector<10x96xf32> to vector<10x8xf32>
    %739 = arith.truncf %736 : vector<10x8xf32> to vector<10x8xbf16>
    %740 = arith.truncf %737 : vector<10x8xf32> to vector<10x8xbf16>
    %cst_263 = arith.constant dense<0.000000e+00> : vector<10x10xf32>
    %741 = tpu.matmul %739, %740, %cst_263 {dimension_numbers = #tpu.dot_dimension_numbers<[1], [1], [0], [0], [0, 0, 1, 0], [], []>} : vector<10x8xbf16>, vector<10x8xbf16>, vector<10x10xf32> -> vector<10x10xf32>
    %742 = arith.addf %741, %28 : vector<10x10xf32>
    %cst_264 = arith.constant dense<0xFF800000> : vector<10xf32>
    %743 = vector.multi_reduction <maximumf>, %742, %cst_264 [1] : vector<10x10xf32> to vector<10xf32>
    %744 = vector.shape_cast %743 : vector<10xf32> to vector<10x1xf32>
    %745 = vector.broadcast %744 : vector<10x1xf32> to vector<10x10xf32>
    %746 = arith.subf %742, %745 : vector<10x10xf32>
    %747 = math.exp %746 : vector<10x10xf32>
    %cst_265 = arith.constant dense<0.000000e+00> : vector<10xf32>
    %748 = vector.multi_reduction <add>, %747, %cst_265 [1] : vector<10x10xf32> to vector<10xf32>
    %749 = vector.shape_cast %748 : vector<10xf32> to vector<10x1xf32>
    %750 = tpu.reciprocal %749 {approx = true} : vector<10x1xf32> -> vector<10x1xf32>
    %751 = vector.broadcast %750 : vector<10x1xf32> to vector<10x10xf32>
    %752 = arith.mulf %747, %751 : vector<10x10xf32>
    %753 = arith.truncf %752 : vector<10x10xf32> to vector<10x10xbf16>
    %754 = arith.truncf %738 : vector<10x8xf32> to vector<10x8xbf16>
    %cst_266 = arith.constant dense<0.000000e+00> : vector<10x8xf32>
    %755 = tpu.matmul %753, %754, %cst_266 {dimension_numbers = #tpu.dot_dimension_numbers<[1], [0], [0], [1], [0, 0, 1, 1], [], []>} : vector<10x10xbf16>, vector<10x8xbf16>, vector<10x8xf32> -> vector<10x8xf32>
    %c0_267 = arith.constant 0 : index
    %c16_268 = arith.constant 16 : index
    %756 = vector.load %arg9[%c0_267, %c16_268] : memref<10x32xf32, #tpu.memory_space<vmem>>, vector<10x8xf32>
    tpu.vector_store %arg9[%c0_267, %c16_268], %755 {strides = array<i32>} : memref<10x32xf32, #tpu.memory_space<vmem>>, vector<10x8xf32>,
    %757 = vector.extract_strided_slice %693 {offsets = [0, 24], sizes = [10, 8], strides = [1, 1]} : vector<10x96xf32> to vector<10x8xf32>
    %758 = vector.extract_strided_slice %693 {offsets = [0, 56], sizes = [10, 8], strides = [1, 1]} : vector<10x96xf32> to vector<10x8xf32>
    %759 = vector.extract_strided_slice %693 {offsets = [0, 88], sizes = [10, 8], strides = [1, 1]} : vector<10x96xf32> to vector<10x8xf32>
    %760 = arith.truncf %757 : vector<10x8xf32> to vector<10x8xbf16>
    %761 = arith.truncf %758 : vector<10x8xf32> to vector<10x8xbf16>
    %cst_269 = arith.constant dense<0.000000e+00> : vector<10x10xf32>
    %762 = tpu.matmul %760, %761, %cst_269 {dimension_numbers = #tpu.dot_dimension_numbers<[1], [1], [0], [0], [0, 0, 1, 0], [], []>} : vector<10x8xbf16>, vector<10x8xbf16>, vector<10x10xf32> -> vector<10x10xf32>
    %763 = arith.addf %762, %28 : vector<10x10xf32>
    %cst_270 = arith.constant dense<0xFF800000> : vector<10xf32>
    %764 = vector.multi_reduction <maximumf>, %763, %cst_270 [1] : vector<10x10xf32> to vector<10xf32>
    %765 = vector.shape_cast %764 : vector<10xf32> to vector<10x1xf32>
    %766 = vector.broadcast %765 : vector<10x1xf32> to vector<10x10xf32>
    %767 = arith.subf %763, %766 : vector<10x10xf32>
    %768 = math.exp %767 : vector<10x10xf32>
    %cst_271 = arith.constant dense<0.000000e+00> : vector<10xf32>
    %769 = vector.multi_reduction <add>, %768, %cst_271 [1] : vector<10x10xf32> to vector<10xf32>
    %770 = vector.shape_cast %769 : vector<10xf32> to vector<10x1xf32>
    %771 = tpu.reciprocal %770 {approx = true} : vector<10x1xf32> -> vector<10x1xf32>
    %772 = vector.broadcast %771 : vector<10x1xf32> to vector<10x10xf32>
    %773 = arith.mulf %768, %772 : vector<10x10xf32>
    %774 = arith.truncf %773 : vector<10x10xf32> to vector<10x10xbf16>
    %775 = arith.truncf %759 : vector<10x8xf32> to vector<10x8xbf16>
    %cst_272 = arith.constant dense<0.000000e+00> : vector<10x8xf32>
    %776 = tpu.matmul %774, %775, %cst_272 {dimension_numbers = #tpu.dot_dimension_numbers<[1], [0], [0], [1], [0, 0, 1, 1], [], []>} : vector<10x10xbf16>, vector<10x8xbf16>, vector<10x8xf32> -> vector<10x8xf32>
    %c0_273 = arith.constant 0 : index
    %c24_274 = arith.constant 24 : index
    %777 = vector.load %arg9[%c0_273, %c24_274] : memref<10x32xf32, #tpu.memory_space<vmem>>, vector<10x8xf32>
    tpu.vector_store %arg9[%c0_273, %c24_274], %776 {strides = array<i32>} : memref<10x32xf32, #tpu.memory_space<vmem>>, vector<10x8xf32>,
    %c0_275 = arith.constant 0 : index
    %c0_276 = arith.constant 0 : index
    %778 = vector.load %arg9[%c0_275, %c0_276] : memref<10x32xf32, #tpu.memory_space<vmem>>, vector<10x32xf32>
    %779 = arith.truncf %778 : vector<10x32xf32> to vector<10x32xbf16>
    %c3_277 = arith.constant 3 : index
    %c0_278 = arith.constant 0 : index
    %c0_279 = arith.constant 0 : index
    %780 = vector.load %arg3[%c3_277, %c0_278, %c0_279] : memref<4x32x32xbf16, #tpu.memory_space<vmem>>, vector<1x32x32xbf16>
    %781 = vector.shape_cast %780 : vector<1x32x32xbf16> to vector<32x32xbf16>
    %cst_280 = arith.constant dense<0.000000e+00> : vector<10x32xf32>
    %782 = tpu.matmul %779, %781, %cst_280 {dimension_numbers = #tpu.dot_dimension_numbers<[1], [0], [0], [1], [0, 0, 1, 1], [], []>} : vector<10x32xbf16>, vector<32x32xbf16>, vector<10x32xf32> -> vector<10x32xf32>
    %783 = vector.broadcast %660 : vector<1x32xf32> to vector<10x32xf32>
    %784 = arith.addf %782, %783 : vector<10x32xf32>
    %785 = arith.addf %654, %784 : vector<10x32xf32>
    %cst_281 = arith.constant dense<0.000000e+00> : vector<10xf32>
    %786 = vector.multi_reduction <add>, %785, %cst_281 [1] : vector<10x32xf32> to vector<10xf32>
    %787 = vector.shape_cast %786 : vector<10xf32> to vector<10x1xf32>
    %cst_282 = arith.constant 3.200000e+01 : f32
    %788 = vector.broadcast %cst_282 : f32 to vector<10x1xf32>
    %789 = arith.divf %787, %788 : vector<10x1xf32>
    %790 = vector.broadcast %789 : vector<10x1xf32> to vector<10x32xf32>
    %791 = arith.subf %785, %790 : vector<10x32xf32>
    %792 = arith.mulf %791, %791 : vector<10x32xf32>
    %cst_283 = arith.constant dense<0.000000e+00> : vector<10xf32>
    %793 = vector.multi_reduction <add>, %792, %cst_283 [1] : vector<10x32xf32> to vector<10xf32>
    %794 = vector.shape_cast %793 : vector<10xf32> to vector<10x1xf32>
    %cst_284 = arith.constant 3.200000e+01 : f32
    %795 = vector.broadcast %cst_284 : f32 to vector<10x1xf32>
    %796 = arith.divf %794, %795 : vector<10x1xf32>
    %797 = vector.broadcast %789 : vector<10x1xf32> to vector<10x32xf32>
    %798 = arith.subf %785, %797 : vector<10x32xf32>
    %cst_285 = arith.constant 9.99999997E-7 : f32
    %799 = vector.broadcast %cst_285 : f32 to vector<10x1xf32>
    %800 = arith.addf %796, %799 : vector<10x1xf32>
    %801 = math.rsqrt %800 : vector<10x1xf32>
    %802 = vector.broadcast %801 : vector<10x1xf32> to vector<10x32xf32>
    %803 = arith.mulf %798, %802 : vector<10x32xf32>
    %804 = vector.broadcast %661 : vector<1x32xf32> to vector<10x32xf32>
    %805 = arith.mulf %803, %804 : vector<10x32xf32>
    %806 = vector.broadcast %662 : vector<1x32xf32> to vector<10x32xf32>
    %807 = arith.addf %805, %806 : vector<10x32xf32>
    %808 = arith.truncf %807 : vector<10x32xf32> to vector<10x32xbf16>
    %c3_286 = arith.constant 3 : index
    %c0_287 = arith.constant 0 : index
    %c0_288 = arith.constant 0 : index
    %809 = vector.load %arg4[%c3_286, %c0_287, %c0_288] : memref<4x32x128xbf16, #tpu.memory_space<vmem>>, vector<1x32x128xbf16>
    %810 = vector.shape_cast %809 : vector<1x32x128xbf16> to vector<32x128xbf16>
    %cst_289 = arith.constant dense<0.000000e+00> : vector<10x128xf32>
    %811 = tpu.matmul %808, %810, %cst_289 {dimension_numbers = #tpu.dot_dimension_numbers<[1], [0], [0], [1], [0, 0, 1, 1], [], []>} : vector<10x32xbf16>, vector<32x128xbf16>, vector<10x128xf32> -> vector<10x128xf32>
    %c3_290 = arith.constant 3 : index
    %c0_291 = arith.constant 0 : index
    %c0_292 = arith.constant 0 : index
    %812 = vector.load %arg5[%c3_290, %c0_291, %c0_292] : memref<4x1x128xf32, #tpu.memory_space<vmem>>, vector<1x1x128xf32>
    %813 = vector.shape_cast %812 : vector<1x1x128xf32> to vector<1x128xf32>
    %814 = vector.broadcast %813 : vector<1x128xf32> to vector<10x128xf32>
    %815 = arith.addf %811, %814 : vector<10x128xf32>
    %cst_293 = arith.constant 5.000000e-01 : f32
    %816 = vector.broadcast %cst_293 : f32 to vector<10x128xf32>
    %817 = arith.mulf %816, %815 : vector<10x128xf32>
    %cst_294 = arith.constant 0.707106769 : f32
    %818 = vector.broadcast %cst_294 : f32 to vector<10x128xf32>
    %819 = arith.mulf %815, %818 : vector<10x128xf32>
    %cst_295 = arith.constant 0.000000e+00 : f32
    %820 = vector.broadcast %cst_295 : f32 to vector<10x128xf32>
    %821 = arith.cmpf oge, %819, %820 : vector<10x128xf32>
    %cst_296 = arith.constant 1.000000e+00 : f32
    %cst_297 = arith.constant -1.000000e+00 : f32
    %822 = vector.broadcast %cst_296 : f32 to vector<10x128xf32>
    %823 = vector.broadcast %cst_297 : f32 to vector<10x128xf32>
    %824 = arith.select %821, %822, %823 : vector<10x128xi1>, vector<10x128xf32>
    %825 = math.absf %819 : vector<10x128xf32>
    %cst_298 = arith.constant 0.327591091 : f32
    %826 = vector.broadcast %cst_298 : f32 to vector<10x128xf32>
    %827 = arith.mulf %826, %825 : vector<10x128xf32>
    %cst_299 = arith.constant 1.000000e+00 : f32
    %828 = vector.broadcast %cst_299 : f32 to vector<10x128xf32>
    %829 = arith.addf %828, %827 : vector<10x128xf32>
    %cst_300 = arith.constant 1.000000e+00 : f32
    %830 = vector.broadcast %cst_300 : f32 to vector<10x128xf32>
    %831 = arith.divf %830, %829 : vector<10x128xf32>
    %cst_301 = arith.constant 1.06140542 : f32
    %832 = vector.broadcast %cst_301 : f32 to vector<10x128xf32>
    %833 = arith.mulf %832, %831 : vector<10x128xf32>
    %cst_302 = arith.constant -1.45315206 : f32
    %834 = vector.broadcast %cst_302 : f32 to vector<10x128xf32>
    %835 = arith.addf %833, %834 : vector<10x128xf32>
    %836 = arith.mulf %835, %831 : vector<10x128xf32>
    %cst_303 = arith.constant 1.42141378 : f32
    %837 = vector.broadcast %cst_303 : f32 to vector<10x128xf32>
    %838 = arith.addf %836, %837 : vector<10x128xf32>
    %839 = arith.mulf %838, %831 : vector<10x128xf32>
    %cst_304 = arith.constant -0.284496725 : f32
    %840 = vector.broadcast %cst_304 : f32 to vector<10x128xf32>
    %841 = arith.addf %839, %840 : vector<10x128xf32>
    %842 = arith.mulf %841, %831 : vector<10x128xf32>
    %cst_305 = arith.constant 0.254829586 : f32
    %843 = vector.broadcast %cst_305 : f32 to vector<10x128xf32>
    %844 = arith.addf %842, %843 : vector<10x128xf32>
    %845 = arith.mulf %844, %831 : vector<10x128xf32>
    %cst_306 = arith.constant 0.000000e+00 : f32
    %846 = vector.broadcast %cst_306 : f32 to vector<10x128xf32>
    %847 = arith.subf %846, %825 : vector<10x128xf32>
    %848 = arith.mulf %847, %825 : vector<10x128xf32>
    %849 = math.exp %848 : vector<10x128xf32>
    %850 = arith.mulf %845, %849 : vector<10x128xf32>
    %cst_307 = arith.constant 1.000000e+00 : f32
    %851 = vector.broadcast %cst_307 : f32 to vector<10x128xf32>
    %852 = arith.subf %851, %850 : vector<10x128xf32>
    %853 = arith.mulf %824, %852 : vector<10x128xf32>
    %cst_308 = arith.constant 1.000000e+00 : f32
    %854 = vector.broadcast %cst_308 : f32 to vector<10x128xf32>
    %855 = arith.addf %854, %853 : vector<10x128xf32>
    %856 = arith.mulf %817, %855 : vector<10x128xf32>
    %857 = arith.truncf %856 : vector<10x128xf32> to vector<10x128xbf16>
    %c3_309 = arith.constant 3 : index
    %c0_310 = arith.constant 0 : index
    %c0_311 = arith.constant 0 : index
    %858 = vector.load %arg6[%c3_309, %c0_310, %c0_311] : memref<4x128x32xbf16, #tpu.memory_space<vmem>>, vector<1x128x32xbf16>
    %859 = vector.shape_cast %858 : vector<1x128x32xbf16> to vector<128x32xbf16>
    %cst_312 = arith.constant dense<0.000000e+00> : vector<10x32xf32>
    %860 = tpu.matmul %857, %859, %cst_312 {dimension_numbers = #tpu.dot_dimension_numbers<[1], [0], [0], [1], [0, 0, 1, 1], [], []>} : vector<10x128xbf16>, vector<128x32xbf16>, vector<10x32xf32> -> vector<10x32xf32>
    %861 = arith.addf %785, %860 : vector<10x32xf32>
    %862 = vector.broadcast %663 : vector<1x32xf32> to vector<10x32xf32>
    %863 = arith.addf %861, %862 : vector<10x32xf32>
    %c0_313 = arith.constant 0 : index
    %c96 = arith.constant 96 : index
    %864 = vector.load %arg8[%c0_313, %c96] : memref<10x128xf32, #tpu.memory_space<vmem>>, vector<10x32xf32>
    tpu.vector_store %arg8[%c0_313, %c96], %863 {strides = array<i32>} : memref<10x128xf32, #tpu.memory_space<vmem>>, vector<10x32xf32>,
    return
  }
}

</mosaic_0001>

<llo_original>
// kernel: _lambda_.1
$region0: #{_lambda_.1}
  #allocation0 [shape = 'u32[]', space=smem, size = 0x4, offset = 0x4, fixed_abs, tag = 'smem constant byte address 0x4 - core index']
  #allocation1 [shape = 'u32[144,128]{1,0:T(1,128)}', space=vmem, size = 0x12000, scoped, tag = 'internal scratch']
  #allocation2 [shape = 'f32[10,32]{1,0:T(8,128)}', space=vmem, size = 0x2000, scoped, tag = 'scratch operand']
  %s0 = inlined_call_operand.vmem [shape: f32[10,32], index: 0, kind: input, shape index: {}]
  %s1 = inlined_call_operand.vmem [shape: bf16[4,32,96], index: 1, kind: input, shape index: {}]
  %s2 = inlined_call_operand.vmem [shape: f32[4,1,96], index: 2, kind: input, shape index: {}]
  %s3 = inlined_call_operand.vmem [shape: bf16[4,32,32], index: 3, kind: input, shape index: {}]
  %s4 = inlined_call_operand.vmem [shape: bf16[4,32,128], index: 4, kind: input, shape index: {}]
  %s5 = inlined_call_operand.vmem [shape: f32[4,1,128], index: 5, kind: input, shape index: {}]
  %s6 = inlined_call_operand.vmem [shape: bf16[4,128,32], index: 6, kind: input, shape index: {}]
  %s7 = inlined_call_operand.vmem [shape: f32[4,6,32], index: 7, kind: input, shape index: {}]
  %s8 = inlined_call_operand.vmem [shape: f32[10,128], index: 8, kind: output, shape index: {}]
  %s9 = sld [smem:[#allocation0]]
  $region42: #{_lambda_.1} parent=0
    _
  %s11 = ssub.s32 1, %s9
  %s12 = scalar_select 0, %s11, %s9
  // Predicated region
  $region2: #{_lambda_.1} parent=0 // pred_check
    _
  $region3: #{_lambda_.1} parent=0 // pred_check_branch
    %14 = sbr.rel (0) target = $region5
  $region4: #{_lambda_.1} parent=0 // pred_region
    _
  $region5: #{_lambda_.1} parent=0 // pred_fallthru
    _
  // Predicated region
  $region6: #{_lambda_.1} parent=0 // pred_check
    _
  $region7: #{_lambda_.1} parent=0 // pred_check_branch
    %16 = sbr.rel (0) target = $region9
  $region8: #{_lambda_.1} parent=0 // pred_region
    _
  $region9: #{_lambda_.1} parent=0 // pred_fallthru
    _
  // Predicated region
  $region10: #{_lambda_.1} parent=0 // pred_check
    _
  $region11: #{_lambda_.1} parent=0 // pred_check_branch
    %18 = sbr.rel (0) target = $region13
  $region12: #{_lambda_.1} parent=0 // pred_region
    _
  $region13: #{_lambda_.1} parent=0 // pred_fallthru
    _
  // Predicated region
  $region14: #{_lambda_.1} parent=0 // pred_check
    _
  $region15: #{_lambda_.1} parent=0 // pred_check_branch
    %20 = sbr.rel (0) target = $region17
  $region16: #{_lambda_.1} parent=0 // pred_region
    _
  $region17: #{_lambda_.1} parent=0 // pred_fallthru
    _
  // Predicated region
  $region18: #{_lambda_.1} parent=0 // pred_check
    _
  $region19: #{_lambda_.1} parent=0 // pred_check_branch
    %22 = sbr.rel (0) target = $region21
  $region20: #{_lambda_.1} parent=0 // pred_region
    _
  $region21: #{_lambda_.1} parent=0 // pred_fallthru
    _
  // Predicated region
  $region22: #{_lambda_.1} parent=0 // pred_check
    _
  $region23: #{_lambda_.1} parent=0 // pred_check_branch
    %24 = sbr.rel (0) target = $region25
  $region24: #{_lambda_.1} parent=0 // pred_region
    _
  $region25: #{_lambda_.1} parent=0 // pred_fallthru
    _
  // Predicated region
  $region26: #{_lambda_.1} parent=0 // pred_check
    _
  $region27: #{_lambda_.1} parent=0 // pred_check_branch
    %26 = sbr.rel (0) target = $region29
  $region28: #{_lambda_.1} parent=0 // pred_region
    _
  $region29: #{_lambda_.1} parent=0 // pred_fallthru
    _
  // Predicated region
  $region30: #{_lambda_.1} parent=0 // pred_check
    _
  $region31: #{_lambda_.1} parent=0 // pred_check_branch
    %28 = sbr.rel (0) target = $region33
  $region32: #{_lambda_.1} parent=0 // pred_region
    _
  $region33: #{_lambda_.1} parent=0 // pred_fallthru
    _
  %v30 = vld [vmem:[%s0] sm:$0xff]
  %v31 = vld [vmem:[%s0 + $0x8] sm:$0x3]
  %v32 = vlaneseq
  %v33 = vshrl.u32 %v32, 7
  %v34 = vadd.s32 %v33, 8
  %v35 = vlaneseq
  %v36 = vand.u32 %v35, 127
  %vm37 = vcmp.ge.s32.totalorder %v33, 0
  %vm38 = vcmp.ge.s32.totalorder %v34, 0
  %vm39 = vcmp.lt.s32.totalorder %v33, 5
  %vm40 = vcmp.lt.s32.totalorder %v34, 5
  %vm41 = vmand %vm37, %vm39
  %vm42 = vmand %vm38, %vm40
  %vm43 = vcmp.ge.s32.totalorder %v36, 0
  %vm44 = vmand %vm41, %vm43
  %vm45 = vmand %vm42, %vm43
  %vm46 = vcmp.lt.s32.totalorder %v36, 5
  %vm47 = vmand %vm44, %vm46
  %vm48 = vmand %vm45, %vm46
  %vm49 = vcmp.ge.s32.totalorder %v33, 5
  %vm50 = vcmp.ge.s32.totalorder %v34, 5
  %vm51 = vcmp.lt.s32.totalorder %v33, 10
  %vm52 = vcmp.lt.s32.totalorder %v34, 10
  %vm53 = vmand %vm49, %vm51
  %vm54 = vmand %vm50, %vm52
  %vm55 = vcmp.ge.s32.totalorder %v36, 5
  %vm56 = vmand %vm53, %vm55
  %vm57 = vmand %vm54, %vm55
  %vm58 = vcmp.lt.s32.totalorder %v36, 10
  %vm59 = vmand %vm56, %vm58
  %vm60 = vmand %vm57, %vm58
  %vm61 = vmor %vm47, %vm59
  %vm62 = vmor %vm48, %vm60
  %v63 = vsel %vm61, 0.0, -1e+30
  %v64 = vsel %vm62, 0.0, -1e+30
  %v65 = vld [vmem:[%s7] sm:$0x3f]
  %vm66 = vcmask 261120
  %v67 = vsel %vm66, %v30, 0.0
  %68 = vadd.xlane.f32.xlu0 %v67
  %v69 = vpop.xlane.xlu0 %68
  %vm70 = vcmask 254976
  %v71 = vsel %vm70, %v31, 0.0
  %72 = vadd.xlane.f32.xlu0 %v71
  %v73 = vpop.xlane.xlu0 %72
  %v74 = vrcp.pop 32.0
  %v75 = vmul.f32 %v69, %v74
  %v76 = vmul.f32 %v73, %v74
  %v77 = vsub.f32 %v30, %v75
  %v78 = vsub.f32 %v31, %v76
  %v79 = vmul.f32 %v77, %v77
  %v80 = vmul.f32 %v78, %v78
  %v81 = vsel %vm66, %v79, 0.0
  %82 = vadd.xlane.f32.xlu0 %v81
  %v83 = vpop.xlane.xlu0 %82
  %v84 = vsel %vm70, %v80, 0.0
  %85 = vadd.xlane.f32.xlu0 %v84
  %v86 = vpop.xlane.xlu0 %85
  %v87 = vmul.f32 %v83, %v74
  %v88 = vmul.f32 %v86, %v74
  %v89 = vadd.f32 %v87, 1e-06
  %v90 = vadd.f32 %v88, 1e-06
  %v91 = vrsqrt.pop %v89
  %v92 = vrsqrt.pop %v90
  %v93 = vmul.f32 %v77, %v91
  %v94 = vmul.f32 %v78, %v92
  %v95 = vlaneseq
  %v96 = vshrl.u32 %v95, 7
  %v97 = vsub.s32 0, %v96
  %v98 = vrot.slane %v65, %v97
  %v99 = vmul.f32 %v93, %v98
  %v100 = vmul.f32 %v94, %v98
  %v101 = vlaneseq
  %v102 = vshrl.u32 %v101, 7
  %v103 = vsub.s32 1, %v102
  %v104 = vrot.slane %v65, %v103
  %v105 = vadd.f32 %v99, %v104
  %v106 = vadd.f32 %v100, %v104
  %v107 = vpack.c.bf16 %v106, %v105
  %v108 = vld [vmem:[%s1] sm:$0xf]
  %v109 = vld [vmem:[%s1 + $0x4] sm:$0xf]
  %v110 = vld [vmem:[%s1 + $0x8] sm:$0xf]
  %v111 = vld [vmem:[%s1 + $0xc] sm:$0xf]
  %v112 = vld [vmem:[%s2] sm:$0x1]
  %v114 = vlaneseq
  %v115 = vshrl.u32 %v114, 7
  %v116 = vsub.s32 0, %v115
  %v117 = vrot.slane %v112, %v116
  %v123 = vunpack.c.l.b16 %v108
  %v124 = vunpack.c.l.b16 %v109
  %v125 = vunpack.c.l.b16 %v110
  %v126 = vunpack.c.l.b16 %v111
  %v127 = vpack.c.b16 %v124, %v123
  %v128 = vpack.c.b16 %v126, %v125
  %v132 = vsel %vm66, %v107, 0
  %134 = vmatprep.subr.bf16.mxu0 0
  %135 = vmatpush1.bf16.msra.mxu0 %v127
  %136 = vmatprep.subr.bf16.mxu0 0
  %137 = vmatpush1.bf16.msra.mxu0 %v128
  %138 = vmatprep.subr.bf16.mxu0 0
  %139 = vmatpush1.bf16.msra.mxu0 0
  %140 = vmatprep.subr.bf16.mxu0 0
  %141 = vmatpush1.bf16.msra.mxu0 0
  %142 = vmatprep.subr.bf16.mxu0 0
  %143 = vmatpush1.bf16.msra.mxu0 0
  %144 = vmatprep.subr.bf16.mxu0 0
  %145 = vmatpush1.bf16.msra.mxu0 0
  %146 = vmatprep.subr.bf16.mxu0 0
  %147 = vmatpush1.bf16.msra.mxu0 0
  %148 = vmatprep.subr.bf16.mxu0 0
  %149 = vmatpush1.bf16.msra.mxu0 0
  %150 = vmatprep.subr.bf16.mxu0 0
  %151 = vmatpush1.bf16.msra.mxu0 0
  %152 = vmatprep.subr.bf16.mxu0 0
  %153 = vmatpush1.bf16.msra.mxu0 0
  %154 = vmatprep.subr.bf16.mxu0 0
  %155 = vmatpush1.bf16.msra.mxu0 0
  %156 = vmatprep.subr.bf16.mxu0 0
  %157 = vmatpush1.bf16.msra.mxu0 0
  %158 = vmatprep.subr.bf16.mxu0 0
  %159 = vmatpush1.bf16.msra.mxu0 0
  %160 = vmatprep.subr.bf16.mxu0 0
  %161 = vmatpush1.bf16.msra.mxu0 0
  %162 = vmatprep.subr.bf16.mxu0 0
  %163 = vmatpush1.bf16.msra.mxu0 0
  %164 = vmatprep.subr.bf16.mxu0 0
  %165 = vmatpush1.bf16.msra.mxu0 0
  %166 = vmatprep.mubr.bf16.mxu0 0
  %167 = vmatmul.mubr.bf16.gmra.mrb[0].mxu0 %v132
  %v168 = vpop.f32.mrb[0].mxu0
  %v169 = vadd.f32 %v117, %v168
  %v170 = vpop.f32.mrb[0].mxu0
  %v171 = vpop.f32.mrb[0].mxu0
  %v172 = vadd.f32 %v117, %v171
  %v173 = vpop.f32.mrb[0].mxu0
  %174 = vdwg.mxu0
  %v175 = vpack.c.bf16 %v172, %v169
  %177 = vrot.lane.b32.xlu0 %v175, 96
  %v178 = vpop.permute.xlu0 %177
  %vm179 = vcmask 64512
  %v181 = vsel %vm179, %v175, 0
  %v184 = vsel %vm179, %v178, 0
  %186 = vmatprep.subr.bf16.mxu0 0
  %187 = vmatpush1.bf16.xpose.msra.mxu0 %v184
  %188 = vmatprep.subr.bf16.mxu0 0
  %189 = vmatpush1.bf16.xpose.msra.mxu0 0
  %190 = vmatprep.subr.bf16.mxu0 0
  %191 = vmatpush1.bf16.xpose.msra.mxu0 0
  %192 = vmatprep.subr.bf16.mxu0 0
  %193 = vmatpush1.bf16.xpose.msra.mxu0 0
  %194 = vmatprep.subr.bf16.mxu0 0
  %195 = vmatpush1.bf16.xpose.msra.mxu0 0
  %196 = vmatprep.subr.bf16.mxu0 0
  %197 = vmatpush1.bf16.xpose.msra.mxu0 0
  %198 = vmatprep.subr.bf16.mxu0 0
  %199 = vmatpush1.bf16.xpose.msra.mxu0 0
  %200 = vmatprep.subr.bf16.mxu0 0
  %201 = vmatpush1.bf16.xpose.msra.mxu0 0
  %202 = vmatprep.subr.bf16.mxu0 0
  %203 = vmatpush1.bf16.xpose.msra.mxu0 0
  %204 = vmatprep.subr.bf16.mxu0 0
  %205 = vmatpush1.bf16.xpose.msra.mxu0 0
  %206 = vmatprep.subr.bf16.mxu0 0
  %207 = vmatpush1.bf16.xpose.msra.mxu0 0
  %208 = vmatprep.subr.bf16.mxu0 0
  %209 = vmatpush1.bf16.xpose.msra.mxu0 0
  %210 = vmatprep.subr.bf16.mxu0 0
  %211 = vmatpush1.bf16.xpose.msra.mxu0 0
  %212 = vmatprep.subr.bf16.mxu0 0
  %213 = vmatpush1.bf16.xpose.msra.mxu0 0
  %214 = vmatprep.subr.bf16.mxu0 0
  %215 = vmatpush1.bf16.xpose.msra.mxu0 0
  %216 = vmatprep.subr.bf16.mxu0 0
  %217 = vmatpush1.bf16.xpose.msra.mxu0 0
  %218 = vmatprep.mubr.bf16.mxu0 0
  %219 = vmatmul.mubr.bf16.gmra.mrb[0].mxu0 %v181
  %v220 = vpop.f32.mrb[0].mxu0
  %v221 = vadd.f32 %v63, %v220
  %v222 = vpop.f32.mrb[0].mxu0
  %v223 = vpop.f32.mrb[0].mxu0
  %v224 = vadd.f32 %v64, %v223
  %v225 = vpop.f32.mrb[0].mxu0
  %226 = vdwg.mxu0
  %vm227 = vcmask 80896
  %v228 = vsel %vm227, %v221, -inf
  %229 = vmax.xlane.f32.xlu0 %v228
  %v230 = vpop.xlane.xlu0 %229
  %vm231 = vcmask 74752
  %v232 = vsel %vm231, %v224, -inf
  %233 = vmax.xlane.f32.xlu0 %v232
  %v234 = vpop.xlane.xlu0 %233
  %v235 = vsub.f32 %v221, %v230
  %v236 = vsub.f32 %v224, %v234
  %v237 = vmul.f32 %v235, 1.442695
  %v238 = vpow.pop %v237
  %v239 = vmul.f32 %v236, 1.442695
  %v240 = vpow.pop %v239
  %v241 = vsel %vm227, %v238, 0.0
  %242 = vadd.xlane.f32.xlu0 %v241
  %v243 = vpop.xlane.xlu0 %242
  %v244 = vsel %vm231, %v240, 0.0
  %245 = vadd.xlane.f32.xlu0 %v244
  %v246 = vpop.xlane.xlu0 %245
  %v247 = vrcp.pop %v243
  %v248 = vrcp.pop %v246
  %v249 = vmul.f32 %v238, %v247
  %v250 = vmul.f32 %v240, %v248
  %v251 = vpack.c.bf16 %v250, %v249
  %252 = vrot.lane.b32.xlu0 %v175, 64
  %v253 = vpop.permute.xlu0 %252
  %v255 = vsel %vm227, %v251, 0
  %vm257 = vcmask 1044480
  %v259 = vsel %vm257, %v253, 0
  %261 = vmatprep.subr.bf16.mxu0 0
  %262 = vmatpush1.bf16.msra.mxu0 %v259
  %263 = vmatprep.subr.bf16.mxu0 0
  %264 = vmatpush1.bf16.msra.mxu0 0
  %265 = vmatprep.subr.bf16.mxu0 0
  %266 = vmatpush1.bf16.msra.mxu0 0
  %267 = vmatprep.subr.bf16.mxu0 0
  %268 = vmatpush1.bf16.msra.mxu0 0
  %269 = vmatprep.subr.bf16.mxu0 0
  %270 = vmatpush1.bf16.msra.mxu0 0
  %271 = vmatprep.subr.bf16.mxu0 0
  %272 = vmatpush1.bf16.msra.mxu0 0
  %273 = vmatprep.subr.bf16.mxu0 0
  %274 = vmatpush1.bf16.msra.mxu0 0
  %275 = vmatprep.subr.bf16.mxu0 0
  %276 = vmatpush1.bf16.msra.mxu0 0
  %277 = vmatprep.subr.bf16.mxu0 0
  %278 = vmatpush1.bf16.msra.mxu0 0
  %279 = vmatprep.subr.bf16.mxu0 0
  %280 = vmatpush1.bf16.msra.mxu0 0
  %281 = vmatprep.subr.bf16.mxu0 0
  %282 = vmatpush1.bf16.msra.mxu0 0
  %283 = vmatprep.subr.bf16.mxu0 0
  %284 = vmatpush1.bf16.msra.mxu0 0
  %285 = vmatprep.subr.bf16.mxu0 0
  %286 = vmatpush1.bf16.msra.mxu0 0
  %287 = vmatprep.subr.bf16.mxu0 0
  %288 = vmatpush1.bf16.msra.mxu0 0
  %289 = vmatprep.subr.bf16.mxu0 0
  %290 = vmatpush1.bf16.msra.mxu0 0
  %291 = vmatprep.subr.bf16.mxu0 0
  %292 = vmatpush1.bf16.msra.mxu0 0
  %293 = vmatprep.mubr.bf16.mxu0 0
  %294 = vmatmul.mubr.bf16.gmra.mrb[0].mxu0 %v255
  %v295 = vpop.f32.mrb[0].mxu0
  %v296 = vadd.f32 0.0, %v295
  %v297 = vpop.f32.mrb[0].mxu0
  %v298 = vpop.f32.mrb[0].mxu0
  %v299 = vadd.f32 0.0, %v298
  %v300 = vpop.f32.mrb[0].mxu0
  %301 = vdwg.mxu0
  %302 = vst.msk [vmem:[#allocation2] sm:$0xff] %vm179, %v296
  %vm303 = vcmask 58368
  %304 = vst.msk [vmem:[#allocation2 + $0x8] sm:$0x3] %vm303, %v299
  %305 = vrot.lane.b32.xlu0 %v175, 120
  %v306 = vpop.permute.xlu0 %305
  %307 = vrot.lane.b32.xlu0 %v175, 88
  %v308 = vpop.permute.xlu0 %307
  %v310 = vsel %vm179, %v306, 0
  %v313 = vsel %vm179, %v308, 0
  %315 = vmatprep.subr.bf16.mxu0 0
  %316 = vmatpush1.bf16.xpose.msra.mxu0 %v313
  %317 = vmatprep.subr.bf16.mxu0 0
  %318 = vmatpush1.bf16.xpose.msra.mxu0 0
  %319 = vmatprep.subr.bf16.mxu0 0
  %320 = vmatpush1.bf16.xpose.msra.mxu0 0
  %321 = vmatprep.subr.bf16.mxu0 0
  %322 = vmatpush1.bf16.xpose.msra.mxu0 0
  %323 = vmatprep.subr.bf16.mxu0 0
  %324 = vmatpush1.bf16.xpose.msra.mxu0 0
  %325 = vmatprep.subr.bf16.mxu0 0
  %326 = vmatpush1.bf16.xpose.msra.mxu0 0
  %327 = vmatprep.subr.bf16.mxu0 0
  %328 = vmatpush1.bf16.xpose.msra.mxu0 0
  %329 = vmatprep.subr.bf16.mxu0 0
  %330 = vmatpush1.bf16.xpose.msra.mxu0 0
  %331 = vmatprep.subr.bf16.mxu0 0
  %332 = vmatpush1.bf16.xpose.msra.mxu0 0
  %333 = vmatprep.subr.bf16.mxu0 0
  %334 = vmatpush1.bf16.xpose.msra.mxu0 0
  %335 = vmatprep.subr.bf16.mxu0 0
  %336 = vmatpush1.bf16.xpose.msra.mxu0 0
  %337 = vmatprep.subr.bf16.mxu0 0
  %338 = vmatpush1.bf16.xpose.msra.mxu0 0
  %339 = vmatprep.subr.bf16.mxu0 0
  %340 = vmatpush1.bf16.xpose.msra.mxu0 0
  %341 = vmatprep.subr.bf16.mxu0 0
  %342 = vmatpush1.bf16.xpose.msra.mxu0 0
  %343 = vmatprep.subr.bf16.mxu0 0
  %344 = vmatpush1.bf16.xpose.msra.mxu0 0
  %345 = vmatprep.subr.bf16.mxu0 0
  %346 = vmatpush1.bf16.xpose.msra.mxu0 0
  %347 = vmatprep.mubr.bf16.mxu0 0
  %348 = vmatmul.mubr.bf16.gmra.mrb[0].mxu0 %v310
  %v349 = vpop.f32.mrb[0].mxu0
  %v350 = vadd.f32 %v63, %v349
  %v351 = vpop.f32.mrb[0].mxu0
  %v352 = vpop.f32.mrb[0].mxu0
  %v353 = vadd.f32 %v64, %v352
  %v354 = vpop.f32.mrb[0].mxu0
  %355 = vdwg.mxu0
  %v356 = vsel %vm227, %v350, -inf
  %357 = vmax.xlane.f32.xlu0 %v356
  %v358 = vpop.xlane.xlu0 %357
  %v359 = vsel %vm231, %v353, -inf
  %360 = vmax.xlane.f32.xlu0 %v359
  %v361 = vpop.xlane.xlu0 %360
  %v362 = vsub.f32 %v350, %v358
  %v363 = vsub.f32 %v353, %v361
  %v364 = vmul.f32 %v362, 1.442695
  %v365 = vpow.pop %v364
  %v366 = vmul.f32 %v363, 1.442695
  %v367 = vpow.pop %v366
  %v368 = vsel %vm227, %v365, 0.0
  %369 = vadd.xlane.f32.xlu0 %v368
  %v370 = vpop.xlane.xlu0 %369
  %v371 = vsel %vm231, %v367, 0.0
  %372 = vadd.xlane.f32.xlu0 %v371
  %v373 = vpop.xlane.xlu0 %372
  %v374 = vrcp.pop %v370
  %v375 = vrcp.pop %v373
  %v376 = vmul.f32 %v365, %v374
  %v377 = vmul.f32 %v367, %v375
  %v378 = vpack.c.bf16 %v377, %v376
  %379 = vrot.lane.b32.xlu0 %v175, 56
  %v380 = vpop.permute.xlu0 %379
  %v382 = vsel %vm227, %v378, 0
  %v385 = vsel %vm257, %v380, 0
  %387 = vmatprep.subr.bf16.mxu0 0
  %388 = vmatpush1.bf16.msra.mxu0 %v385
  %389 = vmatprep.subr.bf16.mxu0 0
  %390 = vmatpush1.bf16.msra.mxu0 0
  %391 = vmatprep.subr.bf16.mxu0 0
  %392 = vmatpush1.bf16.msra.mxu0 0
  %393 = vmatprep.subr.bf16.mxu0 0
  %394 = vmatpush1.bf16.msra.mxu0 0
  %395 = vmatprep.subr.bf16.mxu0 0
  %396 = vmatpush1.bf16.msra.mxu0 0
  %397 = vmatprep.subr.bf16.mxu0 0
  %398 = vmatpush1.bf16.msra.mxu0 0
  %399 = vmatprep.subr.bf16.mxu0 0
  %400 = vmatpush1.bf16.msra.mxu0 0
  %401 = vmatprep.subr.bf16.mxu0 0
  %402 = vmatpush1.bf16.msra.mxu0 0
  %403 = vmatprep.subr.bf16.mxu0 0
  %404 = vmatpush1.bf16.msra.mxu0 0
  %405 = vmatprep.subr.bf16.mxu0 0
  %406 = vmatpush1.bf16.msra.mxu0 0
  %407 = vmatprep.subr.bf16.mxu0 0
  %408 = vmatpush1.bf16.msra.mxu0 0
  %409 = vmatprep.subr.bf16.mxu0 0
  %410 = vmatpush1.bf16.msra.mxu0 0
  %411 = vmatprep.subr.bf16.mxu0 0
  %412 = vmatpush1.bf16.msra.mxu0 0
  %413 = vmatprep.subr.bf16.mxu0 0
  %414 = vmatpush1.bf16.msra.mxu0 0
  %415 = vmatprep.subr.bf16.mxu0 0
  %416 = vmatpush1.bf16.msra.mxu0 0
  %417 = vmatprep.subr.bf16.mxu0 0
  %418 = vmatpush1.bf16.msra.mxu0 0
  %419 = vmatprep.mubr.bf16.mxu0 0
  %420 = vmatmul.mubr.bf16.gmra.mrb[0].mxu0 %v382
  %v421 = vpop.f32.mrb[0].mxu0
  %v422 = vadd.f32 0.0, %v421
  %v423 = vpop.f32.mrb[0].mxu0
  %v424 = vpop.f32.mrb[0].mxu0
  %v425 = vadd.f32 0.0, %v424
  %v426 = vpop.f32.mrb[0].mxu0
  %427 = vdwg.mxu0
  %430 = vrot.lane.b32.xlu0 %v422, 8
  %v431 = vpop.permute.xlu0 %430
  %432 = vrot.lane.b32.xlu0 %v425, 8
  %v433 = vpop.permute.xlu0 %432
  %vm436 = vcmask 130112
  %437 = vst.msk [vmem:[#allocation2] sm:$0xff] %vm436, %v431
  %vm438 = vcmask 123968
  %439 = vst.msk [vmem:[#allocation2 + $0x8] sm:$0x3] %vm438, %v433
  %440 = vrot.lane.b32.xlu0 %v175, 112
  %v441 = vpop.permute.xlu0 %440
  %442 = vrot.lane.b32.xlu0 %v175, 80
  %v443 = vpop.permute.xlu0 %442
  %v445 = vsel %vm179, %v441, 0
  %v448 = vsel %vm179, %v443, 0
  %450 = vmatprep.subr.bf16.mxu0 0
  %451 = vmatpush1.bf16.xpose.msra.mxu0 %v448
  %452 = vmatprep.subr.bf16.mxu0 0
  %453 = vmatpush1.bf16.xpose.msra.mxu0 0
  %454 = vmatprep.subr.bf16.mxu0 0
  %455 = vmatpush1.bf16.xpose.msra.mxu0 0
  %456 = vmatprep.subr.bf16.mxu0 0
  %457 = vmatpush1.bf16.xpose.msra.mxu0 0
  %458 = vmatprep.subr.bf16.mxu0 0
  %459 = vmatpush1.bf16.xpose.msra.mxu0 0
  %460 = vmatprep.subr.bf16.mxu0 0
  %461 = vmatpush1.bf16.xpose.msra.mxu0 0
  %462 = vmatprep.subr.bf16.mxu0 0
  %463 = vmatpush1.bf16.xpose.msra.mxu0 0
  %464 = vmatprep.subr.bf16.mxu0 0
  %465 = vmatpush1.bf16.xpose.msra.mxu0 0
  %466 = vmatprep.subr.bf16.mxu0 0
  %467 = vmatpush1.bf16.xpose.msra.mxu0 0
  %468 = vmatprep.subr.bf16.mxu0 0
  %469 = vmatpush1.bf16.xpose.msra.mxu0 0
  %470 = vmatprep.subr.bf16.mxu0 0
  %471 = vmatpush1.bf16.xpose.msra.mxu0 0
  %472 = vmatprep.subr.bf16.mxu0 0
  %473 = vmatpush1.bf16.xpose.msra.mxu0 0
  %474 = vmatprep.subr.bf16.mxu0 0
  %475 = vmatpush1.bf16.xpose.msra.mxu0 0
  %476 = vmatprep.subr.bf16.mxu0 0
  %477 = vmatpush1.bf16.xpose.msra.mxu0 0
  %478 = vmatprep.subr.bf16.mxu0 0
  %479 = vmatpush1.bf16.xpose.msra.mxu0 0
  %480 = vmatprep.subr.bf16.mxu0 0
  %481 = vmatpush1.bf16.xpose.msra.mxu0 0
  %482 = vmatprep.mubr.bf16.mxu0 0
  %483 = vmatmul.mubr.bf16.gmra.mrb[0].mxu0 %v445
  %v484 = vpop.f32.mrb[0].mxu0
  %v485 = vadd.f32 %v63, %v484
  %v486 = vpop.f32.mrb[0].mxu0
  %v487 = vpop.f32.mrb[0].mxu0
  %v488 = vadd.f32 %v64, %v487
  %v489 = vpop.f32.mrb[0].mxu0
  %490 = vdwg.mxu0
  %v491 = vsel %vm227, %v485, -inf
  %492 = vmax.xlane.f32.xlu0 %v491
  %v493 = vpop.xlane.xlu0 %492
  %v494 = vsel %vm231, %v488, -inf
  %495 = vmax.xlane.f32.xlu0 %v494
  %v496 = vpop.xlane.xlu0 %495
  %v497 = vsub.f32 %v485, %v493
  %v498 = vsub.f32 %v488, %v496
  %v499 = vmul.f32 %v497, 1.442695
  %v500 = vpow.pop %v499
  %v501 = vmul.f32 %v498, 1.442695
  %v502 = vpow.pop %v501
  %v503 = vsel %vm227, %v500, 0.0
  %504 = vadd.xlane.f32.xlu0 %v503
  %v505 = vpop.xlane.xlu0 %504
  %v506 = vsel %vm231, %v502, 0.0
  %507 = vadd.xlane.f32.xlu0 %v506
  %v508 = vpop.xlane.xlu0 %507
  %v509 = vrcp.pop %v505
  %v510 = vrcp.pop %v508
  %v511 = vmul.f32 %v500, %v509
  %v512 = vmul.f32 %v502, %v510
  %v513 = vpack.c.bf16 %v512, %v511
  %514 = vrot.lane.b32.xlu0 %v175, 48
  %v515 = vpop.permute.xlu0 %514
  %v517 = vsel %vm227, %v513, 0
  %v520 = vsel %vm257, %v515, 0
  %522 = vmatprep.subr.bf16.mxu0 0
  %523 = vmatpush1.bf16.msra.mxu0 %v520
  %524 = vmatprep.subr.bf16.mxu0 0
  %525 = vmatpush1.bf16.msra.mxu0 0
  %526 = vmatprep.subr.bf16.mxu0 0
  %527 = vmatpush1.bf16.msra.mxu0 0
  %528 = vmatprep.subr.bf16.mxu0 0
  %529 = vmatpush1.bf16.msra.mxu0 0
  %530 = vmatprep.subr.bf16.mxu0 0
  %531 = vmatpush1.bf16.msra.mxu0 0
  %532 = vmatprep.subr.bf16.mxu0 0
  %533 = vmatpush1.bf16.msra.mxu0 0
  %534 = vmatprep.subr.bf16.mxu0 0
  %535 = vmatpush1.bf16.msra.mxu0 0
  %536 = vmatprep.subr.bf16.mxu0 0
  %537 = vmatpush1.bf16.msra.mxu0 0
  %538 = vmatprep.subr.bf16.mxu0 0
  %539 = vmatpush1.bf16.msra.mxu0 0
  %540 = vmatprep.subr.bf16.mxu0 0
  %541 = vmatpush1.bf16.msra.mxu0 0
  %542 = vmatprep.subr.bf16.mxu0 0
  %543 = vmatpush1.bf16.msra.mxu0 0
  %544 = vmatprep.subr.bf16.mxu0 0
  %545 = vmatpush1.bf16.msra.mxu0 0
  %546 = vmatprep.subr.bf16.mxu0 0
  %547 = vmatpush1.bf16.msra.mxu0 0
  %548 = vmatprep.subr.bf16.mxu0 0
  %549 = vmatpush1.bf16.msra.mxu0 0
  %550 = vmatprep.subr.bf16.mxu0 0
  %551 = vmatpush1.bf16.msra.mxu0 0
  %552 = vmatprep.subr.bf16.mxu0 0
  %553 = vmatpush1.bf16.msra.mxu0 0
  %554 = vmatprep.mubr.bf16.mxu0 0
  %555 = vmatmul.mubr.bf16.gmra.mrb[0].mxu0 %v517
  %v556 = vpop.f32.mrb[0].mxu0
  %v557 = vadd.f32 0.0, %v556
  %v558 = vpop.f32.mrb[0].mxu0
  %v559 = vpop.f32.mrb[0].mxu0
  %v560 = vadd.f32 0.0, %v559
  %v561 = vpop.f32.mrb[0].mxu0
  %562 = vdwg.mxu0
  %565 = vrot.lane.b32.xlu0 %v557, 16
  %v566 = vpop.permute.xlu0 %565
  %567 = vrot.lane.b32.xlu0 %v560, 16
  %v568 = vpop.permute.xlu0 %567
  %vm571 = vcmask 195712
  %572 = vst.msk [vmem:[#allocation2] sm:$0xff] %vm571, %v566
  %vm573 = vcmask 189568
  %574 = vst.msk [vmem:[#allocation2 + $0x8] sm:$0x3] %vm573, %v568
  %575 = vrot.lane.b32.xlu0 %v175, 104
  %v576 = vpop.permute.xlu0 %575
  %577 = vrot.lane.b32.xlu0 %v175, 72
  %v578 = vpop.permute.xlu0 %577
  %v580 = vsel %vm179, %v576, 0
  %v583 = vsel %vm179, %v578, 0
  %585 = vmatprep.subr.bf16.mxu0 0
  %586 = vmatpush1.bf16.xpose.msra.mxu0 %v583
  %587 = vmatprep.subr.bf16.mxu0 0
  %588 = vmatpush1.bf16.xpose.msra.mxu0 0
  %589 = vmatprep.subr.bf16.mxu0 0
  %590 = vmatpush1.bf16.xpose.msra.mxu0 0
  %591 = vmatprep.subr.bf16.mxu0 0
  %592 = vmatpush1.bf16.xpose.msra.mxu0 0
  %593 = vmatprep.subr.bf16.mxu0 0
  %594 = vmatpush1.bf16.xpose.msra.mxu0 0
  %595 = vmatprep.subr.bf16.mxu0 0
  %596 = vmatpush1.bf16.xpose.msra.mxu0 0
  %597 = vmatprep.subr.bf16.mxu0 0
  %598 = vmatpush1.bf16.xpose.msra.mxu0 0
  %599 = vmatprep.subr.bf16.mxu0 0
  %600 = vmatpush1.bf16.xpose.msra.mxu0 0
  %601 = vmatprep.subr.bf16.mxu0 0
  %602 = vmatpush1.bf16.xpose.msra.mxu0 0
  %603 = vmatprep.subr.bf16.mxu0 0
  %604 = vmatpush1.bf16.xpose.msra.mxu0 0
  %605 = vmatprep.subr.bf16.mxu0 0
  %606 = vmatpush1.bf16.xpose.msra.mxu0 0
  %607 = vmatprep.subr.bf16.mxu0 0
  %608 = vmatpush1.bf16.xpose.msra.mxu0 0
  %609 = vmatprep.subr.bf16.mxu0 0
  %610 = vmatpush1.bf16.xpose.msra.mxu0 0
  %611 = vmatprep.subr.bf16.mxu0 0
  %612 = vmatpush1.bf16.xpose.msra.mxu0 0
  %613 = vmatprep.subr.bf16.mxu0 0
  %614 = vmatpush1.bf16.xpose.msra.mxu0 0
  %615 = vmatprep.subr.bf16.mxu0 0
  %616 = vmatpush1.bf16.xpose.msra.mxu0 0
  %617 = vmatprep.mubr.bf16.mxu0 0
  %618 = vmatmul.mubr.bf16.gmra.mrb[0].mxu0 %v580
  %v619 = vpop.f32.mrb[0].mxu0
  %v620 = vadd.f32 %v63, %v619
  %v621 = vpop.f32.mrb[0].mxu0
  %v622 = vpop.f32.mrb[0].mxu0
  %v623 = vadd.f32 %v64, %v622
  %v624 = vpop.f32.mrb[0].mxu0
  %625 = vdwg.mxu0
  %v626 = vsel %vm227, %v620, -inf
  %627 = vmax.xlane.f32.xlu0 %v626
  %v628 = vpop.xlane.xlu0 %627
  %v629 = vsel %vm231, %v623, -inf
  %630 = vmax.xlane.f32.xlu0 %v629
  %v631 = vpop.xlane.xlu0 %630
  %v632 = vsub.f32 %v620, %v628
  %v633 = vsub.f32 %v623, %v631
  %v634 = vmul.f32 %v632, 1.442695
  %v635 = vpow.pop %v634
  %v636 = vmul.f32 %v633, 1.442695
  %v637 = vpow.pop %v636
  %v638 = vsel %vm227, %v635, 0.0
  %639 = vadd.xlane.f32.xlu0 %v638
  %v640 = vpop.xlane.xlu0 %639
  %v641 = vsel %vm231, %v637, 0.0
  %642 = vadd.xlane.f32.xlu0 %v641
  %v643 = vpop.xlane.xlu0 %642
  %v644 = vrcp.pop %v640
  %v645 = vrcp.pop %v643
  %v646 = vmul.f32 %v635, %v644
  %v647 = vmul.f32 %v637, %v645
  %v648 = vpack.c.bf16 %v647, %v646
  %649 = vrot.lane.b32.xlu0 %v175, 40
  %v650 = vpop.permute.xlu0 %649
  %v652 = vsel %vm227, %v648, 0
  %v655 = vsel %vm257, %v650, 0
  %657 = vmatprep.subr.bf16.mxu0 0
  %658 = vmatpush1.bf16.msra.mxu0 %v655
  %659 = vmatprep.subr.bf16.mxu0 0
  %660 = vmatpush1.bf16.msra.mxu0 0
  %661 = vmatprep.subr.bf16.mxu0 0
  %662 = vmatpush1.bf16.msra.mxu0 0
  %663 = vmatprep.subr.bf16.mxu0 0
  %664 = vmatpush1.bf16.msra.mxu0 0
  %665 = vmatprep.subr.bf16.mxu0 0
  %666 = vmatpush1.bf16.msra.mxu0 0
  %667 = vmatprep.subr.bf16.mxu0 0
  %668 = vmatpush1.bf16.msra.mxu0 0
  %669 = vmatprep.subr.bf16.mxu0 0
  %670 = vmatpush1.bf16.msra.mxu0 0
  %671 = vmatprep.subr.bf16.mxu0 0
  %672 = vmatpush1.bf16.msra.mxu0 0
  %673 = vmatprep.subr.bf16.mxu0 0
  %674 = vmatpush1.bf16.msra.mxu0 0
  %675 = vmatprep.subr.bf16.mxu0 0
  %676 = vmatpush1.bf16.msra.mxu0 0
  %677 = vmatprep.subr.bf16.mxu0 0
  %678 = vmatpush1.bf16.msra.mxu0 0
  %679 = vmatprep.subr.bf16.mxu0 0
  %680 = vmatpush1.bf16.msra.mxu0 0
  %681 = vmatprep.subr.bf16.mxu0 0
  %682 = vmatpush1.bf16.msra.mxu0 0
  %683 = vmatprep.subr.bf16.mxu0 0
  %684 = vmatpush1.bf16.msra.mxu0 0
  %685 = vmatprep.subr.bf16.mxu0 0
  %686 = vmatpush1.bf16.msra.mxu0 0
  %687 = vmatprep.subr.bf16.mxu0 0
  %688 = vmatpush1.bf16.msra.mxu0 0
  %689 = vmatprep.mubr.bf16.mxu0 0
  %690 = vmatmul.mubr.bf16.gmra.mrb[0].mxu0 %v652
  %v691 = vpop.f32.mrb[0].mxu0
  %v692 = vadd.f32 0.0, %v691
  %v693 = vpop.f32.mrb[0].mxu0
  %v694 = vpop.f32.mrb[0].mxu0
  %v695 = vadd.f32 0.0, %v694
  %v696 = vpop.f32.mrb[0].mxu0
  %697 = vdwg.mxu0
  %700 = vrot.lane.b32.xlu0 %v692, 24
  %v701 = vpop.permute.xlu0 %700
  %702 = vrot.lane.b32.xlu0 %v695, 24
  %v703 = vpop.permute.xlu0 %702
  %vm706 = vcmask 261312
  %707 = vst.msk [vmem:[#allocation2] sm:$0xff] %vm706, %v701
  %vm708 = vcmask 255168
  %709 = vst.msk [vmem:[#allocation2 + $0x8] sm:$0x3] %vm708, %v703
  %v710 = vld [vmem:[#allocation2] sm:$0xff]
  %v711 = vld [vmem:[#allocation2 + $0x8] sm:$0x3]
  %v712 = vpack.c.bf16 %v711, %v710
  %v713 = vld [vmem:[%s3] sm:$0xf]
  %v714 = vld [vmem:[%s3 + $0x4] sm:$0xf]
  %v715 = vld [vmem:[%s3 + $0x8] sm:$0xf]
  %v716 = vld [vmem:[%s3 + $0xc] sm:$0xf]
  %v717 = vlaneseq
  %v718 = vshrl.u32 %v717, 7
  %v719 = vsub.s32 2, %v718
  %v720 = vrot.slane %v65, %v719
  %v725 = vunpack.c.l.b16 %v713
  %v726 = vunpack.c.l.b16 %v714
  %v727 = vunpack.c.l.b16 %v715
  %v728 = vunpack.c.l.b16 %v716
  %v729 = vpack.c.b16 %v726, %v725
  %v730 = vpack.c.b16 %v728, %v727
  %v734 = vsel %vm66, %v712, 0
  %736 = vmatprep.subr.bf16.mxu0 0
  %737 = vmatpush1.bf16.msra.mxu0 %v729
  %738 = vmatprep.subr.bf16.mxu0 0
  %739 = vmatpush1.bf16.msra.mxu0 %v730
  %740 = vmatprep.subr.bf16.mxu0 0
  %741 = vmatpush1.bf16.msra.mxu0 0
  %742 = vmatprep.subr.bf16.mxu0 0
  %743 = vmatpush1.bf16.msra.mxu0 0
  %744 = vmatprep.subr.bf16.mxu0 0
  %745 = vmatpush1.bf16.msra.mxu0 0
  %746 = vmatprep.subr.bf16.mxu0 0
  %747 = vmatpush1.bf16.msra.mxu0 0
  %748 = vmatprep.subr.bf16.mxu0 0
  %749 = vmatpush1.bf16.msra.mxu0 0
  %750 = vmatprep.subr.bf16.mxu0 0
  %751 = vmatpush1.bf16.msra.mxu0 0
  %752 = vmatprep.subr.bf16.mxu0 0
  %753 = vmatpush1.bf16.msra.mxu0 0
  %754 = vmatprep.subr.bf16.mxu0 0
  %755 = vmatpush1.bf16.msra.mxu0 0
  %756 = vmatprep.subr.bf16.mxu0 0
  %757 = vmatpush1.bf16.msra.mxu0 0
  %758 = vmatprep.subr.bf16.mxu0 0
  %759 = vmatpush1.bf16.msra.mxu0 0
  %760 = vmatprep.subr.bf16.mxu0 0
  %761 = vmatpush1.bf16.msra.mxu0 0
  %762 = vmatprep.subr.bf16.mxu0 0
  %763 = vmatpush1.bf16.msra.mxu0 0
  %764 = vmatprep.subr.bf16.mxu0 0
  %765 = vmatpush1.bf16.msra.mxu0 0
  %766 = vmatprep.subr.bf16.mxu0 0
  %767 = vmatpush1.bf16.msra.mxu0 0
  %768 = vmatprep.mubr.bf16.mxu0 0
  %769 = vmatmul.mubr.bf16.gmra.mrb[0].mxu0 %v734
  %v770 = vpop.f32.mrb[0].mxu0
  %v771 = vadd.f32 %v720, %v770
  %v772 = vpop.f32.mrb[0].mxu0
  %v773 = vpop.f32.mrb[0].mxu0
  %v774 = vadd.f32 %v720, %v773
  %v775 = vpop.f32.mrb[0].mxu0
  %776 = vdwg.mxu0
  %v777 = vadd.f32 %v30, %v771
  %v778 = vadd.f32 %v31, %v774
  %v779 = vsel %vm66, %v777, 0.0
  %780 = vadd.xlane.f32.xlu0 %v779
  %v781 = vpop.xlane.xlu0 %780
  %v782 = vsel %vm70, %v778, 0.0
  %783 = vadd.xlane.f32.xlu0 %v782
  %v784 = vpop.xlane.xlu0 %783
  %v785 = vmul.f32 %v781, %v74
  %v786 = vmul.f32 %v784, %v74
  %v787 = vsub.f32 %v777, %v785
  %v788 = vsub.f32 %v778, %v786
  %v789 = vmul.f32 %v787, %v787
  %v790 = vmul.f32 %v788, %v788
  %v791 = vsel %vm66, %v789, 0.0
  %792 = vadd.xlane.f32.xlu0 %v791
  %v793 = vpop.xlane.xlu0 %792
  %v794 = vsel %vm70, %v790, 0.0
  %795 = vadd.xlane.f32.xlu0 %v794
  %v796 = vpop.xlane.xlu0 %795
  %v797 = vmul.f32 %v793, %v74
  %v798 = vmul.f32 %v796, %v74
  %v799 = vadd.f32 %v797, 1e-06
  %v800 = vadd.f32 %v798, 1e-06
  %v801 = vrsqrt.pop %v799
  %v802 = vrsqrt.pop %v800
  %v803 = vmul.f32 %v787, %v801
  %v804 = vmul.f32 %v788, %v802
  %v805 = vlaneseq
  %v806 = vshrl.u32 %v805, 7
  %v807 = vsub.s32 3, %v806
  %v808 = vrot.slane %v65, %v807
  %v809 = vmul.f32 %v803, %v808
  %v810 = vmul.f32 %v804, %v808
  %v811 = vlaneseq
  %v812 = vshrl.u32 %v811, 7
  %v813 = vsub.s32 4, %v812
  %v814 = vrot.slane %v65, %v813
  %v815 = vadd.f32 %v809, %v814
  %v816 = vadd.f32 %v810, %v814
  %v817 = vpack.c.bf16 %v816, %v815
  %v818 = vld [vmem:[%s4] sm:$0xf]
  %v819 = vld [vmem:[%s4 + $0x4] sm:$0xf]
  %v820 = vld [vmem:[%s4 + $0x8] sm:$0xf]
  %v821 = vld [vmem:[%s4 + $0xc] sm:$0xf]
  %v822 = vld [vmem:[%s5] sm:$0x1]
  %v824 = vlaneseq
  %v825 = vshrl.u32 %v824, 7
  %v826 = vsub.s32 0, %v825
  %v827 = vrot.slane %v822, %v826
  %v833 = vunpack.c.l.b16 %v818
  %v834 = vunpack.c.l.b16 %v819
  %v835 = vunpack.c.l.b16 %v820
  %v836 = vunpack.c.l.b16 %v821
  %v837 = vpack.c.b16 %v834, %v833
  %v838 = vpack.c.b16 %v836, %v835
  %v842 = vsel %vm66, %v817, 0
  %844 = vmatprep.subr.bf16.mxu0 0
  %845 = vmatpush1.bf16.msra.mxu0 %v837
  %846 = vmatprep.subr.bf16.mxu0 0
  %847 = vmatpush1.bf16.msra.mxu0 %v838
  %848 = vmatprep.subr.bf16.mxu0 0
  %849 = vmatpush1.bf16.msra.mxu0 0
  %850 = vmatprep.subr.bf16.mxu0 0
  %851 = vmatpush1.bf16.msra.mxu0 0
  %852 = vmatprep.subr.bf16.mxu0 0
  %853 = vmatpush1.bf16.msra.mxu0 0
  %854 = vmatprep.subr.bf16.mxu0 0
  %855 = vmatpush1.bf16.msra.mxu0 0
  %856 = vmatprep.subr.bf16.mxu0 0
  %857 = vmatpush1.bf16.msra.mxu0 0
  %858 = vmatprep.subr.bf16.mxu0 0
  %859 = vmatpush1.bf16.msra.mxu0 0
  %860 = vmatprep.subr.bf16.mxu0 0
  %861 = vmatpush1.bf16.msra.mxu0 0
  %862 = vmatprep.subr.bf16.mxu0 0
  %863 = vmatpush1.bf16.msra.mxu0 0
  %864 = vmatprep.subr.bf16.mxu0 0
  %865 = vmatpush1.bf16.msra.mxu0 0
  %866 = vmatprep.subr.bf16.mxu0 0
  %867 = vmatpush1.bf16.msra.mxu0 0
  %868 = vmatprep.subr.bf16.mxu0 0
  %869 = vmatpush1.bf16.msra.mxu0 0
  %870 = vmatprep.subr.bf16.mxu0 0
  %871 = vmatpush1.bf16.msra.mxu0 0
  %872 = vmatprep.subr.bf16.mxu0 0
  %873 = vmatpush1.bf16.msra.mxu0 0
  %874 = vmatprep.subr.bf16.mxu0 0
  %875 = vmatpush1.bf16.msra.mxu0 0
  %876 = vmatprep.mubr.bf16.mxu0 0
  %877 = vmatmul.mubr.bf16.gmra.mrb[0].mxu0 %v842
  %v878 = vpop.f32.mrb[0].mxu0
  %v879 = vadd.f32 %v827, %v878
  %v880 = vpop.f32.mrb[0].mxu0
  %v881 = vpop.f32.mrb[0].mxu0
  %v882 = vadd.f32 %v827, %v881
  %v883 = vpop.f32.mrb[0].mxu0
  %884 = vdwg.mxu0
  %v885 = vmul.f32 %v879, 0.5
  %v886 = vmul.f32 %v882, 0.5
  %v887 = vmul.f32 %v879, 0.70710677
  %v888 = vmul.f32 %v882, 0.70710677
  %vm889 = vcmp.ge.f32.partialorder %v887, 0.0
  %vm890 = vcmp.ge.f32.partialorder %v888, 0.0
  %v891 = vsel %vm889, 1.0, -1.0
  %v892 = vsel %vm890, 1.0, -1.0
  %v893 = vand.u32 2147483647, %v887
  %v894 = vand.u32 2147483647, %v888
  %v895 = vmul.f32 %v893, 0.3275911
  %v896 = vmul.f32 %v894, 0.3275911
  %v897 = vadd.f32 %v895, 1.0
  %v898 = vadd.f32 %v896, 1.0
  %v899 = vrcp.pop %v897
  %v900 = vmul.f32 1.0, %v899
  %v901 = vrcp.pop %v898
  %v902 = vmul.f32 1.0, %v901
  %v903 = vmul.f32 %v900, 1.0614054
  %v904 = vmul.f32 %v902, 1.0614054
  %v905 = vadd.f32 %v903, -1.4531521
  %v906 = vadd.f32 %v904, -1.4531521
  %v907 = vmul.f32 %v905, %v900
  %v908 = vmul.f32 %v906, %v902
  %v909 = vadd.f32 %v907, 1.4214138
  %v910 = vadd.f32 %v908, 1.4214138
  %v911 = vmul.f32 %v909, %v900
  %v912 = vmul.f32 %v910, %v902
  %v913 = vadd.f32 %v911, -0.28449672
  %v914 = vadd.f32 %v912, -0.28449672
  %v915 = vmul.f32 %v913, %v900
  %v916 = vmul.f32 %v914, %v902
  %v917 = vadd.f32 %v915, 0.2548296
  %v918 = vadd.f32 %v916, 0.2548296
  %v919 = vmul.f32 %v917, %v900
  %v920 = vmul.f32 %v918, %v902
  %v921 = vsub.f32 0.0, %v893
  %v922 = vsub.f32 0.0, %v894
  %v923 = vmul.f32 %v921, %v893
  %v924 = vmul.f32 %v922, %v894
  %v925 = vmul.f32 %v923, 1.442695
  %v926 = vpow.pop %v925
  %v927 = vmul.f32 %v924, 1.442695
  %v928 = vpow.pop %v927
  %v929 = vmul.f32 %v919, %v926
  %v930 = vmul.f32 %v920, %v928
  %v931 = vsub.f32 1.0, %v929
  %v932 = vsub.f32 1.0, %v930
  %v933 = vmul.f32 %v891, %v931
  %v934 = vmul.f32 %v892, %v932
  %v935 = vadd.f32 %v933, 1.0
  %v936 = vadd.f32 %v934, 1.0
  %v937 = vmul.f32 %v885, %v935
  %v938 = vmul.f32 %v886, %v936
  %v939 = vpack.c.bf16 %v938, %v937
  %v940 = vld [vmem:[%s6] sm:$0xf]
  %v941 = vld [vmem:[%s6 + $0x4] sm:$0xf]
  %v942 = vld [vmem:[%s6 + $0x8] sm:$0xf]
  %v943 = vld [vmem:[%s6 + $0xc] sm:$0xf]
  %v944 = vld [vmem:[%s6 + $0x10] sm:$0xf]
  %v945 = vld [vmem:[%s6 + $0x14] sm:$0xf]
  %v946 = vld [vmem:[%s6 + $0x18] sm:$0xf]
  %v947 = vld [vmem:[%s6 + $0x1c] sm:$0xf]
  %v948 = vld [vmem:[%s6 + $0x20] sm:$0xf]
  %v949 = vld [vmem:[%s6 + $0x24] sm:$0xf]
  %v950 = vld [vmem:[%s6 + $0x28] sm:$0xf]
  %v951 = vld [vmem:[%s6 + $0x2c] sm:$0xf]
  %v952 = vld [vmem:[%s6 + $0x30] sm:$0xf]
  %v953 = vld [vmem:[%s6 + $0x34] sm:$0xf]
  %v954 = vld [vmem:[%s6 + $0x38] sm:$0xf]
  %v955 = vld [vmem:[%s6 + $0x3c] sm:$0xf]
  %v972 = vunpack.c.l.b16 %v940
  %v973 = vunpack.c.l.b16 %v941
  %v974 = vunpack.c.l.b16 %v942
  %v975 = vunpack.c.l.b16 %v943
  %v976 = vunpack.c.l.b16 %v944
  %v977 = vunpack.c.l.b16 %v945
  %v978 = vunpack.c.l.b16 %v946
  %v979 = vunpack.c.l.b16 %v947
  %v980 = vunpack.c.l.b16 %v948
  %v981 = vunpack.c.l.b16 %v949
  %v982 = vunpack.c.l.b16 %v950
  %v983 = vunpack.c.l.b16 %v951
  %v984 = vunpack.c.l.b16 %v952
  %v985 = vunpack.c.l.b16 %v953
  %v986 = vunpack.c.l.b16 %v954
  %v987 = vunpack.c.l.b16 %v955
  %v988 = vpack.c.b16 %v973, %v972
  %v989 = vpack.c.b16 %v975, %v974
  %v990 = vpack.c.b16 %v977, %v976
  %v991 = vpack.c.b16 %v979, %v978
  %v992 = vpack.c.b16 %v981, %v980
  %v993 = vpack.c.b16 %v983, %v982
  %v994 = vpack.c.b16 %v985, %v984
  %v995 = vpack.c.b16 %v987, %v986
  %1004 = vmatprep.subr.bf16.mxu0 0
  %1005 = vmatpush1.bf16.msra.mxu0 %v988
  %1006 = vmatprep.subr.bf16.mxu0 0
  %1007 = vmatpush1.bf16.msra.mxu0 %v989
  %1008 = vmatprep.subr.bf16.mxu0 0
  %1009 = vmatpush1.bf16.msra.mxu0 %v990
  %1010 = vmatprep.subr.bf16.mxu0 0
  %1011 = vmatpush1.bf16.msra.mxu0 %v991
  %1012 = vmatprep.subr.bf16.mxu0 0
  %1013 = vmatpush1.bf16.msra.mxu0 %v992
  %1014 = vmatprep.subr.bf16.mxu0 0
  %1015 = vmatpush1.bf16.msra.mxu0 %v993
  %1016 = vmatprep.subr.bf16.mxu0 0
  %1017 = vmatpush1.bf16.msra.mxu0 %v994
  %1018 = vmatprep.subr.bf16.mxu0 0
  %1019 = vmatpush1.bf16.msra.mxu0 %v995
  %1020 = vmatprep.subr.bf16.mxu0 0
  %1021 = vmatpush1.bf16.msra.mxu0 0
  %1022 = vmatprep.subr.bf16.mxu0 0
  %1023 = vmatpush1.bf16.msra.mxu0 0
  %1024 = vmatprep.subr.bf16.mxu0 0
  %1025 = vmatpush1.bf16.msra.mxu0 0
  %1026 = vmatprep.subr.bf16.mxu0 0
  %1027 = vmatpush1.bf16.msra.mxu0 0
  %1028 = vmatprep.subr.bf16.mxu0 0
  %1029 = vmatpush1.bf16.msra.mxu0 0
  %1030 = vmatprep.subr.bf16.mxu0 0
  %1031 = vmatpush1.bf16.msra.mxu0 0
  %1032 = vmatprep.subr.bf16.mxu0 0
  %1033 = vmatpush1.bf16.msra.mxu0 0
  %1034 = vmatprep.subr.bf16.mxu0 0
  %1035 = vmatpush1.bf16.msra.mxu0 0
  %1036 = vmatprep.mubr.bf16.mxu0 0
  %1037 = vmatmul.mubr.bf16.gmra.mrb[0].mxu0 %v939
  %v1038 = vpop.f32.mrb[0].mxu0
  %v1039 = vadd.f32 0.0, %v1038
  %v1040 = vpop.f32.mrb[0].mxu0
  %v1041 = vpop.f32.mrb[0].mxu0
  %v1042 = vadd.f32 0.0, %v1041
  %v1043 = vpop.f32.mrb[0].mxu0
  %1044 = vdwg.mxu0
  %v1045 = vadd.f32 %v777, %v1039
  %v1046 = vadd.f32 %v778, %v1042
  %v1047 = vlaneseq
  %v1048 = vshrl.u32 %v1047, 7
  %v1049 = vsub.s32 5, %v1048
  %v1050 = vrot.slane %v65, %v1049
  %v1051 = vadd.f32 %v1045, %v1050
  %v1052 = vadd.f32 %v1046, %v1050
  %1053 = vst.msk [vmem:[%s8] sm:$0xff] %vm66, %v1051
  %1054 = vst.msk [vmem:[%s8 + $0x8] sm:$0x3] %vm70, %v1052
  %s1055 = scalar_lea.vmem %s7, 8
  %v1056 = vld [vmem:[%s1055] sm:$0x3f]
  %v1057 = vsel %vm66, %v1051, 0.0
  %1058 = vadd.xlane.f32.xlu0 %v1057
  %v1059 = vpop.xlane.xlu0 %1058
  %v1060 = vsel %vm70, %v1052, 0.0
  %1061 = vadd.xlane.f32.xlu0 %v1060
  %v1062 = vpop.xlane.xlu0 %1061
  %v1063 = vmul.f32 %v1059, %v74
  %v1064 = vmul.f32 %v1062, %v74
  %v1065 = vsub.f32 %v1051, %v1063
  %v1066 = vsub.f32 %v1052, %v1064
  %v1067 = vmul.f32 %v1065, %v1065
  %v1068 = vmul.f32 %v1066, %v1066
  %v1069 = vsel %vm66, %v1067, 0.0
  %1070 = vadd.xlane.f32.xlu0 %v1069
  %v1071 = vpop.xlane.xlu0 %1070
  %v1072 = vsel %vm70, %v1068, 0.0
  %1073 = vadd.xlane.f32.xlu0 %v1072
  %v1074 = vpop.xlane.xlu0 %1073
  %v1075 = vmul.f32 %v1071, %v74
  %v1076 = vmul.f32 %v1074, %v74
  %v1077 = vadd.f32 %v1075, 1e-06
  %v1078 = vadd.f32 %v1076, 1e-06
  %v1079 = vrsqrt.pop %v1077
  %v1080 = vrsqrt.pop %v1078
  %v1081 = vmul.f32 %v1065, %v1079
  %v1082 = vmul.f32 %v1066, %v1080
  %v1083 = vlaneseq
  %v1084 = vshrl.u32 %v1083, 7
  %v1085 = vsub.s32 0, %v1084
  %v1086 = vrot.slane %v1056, %v1085
  %v1087 = vmul.f32 %v1081, %v1086
  %v1088 = vmul.f32 %v1082, %v1086
  %v1089 = vlaneseq
  %v1090 = vshrl.u32 %v1089, 7
  %v1091 = vsub.s32 1, %v1090
  %v1092 = vrot.slane %v1056, %v1091
  %v1093 = vadd.f32 %v1087, %v1092
  %v1094 = vadd.f32 %v1088, %v1092
  %v1095 = vpack.c.bf16 %v1094, %v1093
  %s1096 = scalar_lea.vmem %s1, 16
  %v1097 = vld [vmem:[%s1096] sm:$0xf]
  %v1098 = vld [vmem:[%s1096 + $0x4] sm:$0xf]
  %v1099 = vld [vmem:[%s1096 + $0x8] sm:$0xf]
  %v1100 = vld [vmem:[%s1096 + $0xc] sm:$0xf]
  %s1101 = scalar_lea.vmem %s2, 1
  %v1102 = vld [vmem:[%s1101] sm:$0x1]
  %v1104 = vlaneseq
  %v1105 = vshrl.u32 %v1104, 7
  %v1106 = vsub.s32 0, %v1105
  %v1107 = vrot.slane %v1102, %v1106
  %v1113 = vunpack.c.l.b16 %v1097
  %v1114 = vunpack.c.l.b16 %v1098
  %v1115 = vunpack.c.l.b16 %v1099
  %v1116 = vunpack.c.l.b16 %v1100
  %v1117 = vpack.c.b16 %v1114, %v1113
  %v1118 = vpack.c.b16 %v1116, %v1115
  %v1122 = vsel %vm66, %v1095, 0
  %1124 = vmatprep.subr.bf16.mxu0 0
  %1125 = vmatpush1.bf16.msra.mxu0 %v1117
  %1126 = vmatprep.subr.bf16.mxu0 0
  %1127 = vmatpush1.bf16.msra.mxu0 %v1118
  %1128 = vmatprep.subr.bf16.mxu0 0
  %1129 = vmatpush1.bf16.msra.mxu0 0
  %1130 = vmatprep.subr.bf16.mxu0 0
  %1131 = vmatpush1.bf16.msra.mxu0 0
  %1132 = vmatprep.subr.bf16.mxu0 0
  %1133 = vmatpush1.bf16.msra.mxu0 0
  %1134 = vmatprep.subr.bf16.mxu0 0
  %1135 = vmatpush1.bf16.msra.mxu0 0
  %1136 = vmatprep.subr.bf16.mxu0 0
  %1137 = vmatpush1.bf16.msra.mxu0 0
  %1138 = vmatprep.subr.bf16.mxu0 0
  %1139 = vmatpush1.bf16.msra.mxu0 0
  %1140 = vmatprep.subr.bf16.mxu0 0
  %1141 = vmatpush1.bf16.msra.mxu0 0
  %1142 = vmatprep.subr.bf16.mxu0 0
  %1143 = vmatpush1.bf16.msra.mxu0 0
  %1144 = vmatprep.subr.bf16.mxu0 0
  %1145 = vmatpush1.bf16.msra.mxu0 0
  %1146 = vmatprep.subr.bf16.mxu0 0
  %1147 = vmatpush1.bf16.msra.mxu0 0
  %1148 = vmatprep.subr.bf16.mxu0 0
  %1149 = vmatpush1.bf16.msra.mxu0 0
  %1150 = vmatprep.subr.bf16.mxu0 0
  %1151 = vmatpush1.bf16.msra.mxu0 0
  %1152 = vmatprep.subr.bf16.mxu0 0
  %1153 = vmatpush1.bf16.msra.mxu0 0
  %1154 = vmatprep.subr.bf16.mxu0 0
  %1155 = vmatpush1.bf16.msra.mxu0 0
  %1156 = vmatprep.mubr.bf16.mxu0 0
  %1157 = vmatmul.mubr.bf16.gmra.mrb[0].mxu0 %v1122
  %v1158 = vpop.f32.mrb[0].mxu0
  %v1159 = vadd.f32 %v1107, %v1158
  %v1160 = vpop.f32.mrb[0].mxu0
  %v1161 = vpop.f32.mrb[0].mxu0
  %v1162 = vadd.f32 %v1107, %v1161
  %v1163 = vpop.f32.mrb[0].mxu0
  %1164 = vdwg.mxu0
  %v1165 = vpack.c.bf16 %v1162, %v1159
  %1167 = vrot.lane.b32.xlu0 %v1165, 96
  %v1168 = vpop.permute.xlu0 %1167
  %v1170 = vsel %vm179, %v1165, 0
  %v1173 = vsel %vm179, %v1168, 0
  %1175 = vmatprep.subr.bf16.mxu0 0
  %1176 = vmatpush1.bf16.xpose.msra.mxu0 %v1173
  %1177 = vmatprep.subr.bf16.mxu0 0
  %1178 = vmatpush1.bf16.xpose.msra.mxu0 0
  %1179 = vmatprep.subr.bf16.mxu0 0
  %1180 = vmatpush1.bf16.xpose.msra.mxu0 0
  %1181 = vmatprep.subr.bf16.mxu0 0
  %1182 = vmatpush1.bf16.xpose.msra.mxu0 0
  %1183 = vmatprep.subr.bf16.mxu0 0
  %1184 = vmatpush1.bf16.xpose.msra.mxu0 0
  %1185 = vmatprep.subr.bf16.mxu0 0
  %1186 = vmatpush1.bf16.xpose.msra.mxu0 0
  %1187 = vmatprep.subr.bf16.mxu0 0
  %1188 = vmatpush1.bf16.xpose.msra.mxu0 0
  %1189 = vmatprep.subr.bf16.mxu0 0
  %1190 = vmatpush1.bf16.xpose.msra.mxu0 0
  %1191 = vmatprep.subr.bf16.mxu0 0
  %1192 = vmatpush1.bf16.xpose.msra.mxu0 0
  %1193 = vmatprep.subr.bf16.mxu0 0
  %1194 = vmatpush1.bf16.xpose.msra.mxu0 0
  %1195 = vmatprep.subr.bf16.mxu0 0
  %1196 = vmatpush1.bf16.xpose.msra.mxu0 0
  %1197 = vmatprep.subr.bf16.mxu0 0
  %1198 = vmatpush1.bf16.xpose.msra.mxu0 0
  %1199 = vmatprep.subr.bf16.mxu0 0
  %1200 = vmatpush1.bf16.xpose.msra.mxu0 0
  %1201 = vmatprep.subr.bf16.mxu0 0
  %1202 = vmatpush1.bf16.xpose.msra.mxu0 0
  %1203 = vmatprep.subr.bf16.mxu0 0
  %1204 = vmatpush1.bf16.xpose.msra.mxu0 0
  %1205 = vmatprep.subr.bf16.mxu0 0
  %1206 = vmatpush1.bf16.xpose.msra.mxu0 0
  %1207 = vmatprep.mubr.bf16.mxu0 0
  %1208 = vmatmul.mubr.bf16.gmra.mrb[0].mxu0 %v1170
  %v1209 = vpop.f32.mrb[0].mxu0
  %v1210 = vadd.f32 %v63, %v1209
  %v1211 = vpop.f32.mrb[0].mxu0
  %v1212 = vpop.f32.mrb[0].mxu0
  %v1213 = vadd.f32 %v64, %v1212
  %v1214 = vpop.f32.mrb[0].mxu0
  %1215 = vdwg.mxu0
  %v1216 = vsel %vm227, %v1210, -inf
  %1217 = vmax.xlane.f32.xlu0 %v1216
  %v1218 = vpop.xlane.xlu0 %1217
  %v1219 = vsel %vm231, %v1213, -inf
  %1220 = vmax.xlane.f32.xlu0 %v1219
  %v1221 = vpop.xlane.xlu0 %1220
  %v1222 = vsub.f32 %v1210, %v1218
  %v1223 = vsub.f32 %v1213, %v1221
  %v1224 = vmul.f32 %v1222, 1.442695
  %v1225 = vpow.pop %v1224
  %v1226 = vmul.f32 %v1223, 1.442695
  %v1227 = vpow.pop %v1226
  %v1228 = vsel %vm227, %v1225, 0.0
  %1229 = vadd.xlane.f32.xlu0 %v1228
  %v1230 = vpop.xlane.xlu0 %1229
  %v1231 = vsel %vm231, %v1227, 0.0
  %1232 = vadd.xlane.f32.xlu0 %v1231
  %v1233 = vpop.xlane.xlu0 %1232
  %v1234 = vrcp.pop %v1230
  %v1235 = vrcp.pop %v1233
  %v1236 = vmul.f32 %v1225, %v1234
  %v1237 = vmul.f32 %v1227, %v1235
  %v1238 = vpack.c.bf16 %v1237, %v1236
  %1239 = vrot.lane.b32.xlu0 %v1165, 64
  %v1240 = vpop.permute.xlu0 %1239
  %v1242 = vsel %vm227, %v1238, 0
  %v1245 = vsel %vm257, %v1240, 0
  %1247 = vmatprep.subr.bf16.mxu0 0
  %1248 = vmatpush1.bf16.msra.mxu0 %v1245
  %1249 = vmatprep.subr.bf16.mxu0 0
  %1250 = vmatpush1.bf16.msra.mxu0 0
  %1251 = vmatprep.subr.bf16.mxu0 0
  %1252 = vmatpush1.bf16.msra.mxu0 0
  %1253 = vmatprep.subr.bf16.mxu0 0
  %1254 = vmatpush1.bf16.msra.mxu0 0
  %1255 = vmatprep.subr.bf16.mxu0 0
  %1256 = vmatpush1.bf16.msra.mxu0 0
  %1257 = vmatprep.subr.bf16.mxu0 0
  %1258 = vmatpush1.bf16.msra.mxu0 0
  %1259 = vmatprep.subr.bf16.mxu0 0
  %1260 = vmatpush1.bf16.msra.mxu0 0
  %1261 = vmatprep.subr.bf16.mxu0 0
  %1262 = vmatpush1.bf16.msra.mxu0 0
  %1263 = vmatprep.subr.bf16.mxu0 0
  %1264 = vmatpush1.bf16.msra.mxu0 0
  %1265 = vmatprep.subr.bf16.mxu0 0
  %1266 = vmatpush1.bf16.msra.mxu0 0
  %1267 = vmatprep.subr.bf16.mxu0 0
  %1268 = vmatpush1.bf16.msra.mxu0 0
  %1269 = vmatprep.subr.bf16.mxu0 0
  %1270 = vmatpush1.bf16.msra.mxu0 0
  %1271 = vmatprep.subr.bf16.mxu0 0
  %1272 = vmatpush1.bf16.msra.mxu0 0
  %1273 = vmatprep.subr.bf16.mxu0 0
  %1274 = vmatpush1.bf16.msra.mxu0 0
  %1275 = vmatprep.subr.bf16.mxu0 0
  %1276 = vmatpush1.bf16.msra.mxu0 0
  %1277 = vmatprep.subr.bf16.mxu0 0
  %1278 = vmatpush1.bf16.msra.mxu0 0
  %1279 = vmatprep.mubr.bf16.mxu0 0
  %1280 = vmatmul.mubr.bf16.gmra.mrb[0].mxu0 %v1242
  %v1281 = vpop.f32.mrb[0].mxu0
  %v1282 = vadd.f32 0.0, %v1281
  %v1283 = vpop.f32.mrb[0].mxu0
  %v1284 = vpop.f32.mrb[0].mxu0
  %v1285 = vadd.f32 0.0, %v1284
  %v1286 = vpop.f32.mrb[0].mxu0
  %1287 = vdwg.mxu0
  %1288 = vst.msk [vmem:[#allocation2] sm:$0xff] %vm179, %v1282
  %1289 = vst.msk [vmem:[#allocation2 + $0x8] sm:$0x3] %vm303, %v1285
  %1290 = vrot.lane.b32.xlu0 %v1165, 120
  %v1291 = vpop.permute.xlu0 %1290
  %1292 = vrot.lane.b32.xlu0 %v1165, 88
  %v1293 = vpop.permute.xlu0 %1292
  %v1295 = vsel %vm179, %v1291, 0
  %v1298 = vsel %vm179, %v1293, 0
  %1300 = vmatprep.subr.bf16.mxu0 0
  %1301 = vmatpush1.bf16.xpose.msra.mxu0 %v1298
  %1302 = vmatprep.subr.bf16.mxu0 0
  %1303 = vmatpush1.bf16.xpose.msra.mxu0 0
  %1304 = vmatprep.subr.bf16.mxu0 0
  %1305 = vmatpush1.bf16.xpose.msra.mxu0 0
  %1306 = vmatprep.subr.bf16.mxu0 0
  %1307 = vmatpush1.bf16.xpose.msra.mxu0 0
  %1308 = vmatprep.subr.bf16.mxu0 0
  %1309 = vmatpush1.bf16.xpose.msra.mxu0 0
  %1310 = vmatprep.subr.bf16.mxu0 0
  %1311 = vmatpush1.bf16.xpose.msra.mxu0 0
  %1312 = vmatprep.subr.bf16.mxu0 0
  %1313 = vmatpush1.bf16.xpose.msra.mxu0 0
  %1314 = vmatprep.subr.bf16.mxu0 0
  %1315 = vmatpush1.bf16.xpose.msra.mxu0 0
  %1316 = vmatprep.subr.bf16.mxu0 0
  %1317 = vmatpush1.bf16.xpose.msra.mxu0 0
  %1318 = vmatprep.subr.bf16.mxu0 0
  %1319 = vmatpush1.bf16.xpose.msra.mxu0 0
  %1320 = vmatprep.subr.bf16.mxu0 0
  %1321 = vmatpush1.bf16.xpose.msra.mxu0 0
  %1322 = vmatprep.subr.bf16.mxu0 0
  %1323 = vmatpush1.bf16.xpose.msra.mxu0 0
  %1324 = vmatprep.subr.bf16.mxu0 0
  %1325 = vmatpush1.bf16.xpose.msra.mxu0 0
  %1326 = vmatprep.subr.bf16.mxu0 0
  %1327 = vmatpush1.bf16.xpose.msra.mxu0 0
  %1328 = vmatprep.subr.bf16.mxu0 0
  %1329 = vmatpush1.bf16.xpose.msra.mxu0 0
  %1330 = vmatprep.subr.bf16.mxu0 0
  %1331 = vmatpush1.bf16.xpose.msra.mxu0 0
  %1332 = vmatprep.mubr.bf16.mxu0 0
  %1333 = vmatmul.mubr.bf16.gmra.mrb[0].mxu0 %v1295
  %v1334 = vpop.f32.mrb[0].mxu0
  %v1335 = vadd.f32 %v63, %v1334
  %v1336 = vpop.f32.mrb[0].mxu0
  %v1337 = vpop.f32.mrb[0].mxu0
  %v1338 = vadd.f32 %v64, %v1337
  %v1339 = vpop.f32.mrb[0].mxu0
  %1340 = vdwg.mxu0
  %v1341 = vsel %vm227, %v1335, -inf
  %1342 = vmax.xlane.f32.xlu0 %v1341
  %v1343 = vpop.xlane.xlu0 %1342
  %v1344 = vsel %vm231, %v1338, -inf
  %1345 = vmax.xlane.f32.xlu0 %v1344
  %v1346 = vpop.xlane.xlu0 %1345
  %v1347 = vsub.f32 %v1335, %v1343
  %v1348 = vsub.f32 %v1338, %v1346
  %v1349 = vmul.f32 %v1347, 1.442695
  %v1350 = vpow.pop %v1349
  %v1351 = vmul.f32 %v1348, 1.442695
  %v1352 = vpow.pop %v1351
  %v1353 = vsel %vm227, %v1350, 0.0
  %1354 = vadd.xlane.f32.xlu0 %v1353
  %v1355 = vpop.xlane.xlu0 %1354
  %v1356 = vsel %vm231, %v1352, 0.0
  %1357 = vadd.xlane.f32.xlu0 %v1356
  %v1358 = vpop.xlane.xlu0 %1357
  %v1359 = vrcp.pop %v1355
  %v1360 = vrcp.pop %v1358
  %v1361 = vmul.f32 %v1350, %v1359
  %v1362 = vmul.f32 %v1352, %v1360
  %v1363 = vpack.c.bf16 %v1362, %v1361
  %1364 = vrot.lane.b32.xlu0 %v1165, 56
  %v1365 = vpop.permute.xlu0 %1364
  %v1367 = vsel %vm227, %v1363, 0
  %v1370 = vsel %vm257, %v1365, 0
  %1372 = vmatprep.subr.bf16.mxu0 0
  %1373 = vmatpush1.bf16.msra.mxu0 %v1370
  %1374 = vmatprep.subr.bf16.mxu0 0
  %1375 = vmatpush1.bf16.msra.mxu0 0
  %1376 = vmatprep.subr.bf16.mxu0 0
  %1377 = vmatpush1.bf16.msra.mxu0 0
  %1378 = vmatprep.subr.bf16.mxu0 0
  %1379 = vmatpush1.bf16.msra.mxu0 0
  %1380 = vmatprep.subr.bf16.mxu0 0
  %1381 = vmatpush1.bf16.msra.mxu0 0
  %1382 = vmatprep.subr.bf16.mxu0 0
  %1383 = vmatpush1.bf16.msra.mxu0 0
  %1384 = vmatprep.subr.bf16.mxu0 0
  %1385 = vmatpush1.bf16.msra.mxu0 0
  %1386 = vmatprep.subr.bf16.mxu0 0
  %1387 = vmatpush1.bf16.msra.mxu0 0
  %1388 = vmatprep.subr.bf16.mxu0 0
  %1389 = vmatpush1.bf16.msra.mxu0 0
  %1390 = vmatprep.subr.bf16.mxu0 0
  %1391 = vmatpush1.bf16.msra.mxu0 0
  %1392 = vmatprep.subr.bf16.mxu0 0
  %1393 = vmatpush1.bf16.msra.mxu0 0
  %1394 = vmatprep.subr.bf16.mxu0 0
  %1395 = vmatpush1.bf16.msra.mxu0 0
  %1396 = vmatprep.subr.bf16.mxu0 0
  %1397 = vmatpush1.bf16.msra.mxu0 0
  %1398 = vmatprep.subr.bf16.mxu0 0
  %1399 = vmatpush1.bf16.msra.mxu0 0
  %1400 = vmatprep.subr.bf16.mxu0 0
  %1401 = vmatpush1.bf16.msra.mxu0 0
  %1402 = vmatprep.subr.bf16.mxu0 0
  %1403 = vmatpush1.bf16.msra.mxu0 0
  %1404 = vmatprep.mubr.bf16.mxu0 0
  %1405 = vmatmul.mubr.bf16.gmra.mrb[0].mxu0 %v1367
  %v1406 = vpop.f32.mrb[0].mxu0
  %v1407 = vadd.f32 0.0, %v1406
  %v1408 = vpop.f32.mrb[0].mxu0
  %v1409 = vpop.f32.mrb[0].mxu0
  %v1410 = vadd.f32 0.0, %v1409
  %v1411 = vpop.f32.mrb[0].mxu0
  %1412 = vdwg.mxu0
  %1415 = vrot.lane.b32.xlu0 %v1407, 8
  %v1416 = vpop.permute.xlu0 %1415
  %1417 = vrot.lane.b32.xlu0 %v1410, 8
  %v1418 = vpop.permute.xlu0 %1417
  %1421 = vst.msk [vmem:[#allocation2] sm:$0xff] %vm436, %v1416
  %1422 = vst.msk [vmem:[#allocation2 + $0x8] sm:$0x3] %vm438, %v1418
  %1423 = vrot.lane.b32.xlu0 %v1165, 112
  %v1424 = vpop.permute.xlu0 %1423
  %1425 = vrot.lane.b32.xlu0 %v1165, 80
  %v1426 = vpop.permute.xlu0 %1425
  %v1428 = vsel %vm179, %v1424, 0
  %v1431 = vsel %vm179, %v1426, 0
  %1433 = vmatprep.subr.bf16.mxu0 0
  %1434 = vmatpush1.bf16.xpose.msra.mxu0 %v1431
  %1435 = vmatprep.subr.bf16.mxu0 0
  %1436 = vmatpush1.bf16.xpose.msra.mxu0 0
  %1437 = vmatprep.subr.bf16.mxu0 0
  %1438 = vmatpush1.bf16.xpose.msra.mxu0 0
  %1439 = vmatprep.subr.bf16.mxu0 0
  %1440 = vmatpush1.bf16.xpose.msra.mxu0 0
  %1441 = vmatprep.subr.bf16.mxu0 0
  %1442 = vmatpush1.bf16.xpose.msra.mxu0 0
  %1443 = vmatprep.subr.bf16.mxu0 0
  %1444 = vmatpush1.bf16.xpose.msra.mxu0 0
  %1445 = vmatprep.subr.bf16.mxu0 0
  %1446 = vmatpush1.bf16.xpose.msra.mxu0 0
  %1447 = vmatprep.subr.bf16.mxu0 0
  %1448 = vmatpush1.bf16.xpose.msra.mxu0 0
  %1449 = vmatprep.subr.bf16.mxu0 0
  %1450 = vmatpush1.bf16.xpose.msra.mxu0 0
  %1451 = vmatprep.subr.bf16.mxu0 0
  %1452 = vmatpush1.bf16.xpose.msra.mxu0 0
  %1453 = vmatprep.subr.bf16.mxu0 0
  %1454 = vmatpush1.bf16.xpose.msra.mxu0 0
  %1455 = vmatprep.subr.bf16.mxu0 0
  %1456 = vmatpush1.bf16.xpose.msra.mxu0 0
  %1457 = vmatprep.subr.bf16.mxu0 0
  %1458 = vmatpush1.bf16.xpose.msra.mxu0 0
  %1459 = vmatprep.subr.bf16.mxu0 0
  %1460 = vmatpush1.bf16.xpose.msra.mxu0 0
  %1461 = vmatprep.subr.bf16.mxu0 0
  %1462 = vmatpush1.bf16.xpose.msra.mxu0 0
  %1463 = vmatprep.subr.bf16.mxu0 0
  %1464 = vmatpush1.bf16.xpose.msra.mxu0 0
  %1465 = vmatprep.mubr.bf16.mxu0 0
  %1466 = vmatmul.mubr.bf16.gmra.mrb[0].mxu0 %v1428
  %v1467 = vpop.f32.mrb[0].mxu0
  %v1468 = vadd.f32 %v63, %v1467
  %v1469 = vpop.f32.mrb[0].mxu0
  %v1470 = vpop.f32.mrb[0].mxu0
  %v1471 = vadd.f32 %v64, %v1470
  %v1472 = vpop.f32.mrb[0].mxu0
  %1473 = vdwg.mxu0
  %v1474 = vsel %vm227, %v1468, -inf
  %1475 = vmax.xlane.f32.xlu0 %v1474
  %v1476 = vpop.xlane.xlu0 %1475
  %v1477 = vsel %vm231, %v1471, -inf
  %1478 = vmax.xlane.f32.xlu0 %v1477
  %v1479 = vpop.xlane.xlu0 %1478
  %v1480 = vsub.f32 %v1468, %v1476
  %v1481 = vsub.f32 %v1471, %v1479
  %v1482 = vmul.f32 %v1480, 1.442695
  %v1483 = vpow.pop %v1482
  %v1484 = vmul.f32 %v1481, 1.442695
  %v1485 = vpow.pop %v1484
  %v1486 = vsel %vm227, %v1483, 0.0
  %1487 = vadd.xlane.f32.xlu0 %v1486
  %v1488 = vpop.xlane.xlu0 %1487
  %v1489 = vsel %vm231, %v1485, 0.0
  %1490 = vadd.xlane.f32.xlu0 %v1489
  %v1491 = vpop.xlane.xlu0 %1490
  %v1492 = vrcp.pop %v1488
  %v1493 = vrcp.pop %v1491
  %v1494 = vmul.f32 %v1483, %v1492
  %v1495 = vmul.f32 %v1485, %v1493
  %v1496 = vpack.c.bf16 %v1495, %v1494
  %1497 = vrot.lane.b32.xlu0 %v1165, 48
  %v1498 = vpop.permute.xlu0 %1497
  %v1500 = vsel %vm227, %v1496, 0
  %v1503 = vsel %vm257, %v1498, 0
  %1505 = vmatprep.subr.bf16.mxu0 0
  %1506 = vmatpush1.bf16.msra.mxu0 %v1503
  %1507 = vmatprep.subr.bf16.mxu0 0
  %1508 = vmatpush1.bf16.msra.mxu0 0
  %1509 = vmatprep.subr.bf16.mxu0 0
  %1510 = vmatpush1.bf16.msra.mxu0 0
  %1511 = vmatprep.subr.bf16.mxu0 0
  %1512 = vmatpush1.bf16.msra.mxu0 0
  %1513 = vmatprep.subr.bf16.mxu0 0
  %1514 = vmatpush1.bf16.msra.mxu0 0
  %1515 = vmatprep.subr.bf16.mxu0 0
  %1516 = vmatpush1.bf16.msra.mxu0 0
  %1517 = vmatprep.subr.bf16.mxu0 0
  %1518 = vmatpush1.bf16.msra.mxu0 0
  %1519 = vmatprep.subr.bf16.mxu0 0
  %1520 = vmatpush1.bf16.msra.mxu0 0
  %1521 = vmatprep.subr.bf16.mxu0 0
  %1522 = vmatpush1.bf16.msra.mxu0 0
  %1523 = vmatprep.subr.bf16.mxu0 0
  %1524 = vmatpush1.bf16.msra.mxu0 0
  %1525 = vmatprep.subr.bf16.mxu0 0
  %1526 = vmatpush1.bf16.msra.mxu0 0
  %1527 = vmatprep.subr.bf16.mxu0 0
  %1528 = vmatpush1.bf16.msra.mxu0 0
  %1529 = vmatprep.subr.bf16.mxu0 0
  %1530 = vmatpush1.bf16.msra.mxu0 0
  %1531 = vmatprep.subr.bf16.mxu0 0
  %1532 = vmatpush1.bf16.msra.mxu0 0
  %1533 = vmatprep.subr.bf16.mxu0 0
  %1534 = vmatpush1.bf16.msra.mxu0 0
  %1535 = vmatprep.subr.bf16.mxu0 0
  %1536 = vmatpush1.bf16.msra.mxu0 0
  %1537 = vmatprep.mubr.bf16.mxu0 0
  %1538 = vmatmul.mubr.bf16.gmra.mrb[0].mxu0 %v1500
  %v1539 = vpop.f32.mrb[0].mxu0
  %v1540 = vadd.f32 0.0, %v1539
  %v1541 = vpop.f32.mrb[0].mxu0
  %v1542 = vpop.f32.mrb[0].mxu0
  %v1543 = vadd.f32 0.0, %v1542
  %v1544 = vpop.f32.mrb[0].mxu0
  %1545 = vdwg.mxu0
  %1548 = vrot.lane.b32.xlu0 %v1540, 16
  %v1549 = vpop.permute.xlu0 %1548
  %1550 = vrot.lane.b32.xlu0 %v1543, 16
  %v1551 = vpop.permute.xlu0 %1550
  %1554 = vst.msk [vmem:[#allocation2] sm:$0xff] %vm571, %v1549
  %1555 = vst.msk [vmem:[#allocation2 + $0x8] sm:$0x3] %vm573, %v1551
  %1556 = vrot.lane.b32.xlu0 %v1165, 104
  %v1557 = vpop.permute.xlu0 %1556
  %1558 = vrot.lane.b32.xlu0 %v1165, 72
  %v1559 = vpop.permute.xlu0 %1558
  %v1561 = vsel %vm179, %v1557, 0
  %v1564 = vsel %vm179, %v1559, 0
  %1566 = vmatprep.subr.bf16.mxu0 0
  %1567 = vmatpush1.bf16.xpose.msra.mxu0 %v1564
  %1568 = vmatprep.subr.bf16.mxu0 0
  %1569 = vmatpush1.bf16.xpose.msra.mxu0 0
  %1570 = vmatprep.subr.bf16.mxu0 0
  %1571 = vmatpush1.bf16.xpose.msra.mxu0 0
  %1572 = vmatprep.subr.bf16.mxu0 0
  %1573 = vmatpush1.bf16.xpose.msra.mxu0 0
  %1574 = vmatprep.subr.bf16.mxu0 0
  %1575 = vmatpush1.bf16.xpose.msra.mxu0 0
  %1576 = vmatprep.subr.bf16.mxu0 0
  %1577 = vmatpush1.bf16.xpose.msra.mxu0 0
  %1578 = vmatprep.subr.bf16.mxu0 0
  %1579 = vmatpush1.bf16.xpose.msra.mxu0 0
  %1580 = vmatprep.subr.bf16.mxu0 0
  %1581 = vmatpush1.bf16.xpose.msra.mxu0 0
  %1582 = vmatprep.subr.bf16.mxu0 0
  %1583 = vmatpush1.bf16.xpose.msra.mxu0 0
  %1584 = vmatprep.subr.bf16.mxu0 0
  %1585 = vmatpush1.bf16.xpose.msra.mxu0 0
  %1586 = vmatprep.subr.bf16.mxu0 0
  %1587 = vmatpush1.bf16.xpose.msra.mxu0 0
  %1588 = vmatprep.subr.bf16.mxu0 0
  %1589 = vmatpush1.bf16.xpose.msra.mxu0 0
  %1590 = vmatprep.subr.bf16.mxu0 0
  %1591 = vmatpush1.bf16.xpose.msra.mxu0 0
  %1592 = vmatprep.subr.bf16.mxu0 0
  %1593 = vmatpush1.bf16.xpose.msra.mxu0 0
  %1594 = vmatprep.subr.bf16.mxu0 0
  %1595 = vmatpush1.bf16.xpose.msra.mxu0 0
  %1596 = vmatprep.subr.bf16.mxu0 0
  %1597 = vmatpush1.bf16.xpose.msra.mxu0 0
  %1598 = vmatprep.mubr.bf16.mxu0 0
  %1599 = vmatmul.mubr.bf16.gmra.mrb[0].mxu0 %v1561
  %v1600 = vpop.f32.mrb[0].mxu0
  %v1601 = vadd.f32 %v63, %v1600
  %v1602 = vpop.f32.mrb[0].mxu0
  %v1603 = vpop.f32.mrb[0].mxu0
  %v1604 = vadd.f32 %v64, %v1603
  %v1605 = vpop.f32.mrb[0].mxu0
  %1606 = vdwg.mxu0
  %v1607 = vsel %vm227, %v1601, -inf
  %1608 = vmax.xlane.f32.xlu0 %v1607
  %v1609 = vpop.xlane.xlu0 %1608
  %v1610 = vsel %vm231, %v1604, -inf
  %1611 = vmax.xlane.f32.xlu0 %v1610
  %v1612 = vpop.xlane.xlu0 %1611
  %v1613 = vsub.f32 %v1601, %v1609
  %v1614 = vsub.f32 %v1604, %v1612
  %v1615 = vmul.f32 %v1613, 1.442695
  %v1616 = vpow.pop %v1615
  %v1617 = vmul.f32 %v1614, 1.442695
  %v1618 = vpow.pop %v1617
  %v1619 = vsel %vm227, %v1616, 0.0
  %1620 = vadd.xlane.f32.xlu0 %v1619
  %v1621 = vpop.xlane.xlu0 %1620
  %v1622 = vsel %vm231, %v1618, 0.0
  %1623 = vadd.xlane.f32.xlu0 %v1622
  %v1624 = vpop.xlane.xlu0 %1623
  %v1625 = vrcp.pop %v1621
  %v1626 = vrcp.pop %v1624
  %v1627 = vmul.f32 %v1616, %v1625
  %v1628 = vmul.f32 %v1618, %v1626
  %v1629 = vpack.c.bf16 %v1628, %v1627
  %1630 = vrot.lane.b32.xlu0 %v1165, 40
  %v1631 = vpop.permute.xlu0 %1630
  %v1633 = vsel %vm227, %v1629, 0
  %v1636 = vsel %vm257, %v1631, 0
  %1638 = vmatprep.subr.bf16.mxu0 0
  %1639 = vmatpush1.bf16.msra.mxu0 %v1636
  %1640 = vmatprep.subr.bf16.mxu0 0
  %1641 = vmatpush1.bf16.msra.mxu0 0
  %1642 = vmatprep.subr.bf16.mxu0 0
  %1643 = vmatpush1.bf16.msra.mxu0 0
  %1644 = vmatprep.subr.bf16.mxu0 0
  %1645 = vmatpush1.bf16.msra.mxu0 0
  %1646 = vmatprep.subr.bf16.mxu0 0
  %1647 = vmatpush1.bf16.msra.mxu0 0
  %1648 = vmatprep.subr.bf16.mxu0 0
  %1649 = vmatpush1.bf16.msra.mxu0 0
  %1650 = vmatprep.subr.bf16.mxu0 0
  %1651 = vmatpush1.bf16.msra.mxu0 0
  %1652 = vmatprep.subr.bf16.mxu0 0
  %1653 = vmatpush1.bf16.msra.mxu0 0
  %1654 = vmatprep.subr.bf16.mxu0 0
  %1655 = vmatpush1.bf16.msra.mxu0 0
  %1656 = vmatprep.subr.bf16.mxu0 0
  %1657 = vmatpush1.bf16.msra.mxu0 0
  %1658 = vmatprep.subr.bf16.mxu0 0
  %1659 = vmatpush1.bf16.msra.mxu0 0
  %1660 = vmatprep.subr.bf16.mxu0 0
  %1661 = vmatpush1.bf16.msra.mxu0 0
  %1662 = vmatprep.subr.bf16.mxu0 0
  %1663 = vmatpush1.bf16.msra.mxu0 0
  %1664 = vmatprep.subr.bf16.mxu0 0
  %1665 = vmatpush1.bf16.msra.mxu0 0
  %1666 = vmatprep.subr.bf16.mxu0 0
  %1667 = vmatpush1.bf16.msra.mxu0 0
  %1668 = vmatprep.subr.bf16.mxu0 0
  %1669 = vmatpush1.bf16.msra.mxu0 0
  %1670 = vmatprep.mubr.bf16.mxu0 0
  %1671 = vmatmul.mubr.bf16.gmra.mrb[0].mxu0 %v1633
  %v1672 = vpop.f32.mrb[0].mxu0
  %v1673 = vadd.f32 0.0, %v1672
  %v1674 = vpop.f32.mrb[0].mxu0
  %v1675 = vpop.f32.mrb[0].mxu0
  %v1676 = vadd.f32 0.0, %v1675
  %v1677 = vpop.f32.mrb[0].mxu0
  %1678 = vdwg.mxu0
  %1681 = vrot.lane.b32.xlu0 %v1673, 24
  %v1682 = vpop.permute.xlu0 %1681
  %1683 = vrot.lane.b32.xlu0 %v1676, 24
  %v1684 = vpop.permute.xlu0 %1683
  %1687 = vst.msk [vmem:[#allocation2] sm:$0xff] %vm706, %v1682
  %1688 = vst.msk [vmem:[#allocation2 + $0x8] sm:$0x3] %vm708, %v1684
  %v1689 = vld [vmem:[#allocation2] sm:$0xff]
  %v1690 = vld [vmem:[#allocation2 + $0x8] sm:$0x3]
  %v1691 = vpack.c.bf16 %v1690, %v1689
  %s1692 = scalar_lea.vmem %s3, 16
  %v1693 = vld [vmem:[%s1692] sm:$0xf]
  %v1694 = vld [vmem:[%s1692 + $0x4] sm:$0xf]
  %v1695 = vld [vmem:[%s1692 + $0x8] sm:$0xf]
  %v1696 = vld [vmem:[%s1692 + $0xc] sm:$0xf]
  %v1697 = vlaneseq
  %v1698 = vshrl.u32 %v1697, 7
  %v1699 = vsub.s32 2, %v1698
  %v1700 = vrot.slane %v1056, %v1699
  %v1705 = vunpack.c.l.b16 %v1693
  %v1706 = vunpack.c.l.b16 %v1694
  %v1707 = vunpack.c.l.b16 %v1695
  %v1708 = vunpack.c.l.b16 %v1696
  %v1709 = vpack.c.b16 %v1706, %v1705
  %v1710 = vpack.c.b16 %v1708, %v1707
  %v1714 = vsel %vm66, %v1691, 0
  %1716 = vmatprep.subr.bf16.mxu0 0
  %1717 = vmatpush1.bf16.msra.mxu0 %v1709
  %1718 = vmatprep.subr.bf16.mxu0 0
  %1719 = vmatpush1.bf16.msra.mxu0 %v1710
  %1720 = vmatprep.subr.bf16.mxu0 0
  %1721 = vmatpush1.bf16.msra.mxu0 0
  %1722 = vmatprep.subr.bf16.mxu0 0
  %1723 = vmatpush1.bf16.msra.mxu0 0
  %1724 = vmatprep.subr.bf16.mxu0 0
  %1725 = vmatpush1.bf16.msra.mxu0 0
  %1726 = vmatprep.subr.bf16.mxu0 0
  %1727 = vmatpush1.bf16.msra.mxu0 0
  %1728 = vmatprep.subr.bf16.mxu0 0
  %1729 = vmatpush1.bf16.msra.mxu0 0
  %1730 = vmatprep.subr.bf16.mxu0 0
  %1731 = vmatpush1.bf16.msra.mxu0 0
  %1732 = vmatprep.subr.bf16.mxu0 0
  %1733 = vmatpush1.bf16.msra.mxu0 0
  %1734 = vmatprep.subr.bf16.mxu0 0
  %1735 = vmatpush1.bf16.msra.mxu0 0
  %1736 = vmatprep.subr.bf16.mxu0 0
  %1737 = vmatpush1.bf16.msra.mxu0 0
  %1738 = vmatprep.subr.bf16.mxu0 0
  %1739 = vmatpush1.bf16.msra.mxu0 0
  %1740 = vmatprep.subr.bf16.mxu0 0
  %1741 = vmatpush1.bf16.msra.mxu0 0
  %1742 = vmatprep.subr.bf16.mxu0 0
  %1743 = vmatpush1.bf16.msra.mxu0 0
  %1744 = vmatprep.subr.bf16.mxu0 0
  %1745 = vmatpush1.bf16.msra.mxu0 0
  %1746 = vmatprep.subr.bf16.mxu0 0
  %1747 = vmatpush1.bf16.msra.mxu0 0
  %1748 = vmatprep.mubr.bf16.mxu0 0
  %1749 = vmatmul.mubr.bf16.gmra.mrb[0].mxu0 %v1714
  %v1750 = vpop.f32.mrb[0].mxu0
  %v1751 = vadd.f32 %v1700, %v1750
  %v1752 = vpop.f32.mrb[0].mxu0
  %v1753 = vpop.f32.mrb[0].mxu0
  %v1754 = vadd.f32 %v1700, %v1753
  %v1755 = vpop.f32.mrb[0].mxu0
  %1756 = vdwg.mxu0
  %v1757 = vadd.f32 %v1051, %v1751
  %v1758 = vadd.f32 %v1052, %v1754
  %v1759 = vsel %vm66, %v1757, 0.0
  %1760 = vadd.xlane.f32.xlu0 %v1759
  %v1761 = vpop.xlane.xlu0 %1760
  %v1762 = vsel %vm70, %v1758, 0.0
  %1763 = vadd.xlane.f32.xlu0 %v1762
  %v1764 = vpop.xlane.xlu0 %1763
  %v1765 = vmul.f32 %v1761, %v74
  %v1766 = vmul.f32 %v1764, %v74
  %v1767 = vsub.f32 %v1757, %v1765
  %v1768 = vsub.f32 %v1758, %v1766
  %v1769 = vmul.f32 %v1767, %v1767
  %v1770 = vmul.f32 %v1768, %v1768
  %v1771 = vsel %vm66, %v1769, 0.0
  %1772 = vadd.xlane.f32.xlu0 %v1771
  %v1773 = vpop.xlane.xlu0 %1772
  %v1774 = vsel %vm70, %v1770, 0.0
  %1775 = vadd.xlane.f32.xlu0 %v1774
  %v1776 = vpop.xlane.xlu0 %1775
  %v1777 = vmul.f32 %v1773, %v74
  %v1778 = vmul.f32 %v1776, %v74
  %v1779 = vadd.f32 %v1777, 1e-06
  %v1780 = vadd.f32 %v1778, 1e-06
  %v1781 = vrsqrt.pop %v1779
  %v1782 = vrsqrt.pop %v1780
  %v1783 = vmul.f32 %v1767, %v1781
  %v1784 = vmul.f32 %v1768, %v1782
  %v1785 = vlaneseq
  %v1786 = vshrl.u32 %v1785, 7
  %v1787 = vsub.s32 3, %v1786
  %v1788 = vrot.slane %v1056, %v1787
  %v1789 = vmul.f32 %v1783, %v1788
  %v1790 = vmul.f32 %v1784, %v1788
  %v1791 = vlaneseq
  %v1792 = vshrl.u32 %v1791, 7
  %v1793 = vsub.s32 4, %v1792
  %v1794 = vrot.slane %v1056, %v1793
  %v1795 = vadd.f32 %v1789, %v1794
  %v1796 = vadd.f32 %v1790, %v1794
  %v1797 = vpack.c.bf16 %v1796, %v1795
  %s1798 = scalar_lea.vmem %s4, 16
  %v1799 = vld [vmem:[%s1798] sm:$0xf]
  %v1800 = vld [vmem:[%s1798 + $0x4] sm:$0xf]
  %v1801 = vld [vmem:[%s1798 + $0x8] sm:$0xf]
  %v1802 = vld [vmem:[%s1798 + $0xc] sm:$0xf]
  %s1803 = scalar_lea.vmem %s5, 1
  %v1804 = vld [vmem:[%s1803] sm:$0x1]
  %v1806 = vlaneseq
  %v1807 = vshrl.u32 %v1806, 7
  %v1808 = vsub.s32 0, %v1807
  %v1809 = vrot.slane %v1804, %v1808
  %v1815 = vunpack.c.l.b16 %v1799
  %v1816 = vunpack.c.l.b16 %v1800
  %v1817 = vunpack.c.l.b16 %v1801
  %v1818 = vunpack.c.l.b16 %v1802
  %v1819 = vpack.c.b16 %v1816, %v1815
  %v1820 = vpack.c.b16 %v1818, %v1817
  %v1824 = vsel %vm66, %v1797, 0
  %1826 = vmatprep.subr.bf16.mxu0 0
  %1827 = vmatpush1.bf16.msra.mxu0 %v1819
  %1828 = vmatprep.subr.bf16.mxu0 0
  %1829 = vmatpush1.bf16.msra.mxu0 %v1820
  %1830 = vmatprep.subr.bf16.mxu0 0
  %1831 = vmatpush1.bf16.msra.mxu0 0
  %1832 = vmatprep.subr.bf16.mxu0 0
  %1833 = vmatpush1.bf16.msra.mxu0 0
  %1834 = vmatprep.subr.bf16.mxu0 0
  %1835 = vmatpush1.bf16.msra.mxu0 0
  %1836 = vmatprep.subr.bf16.mxu0 0
  %1837 = vmatpush1.bf16.msra.mxu0 0
  %1838 = vmatprep.subr.bf16.mxu0 0
  %1839 = vmatpush1.bf16.msra.mxu0 0
  %1840 = vmatprep.subr.bf16.mxu0 0
  %1841 = vmatpush1.bf16.msra.mxu0 0
  %1842 = vmatprep.subr.bf16.mxu0 0
  %1843 = vmatpush1.bf16.msra.mxu0 0
  %1844 = vmatprep.subr.bf16.mxu0 0
  %1845 = vmatpush1.bf16.msra.mxu0 0
  %1846 = vmatprep.subr.bf16.mxu0 0
  %1847 = vmatpush1.bf16.msra.mxu0 0
  %1848 = vmatprep.subr.bf16.mxu0 0
  %1849 = vmatpush1.bf16.msra.mxu0 0
  %1850 = vmatprep.subr.bf16.mxu0 0
  %1851 = vmatpush1.bf16.msra.mxu0 0
  %1852 = vmatprep.subr.bf16.mxu0 0
  %1853 = vmatpush1.bf16.msra.mxu0 0
  %1854 = vmatprep.subr.bf16.mxu0 0
  %1855 = vmatpush1.bf16.msra.mxu0 0
  %1856 = vmatprep.subr.bf16.mxu0 0
  %1857 = vmatpush1.bf16.msra.mxu0 0
  %1858 = vmatprep.mubr.bf16.mxu0 0
  %1859 = vmatmul.mubr.bf16.gmra.mrb[0].mxu0 %v1824
  %v1860 = vpop.f32.mrb[0].mxu0
  %v1861 = vadd.f32 %v1809, %v1860
  %v1862 = vpop.f32.mrb[0].mxu0
  %v1863 = vpop.f32.mrb[0].mxu0
  %v1864 = vadd.f32 %v1809, %v1863
  %v1865 = vpop.f32.mrb[0].mxu0
  %1866 = vdwg.mxu0
  %v1867 = vmul.f32 %v1861, 0.5
  %v1868 = vmul.f32 %v1864, 0.5
  %v1869 = vmul.f32 %v1861, 0.70710677
  %v1870 = vmul.f32 %v1864, 0.70710677
  %vm1871 = vcmp.ge.f32.partialorder %v1869, 0.0
  %vm1872 = vcmp.ge.f32.partialorder %v1870, 0.0
  %v1873 = vsel %vm1871, 1.0, -1.0
  %v1874 = vsel %vm1872, 1.0, -1.0
  %v1875 = vand.u32 2147483647, %v1869
  %v1876 = vand.u32 2147483647, %v1870
  %v1877 = vmul.f32 %v1875, 0.3275911
  %v1878 = vmul.f32 %v1876, 0.3275911
  %v1879 = vadd.f32 %v1877, 1.0
  %v1880 = vadd.f32 %v1878, 1.0
  %v1881 = vrcp.pop %v1879
  %v1882 = vmul.f32 1.0, %v1881
  %v1883 = vrcp.pop %v1880
  %v1884 = vmul.f32 1.0, %v1883
  %v1885 = vmul.f32 %v1882, 1.0614054
  %v1886 = vmul.f32 %v1884, 1.0614054
  %v1887 = vadd.f32 %v1885, -1.4531521
  %v1888 = vadd.f32 %v1886, -1.4531521
  %v1889 = vmul.f32 %v1887, %v1882
  %v1890 = vmul.f32 %v1888, %v1884
  %v1891 = vadd.f32 %v1889, 1.4214138
  %v1892 = vadd.f32 %v1890, 1.4214138
  %v1893 = vmul.f32 %v1891, %v1882
  %v1894 = vmul.f32 %v1892, %v1884
  %v1895 = vadd.f32 %v1893, -0.28449672
  %v1896 = vadd.f32 %v1894, -0.28449672
  %v1897 = vmul.f32 %v1895, %v1882
  %v1898 = vmul.f32 %v1896, %v1884
  %v1899 = vadd.f32 %v1897, 0.2548296
  %v1900 = vadd.f32 %v1898, 0.2548296
  %v1901 = vmul.f32 %v1899, %v1882
  %v1902 = vmul.f32 %v1900, %v1884
  %v1903 = vsub.f32 0.0, %v1875
  %v1904 = vsub.f32 0.0, %v1876
  %v1905 = vmul.f32 %v1903, %v1875
  %v1906 = vmul.f32 %v1904, %v1876
  %v1907 = vmul.f32 %v1905, 1.442695
  %v1908 = vpow.pop %v1907
  %v1909 = vmul.f32 %v1906, 1.442695
  %v1910 = vpow.pop %v1909
  %v1911 = vmul.f32 %v1901, %v1908
  %v1912 = vmul.f32 %v1902, %v1910
  %v1913 = vsub.f32 1.0, %v1911
  %v1914 = vsub.f32 1.0, %v1912
  %v1915 = vmul.f32 %v1873, %v1913
  %v1916 = vmul.f32 %v1874, %v1914
  %v1917 = vadd.f32 %v1915, 1.0
  %v1918 = vadd.f32 %v1916, 1.0
  %v1919 = vmul.f32 %v1867, %v1917
  %v1920 = vmul.f32 %v1868, %v1918
  %v1921 = vpack.c.bf16 %v1920, %v1919
  %s1922 = scalar_lea.vmem %s6, 64
  %v1923 = vld [vmem:[%s1922] sm:$0xf]
  %v1924 = vld [vmem:[%s1922 + $0x4] sm:$0xf]
  %v1925 = vld [vmem:[%s1922 + $0x8] sm:$0xf]
  %v1926 = vld [vmem:[%s1922 + $0xc] sm:$0xf]
  %v1927 = vld [vmem:[%s1922 + $0x10] sm:$0xf]
  %v1928 = vld [vmem:[%s1922 + $0x14] sm:$0xf]
  %v1929 = vld [vmem:[%s1922 + $0x18] sm:$0xf]
  %v1930 = vld [vmem:[%s1922 + $0x1c] sm:$0xf]
  %v1931 = vld [vmem:[%s1922 + $0x20] sm:$0xf]
  %v1932 = vld [vmem:[%s1922 + $0x24] sm:$0xf]
  %v1933 = vld [vmem:[%s1922 + $0x28] sm:$0xf]
  %v1934 = vld [vmem:[%s1922 + $0x2c] sm:$0xf]
  %v1935 = vld [vmem:[%s1922 + $0x30] sm:$0xf]
  %v1936 = vld [vmem:[%s1922 + $0x34] sm:$0xf]
  %v1937 = vld [vmem:[%s1922 + $0x38] sm:$0xf]
  %v1938 = vld [vmem:[%s1922 + $0x3c] sm:$0xf]
  %v1955 = vunpack.c.l.b16 %v1923
  %v1956 = vunpack.c.l.b16 %v1924
  %v1957 = vunpack.c.l.b16 %v1925
  %v1958 = vunpack.c.l.b16 %v1926
  %v1959 = vunpack.c.l.b16 %v1927
  %v1960 = vunpack.c.l.b16 %v1928
  %v1961 = vunpack.c.l.b16 %v1929
  %v1962 = vunpack.c.l.b16 %v1930
  %v1963 = vunpack.c.l.b16 %v1931
  %v1964 = vunpack.c.l.b16 %v1932
  %v1965 = vunpack.c.l.b16 %v1933
  %v1966 = vunpack.c.l.b16 %v1934
  %v1967 = vunpack.c.l.b16 %v1935
  %v1968 = vunpack.c.l.b16 %v1936
  %v1969 = vunpack.c.l.b16 %v1937
  %v1970 = vunpack.c.l.b16 %v1938
  %v1971 = vpack.c.b16 %v1956, %v1955
  %v1972 = vpack.c.b16 %v1958, %v1957
  %v1973 = vpack.c.b16 %v1960, %v1959
  %v1974 = vpack.c.b16 %v1962, %v1961
  %v1975 = vpack.c.b16 %v1964, %v1963
  %v1976 = vpack.c.b16 %v1966, %v1965
  %v1977 = vpack.c.b16 %v1968, %v1967
  %v1978 = vpack.c.b16 %v1970, %v1969
  %1987 = vmatprep.subr.bf16.mxu0 0
  %1988 = vmatpush1.bf16.msra.mxu0 %v1971
  %1989 = vmatprep.subr.bf16.mxu0 0
  %1990 = vmatpush1.bf16.msra.mxu0 %v1972
  %1991 = vmatprep.subr.bf16.mxu0 0
  %1992 = vmatpush1.bf16.msra.mxu0 %v1973
  %1993 = vmatprep.subr.bf16.mxu0 0
  %1994 = vmatpush1.bf16.msra.mxu0 %v1974
  %1995 = vmatprep.subr.bf16.mxu0 0
  %1996 = vmatpush1.bf16.msra.mxu0 %v1975
  %1997 = vmatprep.subr.bf16.mxu0 0
  %1998 = vmatpush1.bf16.msra.mxu0 %v1976
  %1999 = vmatprep.subr.bf16.mxu0 0
  %2000 = vmatpush1.bf16.msra.mxu0 %v1977
  %2001 = vmatprep.subr.bf16.mxu0 0
  %2002 = vmatpush1.bf16.msra.mxu0 %v1978
  %2003 = vmatprep.subr.bf16.mxu0 0
  %2004 = vmatpush1.bf16.msra.mxu0 0
  %2005 = vmatprep.subr.bf16.mxu0 0
  %2006 = vmatpush1.bf16.msra.mxu0 0
  %2007 = vmatprep.subr.bf16.mxu0 0
  %2008 = vmatpush1.bf16.msra.mxu0 0
  %2009 = vmatprep.subr.bf16.mxu0 0
  %2010 = vmatpush1.bf16.msra.mxu0 0
  %2011 = vmatprep.subr.bf16.mxu0 0
  %2012 = vmatpush1.bf16.msra.mxu0 0
  %2013 = vmatprep.subr.bf16.mxu0 0
  %2014 = vmatpush1.bf16.msra.mxu0 0
  %2015 = vmatprep.subr.bf16.mxu0 0
  %2016 = vmatpush1.bf16.msra.mxu0 0
  %2017 = vmatprep.subr.bf16.mxu0 0
  %2018 = vmatpush1.bf16.msra.mxu0 0
  %2019 = vmatprep.mubr.bf16.mxu0 0
  %2020 = vmatmul.mubr.bf16.gmra.mrb[0].mxu0 %v1921
  %v2021 = vpop.f32.mrb[0].mxu0
  %v2022 = vadd.f32 0.0, %v2021
  %v2023 = vpop.f32.mrb[0].mxu0
  %v2024 = vpop.f32.mrb[0].mxu0
  %v2025 = vadd.f32 0.0, %v2024
  %v2026 = vpop.f32.mrb[0].mxu0
  %2027 = vdwg.mxu0
  %v2028 = vadd.f32 %v1757, %v2022
  %v2029 = vadd.f32 %v1758, %v2025
  %v2030 = vlaneseq
  %v2031 = vshrl.u32 %v2030, 7
  %v2032 = vsub.s32 5, %v2031
  %v2033 = vrot.slane %v1056, %v2032
  %v2034 = vadd.f32 %v2028, %v2033
  %v2035 = vadd.f32 %v2029, %v2033
  %2038 = vrot.lane.b32.xlu0 %v2034, 32
  %v2039 = vpop.permute.xlu0 %2038
  %2040 = vrot.lane.b32.xlu0 %v2035, 32
  %v2041 = vpop.permute.xlu0 %2040
  %vm2044 = vcmask 523520
  %2045 = vst.msk [vmem:[%s8] sm:$0xff] %vm2044, %v2039
  %vm2046 = vcmask 517376
  %2047 = vst.msk [vmem:[%s8 + $0x8] sm:$0x3] %vm2046, %v2041
  %s2048 = scalar_lea.vmem %s7, 16
  %v2049 = vld [vmem:[%s2048] sm:$0x3f]
  %v2050 = vsel %vm66, %v2034, 0.0
  %2051 = vadd.xlane.f32.xlu0 %v2050
  %v2052 = vpop.xlane.xlu0 %2051
  %v2053 = vsel %vm70, %v2035, 0.0
  %2054 = vadd.xlane.f32.xlu0 %v2053
  %v2055 = vpop.xlane.xlu0 %2054
  %v2056 = vmul.f32 %v2052, %v74
  %v2057 = vmul.f32 %v2055, %v74
  %v2058 = vsub.f32 %v2034, %v2056
  %v2059 = vsub.f32 %v2035, %v2057
  %v2060 = vmul.f32 %v2058, %v2058
  %v2061 = vmul.f32 %v2059, %v2059
  %v2062 = vsel %vm66, %v2060, 0.0
  %2063 = vadd.xlane.f32.xlu0 %v2062
  %v2064 = vpop.xlane.xlu0 %2063
  %v2065 = vsel %vm70, %v2061, 0.0
  %2066 = vadd.xlane.f32.xlu0 %v2065
  %v2067 = vpop.xlane.xlu0 %2066
  %v2068 = vmul.f32 %v2064, %v74
  %v2069 = vmul.f32 %v2067, %v74
  %v2070 = vadd.f32 %v2068, 1e-06
  %v2071 = vadd.f32 %v2069, 1e-06
  %v2072 = vrsqrt.pop %v2070
  %v2073 = vrsqrt.pop %v2071
  %v2074 = vmul.f32 %v2058, %v2072
  %v2075 = vmul.f32 %v2059, %v2073
  %v2076 = vlaneseq
  %v2077 = vshrl.u32 %v2076, 7
  %v2078 = vsub.s32 0, %v2077
  %v2079 = vrot.slane %v2049, %v2078
  %v2080 = vmul.f32 %v2074, %v2079
  %v2081 = vmul.f32 %v2075, %v2079
  %v2082 = vlaneseq
  %v2083 = vshrl.u32 %v2082, 7
  %v2084 = vsub.s32 1, %v2083
  %v2085 = vrot.slane %v2049, %v2084
  %v2086 = vadd.f32 %v2080, %v2085
  %v2087 = vadd.f32 %v2081, %v2085
  %v2088 = vpack.c.bf16 %v2087, %v2086
  %s2089 = scalar_lea.vmem %s1, 32
  %v2090 = vld [vmem:[%s2089] sm:$0xf]
  %v2091 = vld [vmem:[%s2089 + $0x4] sm:$0xf]
  %v2092 = vld [vmem:[%s2089 + $0x8] sm:$0xf]
  %v2093 = vld [vmem:[%s2089 + $0xc] sm:$0xf]
  %s2094 = scalar_lea.vmem %s2, 2
  %v2095 = vld [vmem:[%s2094] sm:$0x1]
  %v2097 = vlaneseq
  %v2098 = vshrl.u32 %v2097, 7
  %v2099 = vsub.s32 0, %v2098
  %v2100 = vrot.slane %v2095, %v2099
  %v2106 = vunpack.c.l.b16 %v2090
  %v2107 = vunpack.c.l.b16 %v2091
  %v2108 = vunpack.c.l.b16 %v2092
  %v2109 = vunpack.c.l.b16 %v2093
  %v2110 = vpack.c.b16 %v2107, %v2106
  %v2111 = vpack.c.b16 %v2109, %v2108
  %v2115 = vsel %vm66, %v2088, 0
  %2117 = vmatprep.subr.bf16.mxu0 0
  %2118 = vmatpush1.bf16.msra.mxu0 %v2110
  %2119 = vmatprep.subr.bf16.mxu0 0
  %2120 = vmatpush1.bf16.msra.mxu0 %v2111
  %2121 = vmatprep.subr.bf16.mxu0 0
  %2122 = vmatpush1.bf16.msra.mxu0 0
  %2123 = vmatprep.subr.bf16.mxu0 0
  %2124 = vmatpush1.bf16.msra.mxu0 0
  %2125 = vmatprep.subr.bf16.mxu0 0
  %2126 = vmatpush1.bf16.msra.mxu0 0
  %2127 = vmatprep.subr.bf16.mxu0 0
  %2128 = vmatpush1.bf16.msra.mxu0 0
  %2129 = vmatprep.subr.bf16.mxu0 0
  %2130 = vmatpush1.bf16.msra.mxu0 0
  %2131 = vmatprep.subr.bf16.mxu0 0
  %2132 = vmatpush1.bf16.msra.mxu0 0
  %2133 = vmatprep.subr.bf16.mxu0 0
  %2134 = vmatpush1.bf16.msra.mxu0 0
  %2135 = vmatprep.subr.bf16.mxu0 0
  %2136 = vmatpush1.bf16.msra.mxu0 0
  %2137 = vmatprep.subr.bf16.mxu0 0
  %2138 = vmatpush1.bf16.msra.mxu0 0
  %2139 = vmatprep.subr.bf16.mxu0 0
  %2140 = vmatpush1.bf16.msra.mxu0 0
  %2141 = vmatprep.subr.bf16.mxu0 0
  %2142 = vmatpush1.bf16.msra.mxu0 0
  %2143 = vmatprep.subr.bf16.mxu0 0
  %2144 = vmatpush1.bf16.msra.mxu0 0
  %2145 = vmatprep.subr.bf16.mxu0 0
  %2146 = vmatpush1.bf16.msra.mxu0 0
  %2147 = vmatprep.subr.bf16.mxu0 0
  %2148 = vmatpush1.bf16.msra.mxu0 0
  %2149 = vmatprep.mubr.bf16.mxu0 0
  %2150 = vmatmul.mubr.bf16.gmra.mrb[0].mxu0 %v2115
  %v2151 = vpop.f32.mrb[0].mxu0
  %v2152 = vadd.f32 %v2100, %v2151
  %v2153 = vpop.f32.mrb[0].mxu0
  %v2154 = vpop.f32.mrb[0].mxu0
  %v2155 = vadd.f32 %v2100, %v2154
  %v2156 = vpop.f32.mrb[0].mxu0
  %2157 = vdwg.mxu0
  %v2158 = vpack.c.bf16 %v2155, %v2152
  %2160 = vrot.lane.b32.xlu0 %v2158, 96
  %v2161 = vpop.permute.xlu0 %2160
  %v2163 = vsel %vm179, %v2158, 0
  %v2166 = vsel %vm179, %v2161, 0
  %2168 = vmatprep.subr.bf16.mxu0 0
  %2169 = vmatpush1.bf16.xpose.msra.mxu0 %v2166
  %2170 = vmatprep.subr.bf16.mxu0 0
  %2171 = vmatpush1.bf16.xpose.msra.mxu0 0
  %2172 = vmatprep.subr.bf16.mxu0 0
  %2173 = vmatpush1.bf16.xpose.msra.mxu0 0
  %2174 = vmatprep.subr.bf16.mxu0 0
  %2175 = vmatpush1.bf16.xpose.msra.mxu0 0
  %2176 = vmatprep.subr.bf16.mxu0 0
  %2177 = vmatpush1.bf16.xpose.msra.mxu0 0
  %2178 = vmatprep.subr.bf16.mxu0 0
  %2179 = vmatpush1.bf16.xpose.msra.mxu0 0
  %2180 = vmatprep.subr.bf16.mxu0 0
  %2181 = vmatpush1.bf16.xpose.msra.mxu0 0
  %2182 = vmatprep.subr.bf16.mxu0 0
  %2183 = vmatpush1.bf16.xpose.msra.mxu0 0
  %2184 = vmatprep.subr.bf16.mxu0 0
  %2185 = vmatpush1.bf16.xpose.msra.mxu0 0
  %2186 = vmatprep.subr.bf16.mxu0 0
  %2187 = vmatpush1.bf16.xpose.msra.mxu0 0
  %2188 = vmatprep.subr.bf16.mxu0 0
  %2189 = vmatpush1.bf16.xpose.msra.mxu0 0
  %2190 = vmatprep.subr.bf16.mxu0 0
  %2191 = vmatpush1.bf16.xpose.msra.mxu0 0
  %2192 = vmatprep.subr.bf16.mxu0 0
  %2193 = vmatpush1.bf16.xpose.msra.mxu0 0
  %2194 = vmatprep.subr.bf16.mxu0 0
  %2195 = vmatpush1.bf16.xpose.msra.mxu0 0
  %2196 = vmatprep.subr.bf16.mxu0 0
  %2197 = vmatpush1.bf16.xpose.msra.mxu0 0
  %2198 = vmatprep.subr.bf16.mxu0 0
  %2199 = vmatpush1.bf16.xpose.msra.mxu0 0
  %2200 = vmatprep.mubr.bf16.mxu0 0
  %2201 = vmatmul.mubr.bf16.gmra.mrb[0].mxu0 %v2163
  %v2202 = vpop.f32.mrb[0].mxu0
  %v2203 = vadd.f32 %v63, %v2202
  %v2204 = vpop.f32.mrb[0].mxu0
  %v2205 = vpop.f32.mrb[0].mxu0
  %v2206 = vadd.f32 %v64, %v2205
  %v2207 = vpop.f32.mrb[0].mxu0
  %2208 = vdwg.mxu0
  %v2209 = vsel %vm227, %v2203, -inf
  %2210 = vmax.xlane.f32.xlu0 %v2209
  %v2211 = vpop.xlane.xlu0 %2210
  %v2212 = vsel %vm231, %v2206, -inf
  %2213 = vmax.xlane.f32.xlu0 %v2212
  %v2214 = vpop.xlane.xlu0 %2213
  %v2215 = vsub.f32 %v2203, %v2211
  %v2216 = vsub.f32 %v2206, %v2214
  %v2217 = vmul.f32 %v2215, 1.442695
  %v2218 = vpow.pop %v2217
  %v2219 = vmul.f32 %v2216, 1.442695
  %v2220 = vpow.pop %v2219
  %v2221 = vsel %vm227, %v2218, 0.0
  %2222 = vadd.xlane.f32.xlu0 %v2221
  %v2223 = vpop.xlane.xlu0 %2222
  %v2224 = vsel %vm231, %v2220, 0.0
  %2225 = vadd.xlane.f32.xlu0 %v2224
  %v2226 = vpop.xlane.xlu0 %2225
  %v2227 = vrcp.pop %v2223
  %v2228 = vrcp.pop %v2226
  %v2229 = vmul.f32 %v2218, %v2227
  %v2230 = vmul.f32 %v2220, %v2228
  %v2231 = vpack.c.bf16 %v2230, %v2229
  %2232 = vrot.lane.b32.xlu0 %v2158, 64
  %v2233 = vpop.permute.xlu0 %2232
  %v2235 = vsel %vm227, %v2231, 0
  %v2238 = vsel %vm257, %v2233, 0
  %2240 = vmatprep.subr.bf16.mxu0 0
  %2241 = vmatpush1.bf16.msra.mxu0 %v2238
  %2242 = vmatprep.subr.bf16.mxu0 0
  %2243 = vmatpush1.bf16.msra.mxu0 0
  %2244 = vmatprep.subr.bf16.mxu0 0
  %2245 = vmatpush1.bf16.msra.mxu0 0
  %2246 = vmatprep.subr.bf16.mxu0 0
  %2247 = vmatpush1.bf16.msra.mxu0 0
  %2248 = vmatprep.subr.bf16.mxu0 0
  %2249 = vmatpush1.bf16.msra.mxu0 0
  %2250 = vmatprep.subr.bf16.mxu0 0
  %2251 = vmatpush1.bf16.msra.mxu0 0
  %2252 = vmatprep.subr.bf16.mxu0 0
  %2253 = vmatpush1.bf16.msra.mxu0 0
  %2254 = vmatprep.subr.bf16.mxu0 0
  %2255 = vmatpush1.bf16.msra.mxu0 0
  %2256 = vmatprep.subr.bf16.mxu0 0
  %2257 = vmatpush1.bf16.msra.mxu0 0
  %2258 = vmatprep.subr.bf16.mxu0 0
  %2259 = vmatpush1.bf16.msra.mxu0 0
  %2260 = vmatprep.subr.bf16.mxu0 0
  %2261 = vmatpush1.bf16.msra.mxu0 0
  %2262 = vmatprep.subr.bf16.mxu0 0
  %2263 = vmatpush1.bf16.msra.mxu0 0
  %2264 = vmatprep.subr.bf16.mxu0 0
  %2265 = vmatpush1.bf16.msra.mxu0 0
  %2266 = vmatprep.subr.bf16.mxu0 0
  %2267 = vmatpush1.bf16.msra.mxu0 0
  %2268 = vmatprep.subr.bf16.mxu0 0
  %2269 = vmatpush1.bf16.msra.mxu0 0
  %2270 = vmatprep.subr.bf16.mxu0 0
  %2271 = vmatpush1.bf16.msra.mxu0 0
  %2272 = vmatprep.mubr.bf16.mxu0 0
  %2273 = vmatmul.mubr.bf16.gmra.mrb[0].mxu0 %v2235
  %v2274 = vpop.f32.mrb[0].mxu0
  %v2275 = vadd.f32 0.0, %v2274
  %v2276 = vpop.f32.mrb[0].mxu0
  %v2277 = vpop.f32.mrb[0].mxu0
  %v2278 = vadd.f32 0.0, %v2277
  %v2279 = vpop.f32.mrb[0].mxu0
  %2280 = vdwg.mxu0
  %2281 = vst.msk [vmem:[#allocation2] sm:$0xff] %vm179, %v2275
  %2282 = vst.msk [vmem:[#allocation2 + $0x8] sm:$0x3] %vm303, %v2278
  %2283 = vrot.lane.b32.xlu0 %v2158, 120
  %v2284 = vpop.permute.xlu0 %2283
  %2285 = vrot.lane.b32.xlu0 %v2158, 88
  %v2286 = vpop.permute.xlu0 %2285
  %v2288 = vsel %vm179, %v2284, 0
  %v2291 = vsel %vm179, %v2286, 0
  %2293 = vmatprep.subr.bf16.mxu0 0
  %2294 = vmatpush1.bf16.xpose.msra.mxu0 %v2291
  %2295 = vmatprep.subr.bf16.mxu0 0
  %2296 = vmatpush1.bf16.xpose.msra.mxu0 0
  %2297 = vmatprep.subr.bf16.mxu0 0
  %2298 = vmatpush1.bf16.xpose.msra.mxu0 0
  %2299 = vmatprep.subr.bf16.mxu0 0
  %2300 = vmatpush1.bf16.xpose.msra.mxu0 0
  %2301 = vmatprep.subr.bf16.mxu0 0
  %2302 = vmatpush1.bf16.xpose.msra.mxu0 0
  %2303 = vmatprep.subr.bf16.mxu0 0
  %2304 = vmatpush1.bf16.xpose.msra.mxu0 0
  %2305 = vmatprep.subr.bf16.mxu0 0
  %2306 = vmatpush1.bf16.xpose.msra.mxu0 0
  %2307 = vmatprep.subr.bf16.mxu0 0
  %2308 = vmatpush1.bf16.xpose.msra.mxu0 0
  %2309 = vmatprep.subr.bf16.mxu0 0
  %2310 = vmatpush1.bf16.xpose.msra.mxu0 0
  %2311 = vmatprep.subr.bf16.mxu0 0
  %2312 = vmatpush1.bf16.xpose.msra.mxu0 0
  %2313 = vmatprep.subr.bf16.mxu0 0
  %2314 = vmatpush1.bf16.xpose.msra.mxu0 0
  %2315 = vmatprep.subr.bf16.mxu0 0
  %2316 = vmatpush1.bf16.xpose.msra.mxu0 0
  %2317 = vmatprep.subr.bf16.mxu0 0
  %2318 = vmatpush1.bf16.xpose.msra.mxu0 0
  %2319 = vmatprep.subr.bf16.mxu0 0
  %2320 = vmatpush1.bf16.xpose.msra.mxu0 0
  %2321 = vmatprep.subr.bf16.mxu0 0
  %2322 = vmatpush1.bf16.xpose.msra.mxu0 0
  %2323 = vmatprep.subr.bf16.mxu0 0
  %2324 = vmatpush1.bf16.xpose.msra.mxu0 0
  %2325 = vmatprep.mubr.bf16.mxu0 0
  %2326 = vmatmul.mubr.bf16.gmra.mrb[0].mxu0 %v2288
  %v2327 = vpop.f32.mrb[0].mxu0
  %v2328 = vadd.f32 %v63, %v2327
  %v2329 = vpop.f32.mrb[0].mxu0
  %v2330 = vpop.f32.mrb[0].mxu0
  %v2331 = vadd.f32 %v64, %v2330
  %v2332 = vpop.f32.mrb[0].mxu0
  %2333 = vdwg.mxu0
  %v2334 = vsel %vm227, %v2328, -inf
  %2335 = vmax.xlane.f32.xlu0 %v2334
  %v2336 = vpop.xlane.xlu0 %2335
  %v2337 = vsel %vm231, %v2331, -inf
  %2338 = vmax.xlane.f32.xlu0 %v2337
  %v2339 = vpop.xlane.xlu0 %2338
  %v2340 = vsub.f32 %v2328, %v2336
  %v2341 = vsub.f32 %v2331, %v2339
  %v2342 = vmul.f32 %v2340, 1.442695
  %v2343 = vpow.pop %v2342
  %v2344 = vmul.f32 %v2341, 1.442695
  %v2345 = vpow.pop %v2344
  %v2346 = vsel %vm227, %v2343, 0.0
  %2347 = vadd.xlane.f32.xlu0 %v2346
  %v2348 = vpop.xlane.xlu0 %2347
  %v2349 = vsel %vm231, %v2345, 0.0
  %2350 = vadd.xlane.f32.xlu0 %v2349
  %v2351 = vpop.xlane.xlu0 %2350
  %v2352 = vrcp.pop %v2348
  %v2353 = vrcp.pop %v2351
  %v2354 = vmul.f32 %v2343, %v2352
  %v2355 = vmul.f32 %v2345, %v2353
  %v2356 = vpack.c.bf16 %v2355, %v2354
  %2357 = vrot.lane.b32.xlu0 %v2158, 56
  %v2358 = vpop.permute.xlu0 %2357
  %v2360 = vsel %vm227, %v2356, 0
  %v2363 = vsel %vm257, %v2358, 0
  %2365 = vmatprep.subr.bf16.mxu0 0
  %2366 = vmatpush1.bf16.msra.mxu0 %v2363
  %2367 = vmatprep.subr.bf16.mxu0 0
  %2368 = vmatpush1.bf16.msra.mxu0 0
  %2369 = vmatprep.subr.bf16.mxu0 0
  %2370 = vmatpush1.bf16.msra.mxu0 0
  %2371 = vmatprep.subr.bf16.mxu0 0
  %2372 = vmatpush1.bf16.msra.mxu0 0
  %2373 = vmatprep.subr.bf16.mxu0 0
  %2374 = vmatpush1.bf16.msra.mxu0 0
  %2375 = vmatprep.subr.bf16.mxu0 0
  %2376 = vmatpush1.bf16.msra.mxu0 0
  %2377 = vmatprep.subr.bf16.mxu0 0
  %2378 = vmatpush1.bf16.msra.mxu0 0
  %2379 = vmatprep.subr.bf16.mxu0 0
  %2380 = vmatpush1.bf16.msra.mxu0 0
  %2381 = vmatprep.subr.bf16.mxu0 0
  %2382 = vmatpush1.bf16.msra.mxu0 0
  %2383 = vmatprep.subr.bf16.mxu0 0
  %2384 = vmatpush1.bf16.msra.mxu0 0
  %2385 = vmatprep.subr.bf16.mxu0 0
  %2386 = vmatpush1.bf16.msra.mxu0 0
  %2387 = vmatprep.subr.bf16.mxu0 0
  %2388 = vmatpush1.bf16.msra.mxu0 0
  %2389 = vmatprep.subr.bf16.mxu0 0
  %2390 = vmatpush1.bf16.msra.mxu0 0
  %2391 = vmatprep.subr.bf16.mxu0 0
  %2392 = vmatpush1.bf16.msra.mxu0 0
  %2393 = vmatprep.subr.bf16.mxu0 0
  %2394 = vmatpush1.bf16.msra.mxu0 0
  %2395 = vmatprep.subr.bf16.mxu0 0
  %2396 = vmatpush1.bf16.msra.mxu0 0
  %2397 = vmatprep.mubr.bf16.mxu0 0
  %2398 = vmatmul.mubr.bf16.gmra.mrb[0].mxu0 %v2360
  %v2399 = vpop.f32.mrb[0].mxu0
  %v2400 = vadd.f32 0.0, %v2399
  %v2401 = vpop.f32.mrb[0].mxu0
  %v2402 = vpop.f32.mrb[0].mxu0
  %v2403 = vadd.f32 0.0, %v2402
  %v2404 = vpop.f32.mrb[0].mxu0
  %2405 = vdwg.mxu0
  %2408 = vrot.lane.b32.xlu0 %v2400, 8
  %v2409 = vpop.permute.xlu0 %2408
  %2410 = vrot.lane.b32.xlu0 %v2403, 8
  %v2411 = vpop.permute.xlu0 %2410
  %2414 = vst.msk [vmem:[#allocation2] sm:$0xff] %vm436, %v2409
  %2415 = vst.msk [vmem:[#allocation2 + $0x8] sm:$0x3] %vm438, %v2411
  %2416 = vrot.lane.b32.xlu0 %v2158, 112
  %v2417 = vpop.permute.xlu0 %2416
  %2418 = vrot.lane.b32.xlu0 %v2158, 80
  %v2419 = vpop.permute.xlu0 %2418
  %v2421 = vsel %vm179, %v2417, 0
  %v2424 = vsel %vm179, %v2419, 0
  %2426 = vmatprep.subr.bf16.mxu0 0
  %2427 = vmatpush1.bf16.xpose.msra.mxu0 %v2424
  %2428 = vmatprep.subr.bf16.mxu0 0
  %2429 = vmatpush1.bf16.xpose.msra.mxu0 0
  %2430 = vmatprep.subr.bf16.mxu0 0
  %2431 = vmatpush1.bf16.xpose.msra.mxu0 0
  %2432 = vmatprep.subr.bf16.mxu0 0
  %2433 = vmatpush1.bf16.xpose.msra.mxu0 0
  %2434 = vmatprep.subr.bf16.mxu0 0
  %2435 = vmatpush1.bf16.xpose.msra.mxu0 0
  %2436 = vmatprep.subr.bf16.mxu0 0
  %2437 = vmatpush1.bf16.xpose.msra.mxu0 0
  %2438 = vmatprep.subr.bf16.mxu0 0
  %2439 = vmatpush1.bf16.xpose.msra.mxu0 0
  %2440 = vmatprep.subr.bf16.mxu0 0
  %2441 = vmatpush1.bf16.xpose.msra.mxu0 0
  %2442 = vmatprep.subr.bf16.mxu0 0
  %2443 = vmatpush1.bf16.xpose.msra.mxu0 0
  %2444 = vmatprep.subr.bf16.mxu0 0
  %2445 = vmatpush1.bf16.xpose.msra.mxu0 0
  %2446 = vmatprep.subr.bf16.mxu0 0
  %2447 = vmatpush1.bf16.xpose.msra.mxu0 0
  %2448 = vmatprep.subr.bf16.mxu0 0
  %2449 = vmatpush1.bf16.xpose.msra.mxu0 0
  %2450 = vmatprep.subr.bf16.mxu0 0
  %2451 = vmatpush1.bf16.xpose.msra.mxu0 0
  %2452 = vmatprep.subr.bf16.mxu0 0
  %2453 = vmatpush1.bf16.xpose.msra.mxu0 0
  %2454 = vmatprep.subr.bf16.mxu0 0
  %2455 = vmatpush1.bf16.xpose.msra.mxu0 0
  %2456 = vmatprep.subr.bf16.mxu0 0
  %2457 = vmatpush1.bf16.xpose.msra.mxu0 0
  %2458 = vmatprep.mubr.bf16.mxu0 0
  %2459 = vmatmul.mubr.bf16.gmra.mrb[0].mxu0 %v2421
  %v2460 = vpop.f32.mrb[0].mxu0
  %v2461 = vadd.f32 %v63, %v2460
  %v2462 = vpop.f32.mrb[0].mxu0
  %v2463 = vpop.f32.mrb[0].mxu0
  %v2464 = vadd.f32 %v64, %v2463
  %v2465 = vpop.f32.mrb[0].mxu0
  %2466 = vdwg.mxu0
  %v2467 = vsel %vm227, %v2461, -inf
  %2468 = vmax.xlane.f32.xlu0 %v2467
  %v2469 = vpop.xlane.xlu0 %2468
  %v2470 = vsel %vm231, %v2464, -inf
  %2471 = vmax.xlane.f32.xlu0 %v2470
  %v2472 = vpop.xlane.xlu0 %2471
  %v2473 = vsub.f32 %v2461, %v2469
  %v2474 = vsub.f32 %v2464, %v2472
  %v2475 = vmul.f32 %v2473, 1.442695
  %v2476 = vpow.pop %v2475
  %v2477 = vmul.f32 %v2474, 1.442695
  %v2478 = vpow.pop %v2477
  %v2479 = vsel %vm227, %v2476, 0.0
  %2480 = vadd.xlane.f32.xlu0 %v2479
  %v2481 = vpop.xlane.xlu0 %2480
  %v2482 = vsel %vm231, %v2478, 0.0
  %2483 = vadd.xlane.f32.xlu0 %v2482
  %v2484 = vpop.xlane.xlu0 %2483
  %v2485 = vrcp.pop %v2481
  %v2486 = vrcp.pop %v2484
  %v2487 = vmul.f32 %v2476, %v2485
  %v2488 = vmul.f32 %v2478, %v2486
  %v2489 = vpack.c.bf16 %v2488, %v2487
  %2490 = vrot.lane.b32.xlu0 %v2158, 48
  %v2491 = vpop.permute.xlu0 %2490
  %v2493 = vsel %vm227, %v2489, 0
  %v2496 = vsel %vm257, %v2491, 0
  %2498 = vmatprep.subr.bf16.mxu0 0
  %2499 = vmatpush1.bf16.msra.mxu0 %v2496
  %2500 = vmatprep.subr.bf16.mxu0 0
  %2501 = vmatpush1.bf16.msra.mxu0 0
  %2502 = vmatprep.subr.bf16.mxu0 0
  %2503 = vmatpush1.bf16.msra.mxu0 0
  %2504 = vmatprep.subr.bf16.mxu0 0
  %2505 = vmatpush1.bf16.msra.mxu0 0
  %2506 = vmatprep.subr.bf16.mxu0 0
  %2507 = vmatpush1.bf16.msra.mxu0 0
  %2508 = vmatprep.subr.bf16.mxu0 0
  %2509 = vmatpush1.bf16.msra.mxu0 0
  %2510 = vmatprep.subr.bf16.mxu0 0
  %2511 = vmatpush1.bf16.msra.mxu0 0
  %2512 = vmatprep.subr.bf16.mxu0 0
  %2513 = vmatpush1.bf16.msra.mxu0 0
  %2514 = vmatprep.subr.bf16.mxu0 0
  %2515 = vmatpush1.bf16.msra.mxu0 0
  %2516 = vmatprep.subr.bf16.mxu0 0
  %2517 = vmatpush1.bf16.msra.mxu0 0
  %2518 = vmatprep.subr.bf16.mxu0 0
  %2519 = vmatpush1.bf16.msra.mxu0 0
  %2520 = vmatprep.subr.bf16.mxu0 0
  %2521 = vmatpush1.bf16.msra.mxu0 0
  %2522 = vmatprep.subr.bf16.mxu0 0
  %2523 = vmatpush1.bf16.msra.mxu0 0
  %2524 = vmatprep.subr.bf16.mxu0 0
  %2525 = vmatpush1.bf16.msra.mxu0 0
  %2526 = vmatprep.subr.bf16.mxu0 0
  %2527 = vmatpush1.bf16.msra.mxu0 0
  %2528 = vmatprep.subr.bf16.mxu0 0
  %2529 = vmatpush1.bf16.msra.mxu0 0
  %2530 = vmatprep.mubr.bf16.mxu0 0
  %2531 = vmatmul.mubr.bf16.gmra.mrb[0].mxu0 %v2493
  %v2532 = vpop.f32.mrb[0].mxu0
  %v2533 = vadd.f32 0.0, %v2532
  %v2534 = vpop.f32.mrb[0].mxu0
  %v2535 = vpop.f32.mrb[0].mxu0
  %v2536 = vadd.f32 0.0, %v2535
  %v2537 = vpop.f32.mrb[0].mxu0
  %2538 = vdwg.mxu0
  %2541 = vrot.lane.b32.xlu0 %v2533, 16
  %v2542 = vpop.permute.xlu0 %2541
  %2543 = vrot.lane.b32.xlu0 %v2536, 16
  %v2544 = vpop.permute.xlu0 %2543
  %2547 = vst.msk [vmem:[#allocation2] sm:$0xff] %vm571, %v2542
  %2548 = vst.msk [vmem:[#allocation2 + $0x8] sm:$0x3] %vm573, %v2544
  %2549 = vrot.lane.b32.xlu0 %v2158, 104
  %v2550 = vpop.permute.xlu0 %2549
  %2551 = vrot.lane.b32.xlu0 %v2158, 72
  %v2552 = vpop.permute.xlu0 %2551
  %v2554 = vsel %vm179, %v2550, 0
  %v2557 = vsel %vm179, %v2552, 0
  %2559 = vmatprep.subr.bf16.mxu0 0
  %2560 = vmatpush1.bf16.xpose.msra.mxu0 %v2557
  %2561 = vmatprep.subr.bf16.mxu0 0
  %2562 = vmatpush1.bf16.xpose.msra.mxu0 0
  %2563 = vmatprep.subr.bf16.mxu0 0
  %2564 = vmatpush1.bf16.xpose.msra.mxu0 0
  %2565 = vmatprep.subr.bf16.mxu0 0
  %2566 = vmatpush1.bf16.xpose.msra.mxu0 0
  %2567 = vmatprep.subr.bf16.mxu0 0
  %2568 = vmatpush1.bf16.xpose.msra.mxu0 0
  %2569 = vmatprep.subr.bf16.mxu0 0
  %2570 = vmatpush1.bf16.xpose.msra.mxu0 0
  %2571 = vmatprep.subr.bf16.mxu0 0
  %2572 = vmatpush1.bf16.xpose.msra.mxu0 0
  %2573 = vmatprep.subr.bf16.mxu0 0
  %2574 = vmatpush1.bf16.xpose.msra.mxu0 0
  %2575 = vmatprep.subr.bf16.mxu0 0
  %2576 = vmatpush1.bf16.xpose.msra.mxu0 0
  %2577 = vmatprep.subr.bf16.mxu0 0
  %2578 = vmatpush1.bf16.xpose.msra.mxu0 0
  %2579 = vmatprep.subr.bf16.mxu0 0
  %2580 = vmatpush1.bf16.xpose.msra.mxu0 0
  %2581 = vmatprep.subr.bf16.mxu0 0
  %2582 = vmatpush1.bf16.xpose.msra.mxu0 0
  %2583 = vmatprep.subr.bf16.mxu0 0
  %2584 = vmatpush1.bf16.xpose.msra.mxu0 0
  %2585 = vmatprep.subr.bf16.mxu0 0
  %2586 = vmatpush1.bf16.xpose.msra.mxu0 0
  %2587 = vmatprep.subr.bf16.mxu0 0
  %2588 = vmatpush1.bf16.xpose.msra.mxu0 0
  %2589 = vmatprep.subr.bf16.mxu0 0
  %2590 = vmatpush1.bf16.xpose.msra.mxu0 0
  %2591 = vmatprep.mubr.bf16.mxu0 0
  %2592 = vmatmul.mubr.bf16.gmra.mrb[0].mxu0 %v2554
  %v2593 = vpop.f32.mrb[0].mxu0
  %v2594 = vadd.f32 %v63, %v2593
  %v2595 = vpop.f32.mrb[0].mxu0
  %v2596 = vpop.f32.mrb[0].mxu0
  %v2597 = vadd.f32 %v64, %v2596
  %v2598 = vpop.f32.mrb[0].mxu0
  %2599 = vdwg.mxu0
  %v2600 = vsel %vm227, %v2594, -inf
  %2601 = vmax.xlane.f32.xlu0 %v2600
  %v2602 = vpop.xlane.xlu0 %2601
  %v2603 = vsel %vm231, %v2597, -inf
  %2604 = vmax.xlane.f32.xlu0 %v2603
  %v2605 = vpop.xlane.xlu0 %2604
  %v2606 = vsub.f32 %v2594, %v2602
  %v2607 = vsub.f32 %v2597, %v2605
  %v2608 = vmul.f32 %v2606, 1.442695
  %v2609 = vpow.pop %v2608
  %v2610 = vmul.f32 %v2607, 1.442695
  %v2611 = vpow.pop %v2610
  %v2612 = vsel %vm227, %v2609, 0.0
  %2613 = vadd.xlane.f32.xlu0 %v2612
  %v2614 = vpop.xlane.xlu0 %2613
  %v2615 = vsel %vm231, %v2611, 0.0
  %2616 = vadd.xlane.f32.xlu0 %v2615
  %v2617 = vpop.xlane.xlu0 %2616
  %v2618 = vrcp.pop %v2614
  %v2619 = vrcp.pop %v2617
  %v2620 = vmul.f32 %v2609, %v2618
  %v2621 = vmul.f32 %v2611, %v2619
  %v2622 = vpack.c.bf16 %v2621, %v2620
  %2623 = vrot.lane.b32.xlu0 %v2158, 40
  %v2624 = vpop.permute.xlu0 %2623
  %v2626 = vsel %vm227, %v2622, 0
  %v2629 = vsel %vm257, %v2624, 0
  %2631 = vmatprep.subr.bf16.mxu0 0
  %2632 = vmatpush1.bf16.msra.mxu0 %v2629
  %2633 = vmatprep.subr.bf16.mxu0 0
  %2634 = vmatpush1.bf16.msra.mxu0 0
  %2635 = vmatprep.subr.bf16.mxu0 0
  %2636 = vmatpush1.bf16.msra.mxu0 0
  %2637 = vmatprep.subr.bf16.mxu0 0
  %2638 = vmatpush1.bf16.msra.mxu0 0
  %2639 = vmatprep.subr.bf16.mxu0 0
  %2640 = vmatpush1.bf16.msra.mxu0 0
  %2641 = vmatprep.subr.bf16.mxu0 0
  %2642 = vmatpush1.bf16.msra.mxu0 0
  %2643 = vmatprep.subr.bf16.mxu0 0
  %2644 = vmatpush1.bf16.msra.mxu0 0
  %2645 = vmatprep.subr.bf16.mxu0 0
  %2646 = vmatpush1.bf16.msra.mxu0 0
  %2647 = vmatprep.subr.bf16.mxu0 0
  %2648 = vmatpush1.bf16.msra.mxu0 0
  %2649 = vmatprep.subr.bf16.mxu0 0
  %2650 = vmatpush1.bf16.msra.mxu0 0
  %2651 = vmatprep.subr.bf16.mxu0 0
  %2652 = vmatpush1.bf16.msra.mxu0 0
  %2653 = vmatprep.subr.bf16.mxu0 0
  %2654 = vmatpush1.bf16.msra.mxu0 0
  %2655 = vmatprep.subr.bf16.mxu0 0
  %2656 = vmatpush1.bf16.msra.mxu0 0
  %2657 = vmatprep.subr.bf16.mxu0 0
  %2658 = vmatpush1.bf16.msra.mxu0 0
  %2659 = vmatprep.subr.bf16.mxu0 0
  %2660 = vmatpush1.bf16.msra.mxu0 0
  %2661 = vmatprep.subr.bf16.mxu0 0
  %2662 = vmatpush1.bf16.msra.mxu0 0
  %2663 = vmatprep.mubr.bf16.mxu0 0
  %2664 = vmatmul.mubr.bf16.gmra.mrb[0].mxu0 %v2626
  %v2665 = vpop.f32.mrb[0].mxu0
  %v2666 = vadd.f32 0.0, %v2665
  %v2667 = vpop.f32.mrb[0].mxu0
  %v2668 = vpop.f32.mrb[0].mxu0
  %v2669 = vadd.f32 0.0, %v2668
  %v2670 = vpop.f32.mrb[0].mxu0
  %2671 = vdwg.mxu0
  %2674 = vrot.lane.b32.xlu0 %v2666, 24
  %v2675 = vpop.permute.xlu0 %2674
  %2676 = vrot.lane.b32.xlu0 %v2669, 24
  %v2677 = vpop.permute.xlu0 %2676
  %2680 = vst.msk [vmem:[#allocation2] sm:$0xff] %vm706, %v2675
  %2681 = vst.msk [vmem:[#allocation2 + $0x8] sm:$0x3] %vm708, %v2677
  %v2682 = vld [vmem:[#allocation2] sm:$0xff]
  %v2683 = vld [vmem:[#allocation2 + $0x8] sm:$0x3]
  %v2684 = vpack.c.bf16 %v2683, %v2682
  %s2685 = scalar_lea.vmem %s3, 32
  %v2686 = vld [vmem:[%s2685] sm:$0xf]
  %v2687 = vld [vmem:[%s2685 + $0x4] sm:$0xf]
  %v2688 = vld [vmem:[%s2685 + $0x8] sm:$0xf]
  %v2689 = vld [vmem:[%s2685 + $0xc] sm:$0xf]
  %v2690 = vlaneseq
  %v2691 = vshrl.u32 %v2690, 7
  %v2692 = vsub.s32 2, %v2691
  %v2693 = vrot.slane %v2049, %v2692
  %v2698 = vunpack.c.l.b16 %v2686
  %v2699 = vunpack.c.l.b16 %v2687
  %v2700 = vunpack.c.l.b16 %v2688
  %v2701 = vunpack.c.l.b16 %v2689
  %v2702 = vpack.c.b16 %v2699, %v2698
  %v2703 = vpack.c.b16 %v2701, %v2700
  %v2707 = vsel %vm66, %v2684, 0
  %2709 = vmatprep.subr.bf16.mxu0 0
  %2710 = vmatpush1.bf16.msra.mxu0 %v2702
  %2711 = vmatprep.subr.bf16.mxu0 0
  %2712 = vmatpush1.bf16.msra.mxu0 %v2703
  %2713 = vmatprep.subr.bf16.mxu0 0
  %2714 = vmatpush1.bf16.msra.mxu0 0
  %2715 = vmatprep.subr.bf16.mxu0 0
  %2716 = vmatpush1.bf16.msra.mxu0 0
  %2717 = vmatprep.subr.bf16.mxu0 0
  %2718 = vmatpush1.bf16.msra.mxu0 0
  %2719 = vmatprep.subr.bf16.mxu0 0
  %2720 = vmatpush1.bf16.msra.mxu0 0
  %2721 = vmatprep.subr.bf16.mxu0 0
  %2722 = vmatpush1.bf16.msra.mxu0 0
  %2723 = vmatprep.subr.bf16.mxu0 0
  %2724 = vmatpush1.bf16.msra.mxu0 0
  %2725 = vmatprep.subr.bf16.mxu0 0
  %2726 = vmatpush1.bf16.msra.mxu0 0
  %2727 = vmatprep.subr.bf16.mxu0 0
  %2728 = vmatpush1.bf16.msra.mxu0 0
  %2729 = vmatprep.subr.bf16.mxu0 0
  %2730 = vmatpush1.bf16.msra.mxu0 0
  %2731 = vmatprep.subr.bf16.mxu0 0
  %2732 = vmatpush1.bf16.msra.mxu0 0
  %2733 = vmatprep.subr.bf16.mxu0 0
  %2734 = vmatpush1.bf16.msra.mxu0 0
  %2735 = vmatprep.subr.bf16.mxu0 0
  %2736 = vmatpush1.bf16.msra.mxu0 0
  %2737 = vmatprep.subr.bf16.mxu0 0
  %2738 = vmatpush1.bf16.msra.mxu0 0
  %2739 = vmatprep.subr.bf16.mxu0 0
  %2740 = vmatpush1.bf16.msra.mxu0 0
  %2741 = vmatprep.mubr.bf16.mxu0 0
  %2742 = vmatmul.mubr.bf16.gmra.mrb[0].mxu0 %v2707
  %v2743 = vpop.f32.mrb[0].mxu0
  %v2744 = vadd.f32 %v2693, %v2743
  %v2745 = vpop.f32.mrb[0].mxu0
  %v2746 = vpop.f32.mrb[0].mxu0
  %v2747 = vadd.f32 %v2693, %v2746
  %v2748 = vpop.f32.mrb[0].mxu0
  %2749 = vdwg.mxu0
  %v2750 = vadd.f32 %v2034, %v2744
  %v2751 = vadd.f32 %v2035, %v2747
  %v2752 = vsel %vm66, %v2750, 0.0
  %2753 = vadd.xlane.f32.xlu0 %v2752
  %v2754 = vpop.xlane.xlu0 %2753
  %v2755 = vsel %vm70, %v2751, 0.0
  %2756 = vadd.xlane.f32.xlu0 %v2755
  %v2757 = vpop.xlane.xlu0 %2756
  %v2758 = vmul.f32 %v2754, %v74
  %v2759 = vmul.f32 %v2757, %v74
  %v2760 = vsub.f32 %v2750, %v2758
  %v2761 = vsub.f32 %v2751, %v2759
  %v2762 = vmul.f32 %v2760, %v2760
  %v2763 = vmul.f32 %v2761, %v2761
  %v2764 = vsel %vm66, %v2762, 0.0
  %2765 = vadd.xlane.f32.xlu0 %v2764
  %v2766 = vpop.xlane.xlu0 %2765
  %v2767 = vsel %vm70, %v2763, 0.0
  %2768 = vadd.xlane.f32.xlu0 %v2767
  %v2769 = vpop.xlane.xlu0 %2768
  %v2770 = vmul.f32 %v2766, %v74
  %v2771 = vmul.f32 %v2769, %v74
  %v2772 = vadd.f32 %v2770, 1e-06
  %v2773 = vadd.f32 %v2771, 1e-06
  %v2774 = vrsqrt.pop %v2772
  %v2775 = vrsqrt.pop %v2773
  %v2776 = vmul.f32 %v2760, %v2774
  %v2777 = vmul.f32 %v2761, %v2775
  %v2778 = vlaneseq
  %v2779 = vshrl.u32 %v2778, 7
  %v2780 = vsub.s32 3, %v2779
  %v2781 = vrot.slane %v2049, %v2780
  %v2782 = vmul.f32 %v2776, %v2781
  %v2783 = vmul.f32 %v2777, %v2781
  %v2784 = vlaneseq
  %v2785 = vshrl.u32 %v2784, 7
  %v2786 = vsub.s32 4, %v2785
  %v2787 = vrot.slane %v2049, %v2786
  %v2788 = vadd.f32 %v2782, %v2787
  %v2789 = vadd.f32 %v2783, %v2787
  %v2790 = vpack.c.bf16 %v2789, %v2788
  %s2791 = scalar_lea.vmem %s4, 32
  %v2792 = vld [vmem:[%s2791] sm:$0xf]
  %v2793 = vld [vmem:[%s2791 + $0x4] sm:$0xf]
  %v2794 = vld [vmem:[%s2791 + $0x8] sm:$0xf]
  %v2795 = vld [vmem:[%s2791 + $0xc] sm:$0xf]
  %s2796 = scalar_lea.vmem %s5, 2
  %v2797 = vld [vmem:[%s2796] sm:$0x1]
  %v2799 = vlaneseq
  %v2800 = vshrl.u32 %v2799, 7
  %v2801 = vsub.s32 0, %v2800
  %v2802 = vrot.slane %v2797, %v2801
  %v2808 = vunpack.c.l.b16 %v2792
  %v2809 = vunpack.c.l.b16 %v2793
  %v2810 = vunpack.c.l.b16 %v2794
  %v2811 = vunpack.c.l.b16 %v2795
  %v2812 = vpack.c.b16 %v2809, %v2808
  %v2813 = vpack.c.b16 %v2811, %v2810
  %v2817 = vsel %vm66, %v2790, 0
  %2819 = vmatprep.subr.bf16.mxu0 0
  %2820 = vmatpush1.bf16.msra.mxu0 %v2812
  %2821 = vmatprep.subr.bf16.mxu0 0
  %2822 = vmatpush1.bf16.msra.mxu0 %v2813
  %2823 = vmatprep.subr.bf16.mxu0 0
  %2824 = vmatpush1.bf16.msra.mxu0 0
  %2825 = vmatprep.subr.bf16.mxu0 0
  %2826 = vmatpush1.bf16.msra.mxu0 0
  %2827 = vmatprep.subr.bf16.mxu0 0
  %2828 = vmatpush1.bf16.msra.mxu0 0
  %2829 = vmatprep.subr.bf16.mxu0 0
  %2830 = vmatpush1.bf16.msra.mxu0 0
  %2831 = vmatprep.subr.bf16.mxu0 0
  %2832 = vmatpush1.bf16.msra.mxu0 0
  %2833 = vmatprep.subr.bf16.mxu0 0
  %2834 = vmatpush1.bf16.msra.mxu0 0
  %2835 = vmatprep.subr.bf16.mxu0 0
  %2836 = vmatpush1.bf16.msra.mxu0 0
  %2837 = vmatprep.subr.bf16.mxu0 0
  %2838 = vmatpush1.bf16.msra.mxu0 0
  %2839 = vmatprep.subr.bf16.mxu0 0
  %2840 = vmatpush1.bf16.msra.mxu0 0
  %2841 = vmatprep.subr.bf16.mxu0 0
  %2842 = vmatpush1.bf16.msra.mxu0 0
  %2843 = vmatprep.subr.bf16.mxu0 0
  %2844 = vmatpush1.bf16.msra.mxu0 0
  %2845 = vmatprep.subr.bf16.mxu0 0
  %2846 = vmatpush1.bf16.msra.mxu0 0
  %2847 = vmatprep.subr.bf16.mxu0 0
  %2848 = vmatpush1.bf16.msra.mxu0 0
  %2849 = vmatprep.subr.bf16.mxu0 0
  %2850 = vmatpush1.bf16.msra.mxu0 0
  %2851 = vmatprep.mubr.bf16.mxu0 0
  %2852 = vmatmul.mubr.bf16.gmra.mrb[0].mxu0 %v2817
  %v2853 = vpop.f32.mrb[0].mxu0
  %v2854 = vadd.f32 %v2802, %v2853
  %v2855 = vpop.f32.mrb[0].mxu0
  %v2856 = vpop.f32.mrb[0].mxu0
  %v2857 = vadd.f32 %v2802, %v2856
  %v2858 = vpop.f32.mrb[0].mxu0
  %2859 = vdwg.mxu0
  %v2860 = vmul.f32 %v2854, 0.5
  %v2861 = vmul.f32 %v2857, 0.5
  %v2862 = vmul.f32 %v2854, 0.70710677
  %v2863 = vmul.f32 %v2857, 0.70710677
  %vm2864 = vcmp.ge.f32.partialorder %v2862, 0.0
  %vm2865 = vcmp.ge.f32.partialorder %v2863, 0.0
  %v2866 = vsel %vm2864, 1.0, -1.0
  %v2867 = vsel %vm2865, 1.0, -1.0
  %v2868 = vand.u32 2147483647, %v2862
  %v2869 = vand.u32 2147483647, %v2863
  %v2870 = vmul.f32 %v2868, 0.3275911
  %v2871 = vmul.f32 %v2869, 0.3275911
  %v2872 = vadd.f32 %v2870, 1.0
  %v2873 = vadd.f32 %v2871, 1.0
  %v2874 = vrcp.pop %v2872
  %v2875 = vmul.f32 1.0, %v2874
  %v2876 = vrcp.pop %v2873
  %v2877 = vmul.f32 1.0, %v2876
  %v2878 = vmul.f32 %v2875, 1.0614054
  %v2879 = vmul.f32 %v2877, 1.0614054
  %v2880 = vadd.f32 %v2878, -1.4531521
  %v2881 = vadd.f32 %v2879, -1.4531521
  %v2882 = vmul.f32 %v2880, %v2875
  %v2883 = vmul.f32 %v2881, %v2877
  %v2884 = vadd.f32 %v2882, 1.4214138
  %v2885 = vadd.f32 %v2883, 1.4214138
  %v2886 = vmul.f32 %v2884, %v2875
  %v2887 = vmul.f32 %v2885, %v2877
  %v2888 = vadd.f32 %v2886, -0.28449672
  %v2889 = vadd.f32 %v2887, -0.28449672
  %v2890 = vmul.f32 %v2888, %v2875
  %v2891 = vmul.f32 %v2889, %v2877
  %v2892 = vadd.f32 %v2890, 0.2548296
  %v2893 = vadd.f32 %v2891, 0.2548296
  %v2894 = vmul.f32 %v2892, %v2875
  %v2895 = vmul.f32 %v2893, %v2877
  %v2896 = vsub.f32 0.0, %v2868
  %v2897 = vsub.f32 0.0, %v2869
  %v2898 = vmul.f32 %v2896, %v2868
  %v2899 = vmul.f32 %v2897, %v2869
  %v2900 = vmul.f32 %v2898, 1.442695
  %v2901 = vpow.pop %v2900
  %v2902 = vmul.f32 %v2899, 1.442695
  %v2903 = vpow.pop %v2902
  %v2904 = vmul.f32 %v2894, %v2901
  %v2905 = vmul.f32 %v2895, %v2903
  %v2906 = vsub.f32 1.0, %v2904
  %v2907 = vsub.f32 1.0, %v2905
  %v2908 = vmul.f32 %v2866, %v2906
  %v2909 = vmul.f32 %v2867, %v2907
  %v2910 = vadd.f32 %v2908, 1.0
  %v2911 = vadd.f32 %v2909, 1.0
  %v2912 = vmul.f32 %v2860, %v2910
  %v2913 = vmul.f32 %v2861, %v2911
  %v2914 = vpack.c.bf16 %v2913, %v2912
  %s2915 = scalar_lea.vmem %s6, 128
  %v2916 = vld [vmem:[%s2915] sm:$0xf]
  %v2917 = vld [vmem:[%s2915 + $0x4] sm:$0xf]
  %v2918 = vld [vmem:[%s2915 + $0x8] sm:$0xf]
  %v2919 = vld [vmem:[%s2915 + $0xc] sm:$0xf]
  %v2920 = vld [vmem:[%s2915 + $0x10] sm:$0xf]
  %v2921 = vld [vmem:[%s2915 + $0x14] sm:$0xf]
  %v2922 = vld [vmem:[%s2915 + $0x18] sm:$0xf]
  %v2923 = vld [vmem:[%s2915 + $0x1c] sm:$0xf]
  %v2924 = vld [vmem:[%s2915 + $0x20] sm:$0xf]
  %v2925 = vld [vmem:[%s2915 + $0x24] sm:$0xf]
  %v2926 = vld [vmem:[%s2915 + $0x28] sm:$0xf]
  %v2927 = vld [vmem:[%s2915 + $0x2c] sm:$0xf]
  %v2928 = vld [vmem:[%s2915 + $0x30] sm:$0xf]
  %v2929 = vld [vmem:[%s2915 + $0x34] sm:$0xf]
  %v2930 = vld [vmem:[%s2915 + $0x38] sm:$0xf]
  %v2931 = vld [vmem:[%s2915 + $0x3c] sm:$0xf]
  %v2948 = vunpack.c.l.b16 %v2916
  %v2949 = vunpack.c.l.b16 %v2917
  %v2950 = vunpack.c.l.b16 %v2918
  %v2951 = vunpack.c.l.b16 %v2919
  %v2952 = vunpack.c.l.b16 %v2920
  %v2953 = vunpack.c.l.b16 %v2921
  %v2954 = vunpack.c.l.b16 %v2922
  %v2955 = vunpack.c.l.b16 %v2923
  %v2956 = vunpack.c.l.b16 %v2924
  %v2957 = vunpack.c.l.b16 %v2925
  %v2958 = vunpack.c.l.b16 %v2926
  %v2959 = vunpack.c.l.b16 %v2927
  %v2960 = vunpack.c.l.b16 %v2928
  %v2961 = vunpack.c.l.b16 %v2929
  %v2962 = vunpack.c.l.b16 %v2930
  %v2963 = vunpack.c.l.b16 %v2931
  %v2964 = vpack.c.b16 %v2949, %v2948
  %v2965 = vpack.c.b16 %v2951, %v2950
  %v2966 = vpack.c.b16 %v2953, %v2952
  %v2967 = vpack.c.b16 %v2955, %v2954
  %v2968 = vpack.c.b16 %v2957, %v2956
  %v2969 = vpack.c.b16 %v2959, %v2958
  %v2970 = vpack.c.b16 %v2961, %v2960
  %v2971 = vpack.c.b16 %v2963, %v2962
  %2980 = vmatprep.subr.bf16.mxu0 0
  %2981 = vmatpush1.bf16.msra.mxu0 %v2964
  %2982 = vmatprep.subr.bf16.mxu0 0
  %2983 = vmatpush1.bf16.msra.mxu0 %v2965
  %2984 = vmatprep.subr.bf16.mxu0 0
  %2985 = vmatpush1.bf16.msra.mxu0 %v2966
  %2986 = vmatprep.subr.bf16.mxu0 0
  %2987 = vmatpush1.bf16.msra.mxu0 %v2967
  %2988 = vmatprep.subr.bf16.mxu0 0
  %2989 = vmatpush1.bf16.msra.mxu0 %v2968
  %2990 = vmatprep.subr.bf16.mxu0 0
  %2991 = vmatpush1.bf16.msra.mxu0 %v2969
  %2992 = vmatprep.subr.bf16.mxu0 0
  %2993 = vmatpush1.bf16.msra.mxu0 %v2970
  %2994 = vmatprep.subr.bf16.mxu0 0
  %2995 = vmatpush1.bf16.msra.mxu0 %v2971
  %2996 = vmatprep.subr.bf16.mxu0 0
  %2997 = vmatpush1.bf16.msra.mxu0 0
  %2998 = vmatprep.subr.bf16.mxu0 0
  %2999 = vmatpush1.bf16.msra.mxu0 0
  %3000 = vmatprep.subr.bf16.mxu0 0
  %3001 = vmatpush1.bf16.msra.mxu0 0
  %3002 = vmatprep.subr.bf16.mxu0 0
  %3003 = vmatpush1.bf16.msra.mxu0 0
  %3004 = vmatprep.subr.bf16.mxu0 0
  %3005 = vmatpush1.bf16.msra.mxu0 0
  %3006 = vmatprep.subr.bf16.mxu0 0
  %3007 = vmatpush1.bf16.msra.mxu0 0
  %3008 = vmatprep.subr.bf16.mxu0 0
  %3009 = vmatpush1.bf16.msra.mxu0 0
  %3010 = vmatprep.subr.bf16.mxu0 0
  %3011 = vmatpush1.bf16.msra.mxu0 0
  %3012 = vmatprep.mubr.bf16.mxu0 0
  %3013 = vmatmul.mubr.bf16.gmra.mrb[0].mxu0 %v2914
  %v3014 = vpop.f32.mrb[0].mxu0
  %v3015 = vadd.f32 0.0, %v3014
  %v3016 = vpop.f32.mrb[0].mxu0
  %v3017 = vpop.f32.mrb[0].mxu0
  %v3018 = vadd.f32 0.0, %v3017
  %v3019 = vpop.f32.mrb[0].mxu0
  %3020 = vdwg.mxu0
  %v3021 = vadd.f32 %v2750, %v3015
  %v3022 = vadd.f32 %v2751, %v3018
  %v3023 = vlaneseq
  %v3024 = vshrl.u32 %v3023, 7
  %v3025 = vsub.s32 5, %v3024
  %v3026 = vrot.slane %v2049, %v3025
  %v3027 = vadd.f32 %v3021, %v3026
  %v3028 = vadd.f32 %v3022, %v3026
  %3031 = vrot.lane.b32.xlu0 %v3027, 64
  %v3032 = vpop.permute.xlu0 %3031
  %3033 = vrot.lane.b32.xlu0 %v3028, 64
  %v3034 = vpop.permute.xlu0 %3033
  %vm3037 = vcmask 785920
  %3038 = vst.msk [vmem:[%s8] sm:$0xff] %vm3037, %v3032
  %vm3039 = vcmask 779776
  %3040 = vst.msk [vmem:[%s8 + $0x8] sm:$0x3] %vm3039, %v3034
  %s3041 = scalar_lea.vmem %s7, 24
  %v3042 = vld [vmem:[%s3041] sm:$0x3f]
  %v3043 = vsel %vm66, %v3027, 0.0
  %3044 = vadd.xlane.f32.xlu0 %v3043
  %v3045 = vpop.xlane.xlu0 %3044
  %v3046 = vsel %vm70, %v3028, 0.0
  %3047 = vadd.xlane.f32.xlu0 %v3046
  %v3048 = vpop.xlane.xlu0 %3047
  %v3049 = vmul.f32 %v3045, %v74
  %v3050 = vmul.f32 %v3048, %v74
  %v3051 = vsub.f32 %v3027, %v3049
  %v3052 = vsub.f32 %v3028, %v3050
  %v3053 = vmul.f32 %v3051, %v3051
  %v3054 = vmul.f32 %v3052, %v3052
  %v3055 = vsel %vm66, %v3053, 0.0
  %3056 = vadd.xlane.f32.xlu0 %v3055
  %v3057 = vpop.xlane.xlu0 %3056
  %v3058 = vsel %vm70, %v3054, 0.0
  %3059 = vadd.xlane.f32.xlu0 %v3058
  %v3060 = vpop.xlane.xlu0 %3059
  %v3061 = vmul.f32 %v3057, %v74
  %v3062 = vmul.f32 %v3060, %v74
  %v3063 = vadd.f32 %v3061, 1e-06
  %v3064 = vadd.f32 %v3062, 1e-06
  %v3065 = vrsqrt.pop %v3063
  %v3066 = vrsqrt.pop %v3064
  %v3067 = vmul.f32 %v3051, %v3065
  %v3068 = vmul.f32 %v3052, %v3066
  %v3069 = vlaneseq
  %v3070 = vshrl.u32 %v3069, 7
  %v3071 = vsub.s32 0, %v3070
  %v3072 = vrot.slane %v3042, %v3071
  %v3073 = vmul.f32 %v3067, %v3072
  %v3074 = vmul.f32 %v3068, %v3072
  %v3075 = vlaneseq
  %v3076 = vshrl.u32 %v3075, 7
  %v3077 = vsub.s32 1, %v3076
  %v3078 = vrot.slane %v3042, %v3077
  %v3079 = vadd.f32 %v3073, %v3078
  %v3080 = vadd.f32 %v3074, %v3078
  %v3081 = vpack.c.bf16 %v3080, %v3079
  %s3082 = scalar_lea.vmem %s1, 48
  %v3083 = vld [vmem:[%s3082] sm:$0xf]
  %v3084 = vld [vmem:[%s3082 + $0x4] sm:$0xf]
  %v3085 = vld [vmem:[%s3082 + $0x8] sm:$0xf]
  %v3086 = vld [vmem:[%s3082 + $0xc] sm:$0xf]
  %s3087 = scalar_lea.vmem %s2, 3
  %v3088 = vld [vmem:[%s3087] sm:$0x1]
  %v3090 = vlaneseq
  %v3091 = vshrl.u32 %v3090, 7
  %v3092 = vsub.s32 0, %v3091
  %v3093 = vrot.slane %v3088, %v3092
  %v3099 = vunpack.c.l.b16 %v3083
  %v3100 = vunpack.c.l.b16 %v3084
  %v3101 = vunpack.c.l.b16 %v3085
  %v3102 = vunpack.c.l.b16 %v3086
  %v3103 = vpack.c.b16 %v3100, %v3099
  %v3104 = vpack.c.b16 %v3102, %v3101
  %v3108 = vsel %vm66, %v3081, 0
  %3110 = vmatprep.subr.bf16.mxu0 0
  %3111 = vmatpush1.bf16.msra.mxu0 %v3103
  %3112 = vmatprep.subr.bf16.mxu0 0
  %3113 = vmatpush1.bf16.msra.mxu0 %v3104
  %3114 = vmatprep.subr.bf16.mxu0 0
  %3115 = vmatpush1.bf16.msra.mxu0 0
  %3116 = vmatprep.subr.bf16.mxu0 0
  %3117 = vmatpush1.bf16.msra.mxu0 0
  %3118 = vmatprep.subr.bf16.mxu0 0
  %3119 = vmatpush1.bf16.msra.mxu0 0
  %3120 = vmatprep.subr.bf16.mxu0 0
  %3121 = vmatpush1.bf16.msra.mxu0 0
  %3122 = vmatprep.subr.bf16.mxu0 0
  %3123 = vmatpush1.bf16.msra.mxu0 0
  %3124 = vmatprep.subr.bf16.mxu0 0
  %3125 = vmatpush1.bf16.msra.mxu0 0
  %3126 = vmatprep.subr.bf16.mxu0 0
  %3127 = vmatpush1.bf16.msra.mxu0 0
  %3128 = vmatprep.subr.bf16.mxu0 0
  %3129 = vmatpush1.bf16.msra.mxu0 0
  %3130 = vmatprep.subr.bf16.mxu0 0
  %3131 = vmatpush1.bf16.msra.mxu0 0
  %3132 = vmatprep.subr.bf16.mxu0 0
  %3133 = vmatpush1.bf16.msra.mxu0 0
  %3134 = vmatprep.subr.bf16.mxu0 0
  %3135 = vmatpush1.bf16.msra.mxu0 0
  %3136 = vmatprep.subr.bf16.mxu0 0
  %3137 = vmatpush1.bf16.msra.mxu0 0
  %3138 = vmatprep.subr.bf16.mxu0 0
  %3139 = vmatpush1.bf16.msra.mxu0 0
  %3140 = vmatprep.subr.bf16.mxu0 0
  %3141 = vmatpush1.bf16.msra.mxu0 0
  %3142 = vmatprep.mubr.bf16.mxu0 0
  %3143 = vmatmul.mubr.bf16.gmra.mrb[0].mxu0 %v3108
  %v3144 = vpop.f32.mrb[0].mxu0
  %v3145 = vadd.f32 %v3093, %v3144
  %v3146 = vpop.f32.mrb[0].mxu0
  %v3147 = vpop.f32.mrb[0].mxu0
  %v3148 = vadd.f32 %v3093, %v3147
  %v3149 = vpop.f32.mrb[0].mxu0
  %3150 = vdwg.mxu0
  %v3151 = vpack.c.bf16 %v3148, %v3145
  %3153 = vrot.lane.b32.xlu0 %v3151, 96
  %v3154 = vpop.permute.xlu0 %3153
  %v3156 = vsel %vm179, %v3151, 0
  %v3159 = vsel %vm179, %v3154, 0
  %3161 = vmatprep.subr.bf16.mxu0 0
  %3162 = vmatpush1.bf16.xpose.msra.mxu0 %v3159
  %3163 = vmatprep.subr.bf16.mxu0 0
  %3164 = vmatpush1.bf16.xpose.msra.mxu0 0
  %3165 = vmatprep.subr.bf16.mxu0 0
  %3166 = vmatpush1.bf16.xpose.msra.mxu0 0
  %3167 = vmatprep.subr.bf16.mxu0 0
  %3168 = vmatpush1.bf16.xpose.msra.mxu0 0
  %3169 = vmatprep.subr.bf16.mxu0 0
  %3170 = vmatpush1.bf16.xpose.msra.mxu0 0
  %3171 = vmatprep.subr.bf16.mxu0 0
  %3172 = vmatpush1.bf16.xpose.msra.mxu0 0
  %3173 = vmatprep.subr.bf16.mxu0 0
  %3174 = vmatpush1.bf16.xpose.msra.mxu0 0
  %3175 = vmatprep.subr.bf16.mxu0 0
  %3176 = vmatpush1.bf16.xpose.msra.mxu0 0
  %3177 = vmatprep.subr.bf16.mxu0 0
  %3178 = vmatpush1.bf16.xpose.msra.mxu0 0
  %3179 = vmatprep.subr.bf16.mxu0 0
  %3180 = vmatpush1.bf16.xpose.msra.mxu0 0
  %3181 = vmatprep.subr.bf16.mxu0 0
  %3182 = vmatpush1.bf16.xpose.msra.mxu0 0
  %3183 = vmatprep.subr.bf16.mxu0 0
  %3184 = vmatpush1.bf16.xpose.msra.mxu0 0
  %3185 = vmatprep.subr.bf16.mxu0 0
  %3186 = vmatpush1.bf16.xpose.msra.mxu0 0
  %3187 = vmatprep.subr.bf16.mxu0 0
  %3188 = vmatpush1.bf16.xpose.msra.mxu0 0
  %3189 = vmatprep.subr.bf16.mxu0 0
  %3190 = vmatpush1.bf16.xpose.msra.mxu0 0
  %3191 = vmatprep.subr.bf16.mxu0 0
  %3192 = vmatpush1.bf16.xpose.msra.mxu0 0
  %3193 = vmatprep.mubr.bf16.mxu0 0
  %3194 = vmatmul.mubr.bf16.gmra.mrb[0].mxu0 %v3156
  %v3195 = vpop.f32.mrb[0].mxu0
  %v3196 = vadd.f32 %v63, %v3195
  %v3197 = vpop.f32.mrb[0].mxu0
  %v3198 = vpop.f32.mrb[0].mxu0
  %v3199 = vadd.f32 %v64, %v3198
  %v3200 = vpop.f32.mrb[0].mxu0
  %3201 = vdwg.mxu0
  %v3202 = vsel %vm227, %v3196, -inf
  %3203 = vmax.xlane.f32.xlu0 %v3202
  %v3204 = vpop.xlane.xlu0 %3203
  %v3205 = vsel %vm231, %v3199, -inf
  %3206 = vmax.xlane.f32.xlu0 %v3205
  %v3207 = vpop.xlane.xlu0 %3206
  %v3208 = vsub.f32 %v3196, %v3204
  %v3209 = vsub.f32 %v3199, %v3207
  %v3210 = vmul.f32 %v3208, 1.442695
  %v3211 = vpow.pop %v3210
  %v3212 = vmul.f32 %v3209, 1.442695
  %v3213 = vpow.pop %v3212
  %v3214 = vsel %vm227, %v3211, 0.0
  %3215 = vadd.xlane.f32.xlu0 %v3214
  %v3216 = vpop.xlane.xlu0 %3215
  %v3217 = vsel %vm231, %v3213, 0.0
  %3218 = vadd.xlane.f32.xlu0 %v3217
  %v3219 = vpop.xlane.xlu0 %3218
  %v3220 = vrcp.pop %v3216
  %v3221 = vrcp.pop %v3219
  %v3222 = vmul.f32 %v3211, %v3220
  %v3223 = vmul.f32 %v3213, %v3221
  %v3224 = vpack.c.bf16 %v3223, %v3222
  %3225 = vrot.lane.b32.xlu0 %v3151, 64
  %v3226 = vpop.permute.xlu0 %3225
  %v3228 = vsel %vm227, %v3224, 0
  %v3231 = vsel %vm257, %v3226, 0
  %3233 = vmatprep.subr.bf16.mxu0 0
  %3234 = vmatpush1.bf16.msra.mxu0 %v3231
  %3235 = vmatprep.subr.bf16.mxu0 0
  %3236 = vmatpush1.bf16.msra.mxu0 0
  %3237 = vmatprep.subr.bf16.mxu0 0
  %3238 = vmatpush1.bf16.msra.mxu0 0
  %3239 = vmatprep.subr.bf16.mxu0 0
  %3240 = vmatpush1.bf16.msra.mxu0 0
  %3241 = vmatprep.subr.bf16.mxu0 0
  %3242 = vmatpush1.bf16.msra.mxu0 0
  %3243 = vmatprep.subr.bf16.mxu0 0
  %3244 = vmatpush1.bf16.msra.mxu0 0
  %3245 = vmatprep.subr.bf16.mxu0 0
  %3246 = vmatpush1.bf16.msra.mxu0 0
  %3247 = vmatprep.subr.bf16.mxu0 0
  %3248 = vmatpush1.bf16.msra.mxu0 0
  %3249 = vmatprep.subr.bf16.mxu0 0
  %3250 = vmatpush1.bf16.msra.mxu0 0
  %3251 = vmatprep.subr.bf16.mxu0 0
  %3252 = vmatpush1.bf16.msra.mxu0 0
  %3253 = vmatprep.subr.bf16.mxu0 0
  %3254 = vmatpush1.bf16.msra.mxu0 0
  %3255 = vmatprep.subr.bf16.mxu0 0
  %3256 = vmatpush1.bf16.msra.mxu0 0
  %3257 = vmatprep.subr.bf16.mxu0 0
  %3258 = vmatpush1.bf16.msra.mxu0 0
  %3259 = vmatprep.subr.bf16.mxu0 0
  %3260 = vmatpush1.bf16.msra.mxu0 0
  %3261 = vmatprep.subr.bf16.mxu0 0
  %3262 = vmatpush1.bf16.msra.mxu0 0
  %3263 = vmatprep.subr.bf16.mxu0 0
  %3264 = vmatpush1.bf16.msra.mxu0 0
  %3265 = vmatprep.mubr.bf16.mxu0 0
  %3266 = vmatmul.mubr.bf16.gmra.mrb[0].mxu0 %v3228
  %v3267 = vpop.f32.mrb[0].mxu0
  %v3268 = vadd.f32 0.0, %v3267
  %v3269 = vpop.f32.mrb[0].mxu0
  %v3270 = vpop.f32.mrb[0].mxu0
  %v3271 = vadd.f32 0.0, %v3270
  %v3272 = vpop.f32.mrb[0].mxu0
  %3273 = vdwg.mxu0
  %3274 = vst.msk [vmem:[#allocation2] sm:$0xff] %vm179, %v3268
  %3275 = vst.msk [vmem:[#allocation2 + $0x8] sm:$0x3] %vm303, %v3271
  %3276 = vrot.lane.b32.xlu0 %v3151, 120
  %v3277 = vpop.permute.xlu0 %3276
  %3278 = vrot.lane.b32.xlu0 %v3151, 88
  %v3279 = vpop.permute.xlu0 %3278
  %v3281 = vsel %vm179, %v3277, 0
  %v3284 = vsel %vm179, %v3279, 0
  %3286 = vmatprep.subr.bf16.mxu0 0
  %3287 = vmatpush1.bf16.xpose.msra.mxu0 %v3284
  %3288 = vmatprep.subr.bf16.mxu0 0
  %3289 = vmatpush1.bf16.xpose.msra.mxu0 0
  %3290 = vmatprep.subr.bf16.mxu0 0
  %3291 = vmatpush1.bf16.xpose.msra.mxu0 0
  %3292 = vmatprep.subr.bf16.mxu0 0
  %3293 = vmatpush1.bf16.xpose.msra.mxu0 0
  %3294 = vmatprep.subr.bf16.mxu0 0
  %3295 = vmatpush1.bf16.xpose.msra.mxu0 0
  %3296 = vmatprep.subr.bf16.mxu0 0
  %3297 = vmatpush1.bf16.xpose.msra.mxu0 0
  %3298 = vmatprep.subr.bf16.mxu0 0
  %3299 = vmatpush1.bf16.xpose.msra.mxu0 0
  %3300 = vmatprep.subr.bf16.mxu0 0
  %3301 = vmatpush1.bf16.xpose.msra.mxu0 0
  %3302 = vmatprep.subr.bf16.mxu0 0
  %3303 = vmatpush1.bf16.xpose.msra.mxu0 0
  %3304 = vmatprep.subr.bf16.mxu0 0
  %3305 = vmatpush1.bf16.xpose.msra.mxu0 0
  %3306 = vmatprep.subr.bf16.mxu0 0
  %3307 = vmatpush1.bf16.xpose.msra.mxu0 0
  %3308 = vmatprep.subr.bf16.mxu0 0
  %3309 = vmatpush1.bf16.xpose.msra.mxu0 0
  %3310 = vmatprep.subr.bf16.mxu0 0
  %3311 = vmatpush1.bf16.xpose.msra.mxu0 0
  %3312 = vmatprep.subr.bf16.mxu0 0
  %3313 = vmatpush1.bf16.xpose.msra.mxu0 0
  %3314 = vmatprep.subr.bf16.mxu0 0
  %3315 = vmatpush1.bf16.xpose.msra.mxu0 0
  %3316 = vmatprep.subr.bf16.mxu0 0
  %3317 = vmatpush1.bf16.xpose.msra.mxu0 0
  %3318 = vmatprep.mubr.bf16.mxu0 0
  %3319 = vmatmul.mubr.bf16.gmra.mrb[0].mxu0 %v3281
  %v3320 = vpop.f32.mrb[0].mxu0
  %v3321 = vadd.f32 %v63, %v3320
  %v3322 = vpop.f32.mrb[0].mxu0
  %v3323 = vpop.f32.mrb[0].mxu0
  %v3324 = vadd.f32 %v64, %v3323
  %v3325 = vpop.f32.mrb[0].mxu0
  %3326 = vdwg.mxu0
  %v3327 = vsel %vm227, %v3321, -inf
  %3328 = vmax.xlane.f32.xlu0 %v3327
  %v3329 = vpop.xlane.xlu0 %3328
  %v3330 = vsel %vm231, %v3324, -inf
  %3331 = vmax.xlane.f32.xlu0 %v3330
  %v3332 = vpop.xlane.xlu0 %3331
  %v3333 = vsub.f32 %v3321, %v3329
  %v3334 = vsub.f32 %v3324, %v3332
  %v3335 = vmul.f32 %v3333, 1.442695
  %v3336 = vpow.pop %v3335
  %v3337 = vmul.f32 %v3334, 1.442695
  %v3338 = vpow.pop %v3337
  %v3339 = vsel %vm227, %v3336, 0.0
  %3340 = vadd.xlane.f32.xlu0 %v3339
  %v3341 = vpop.xlane.xlu0 %3340
  %v3342 = vsel %vm231, %v3338, 0.0
  %3343 = vadd.xlane.f32.xlu0 %v3342
  %v3344 = vpop.xlane.xlu0 %3343
  %v3345 = vrcp.pop %v3341
  %v3346 = vrcp.pop %v3344
  %v3347 = vmul.f32 %v3336, %v3345
  %v3348 = vmul.f32 %v3338, %v3346
  %v3349 = vpack.c.bf16 %v3348, %v3347
  %3350 = vrot.lane.b32.xlu0 %v3151, 56
  %v3351 = vpop.permute.xlu0 %3350
  %v3353 = vsel %vm227, %v3349, 0
  %v3356 = vsel %vm257, %v3351, 0
  %3358 = vmatprep.subr.bf16.mxu0 0
  %3359 = vmatpush1.bf16.msra.mxu0 %v3356
  %3360 = vmatprep.subr.bf16.mxu0 0
  %3361 = vmatpush1.bf16.msra.mxu0 0
  %3362 = vmatprep.subr.bf16.mxu0 0
  %3363 = vmatpush1.bf16.msra.mxu0 0
  %3364 = vmatprep.subr.bf16.mxu0 0
  %3365 = vmatpush1.bf16.msra.mxu0 0
  %3366 = vmatprep.subr.bf16.mxu0 0
  %3367 = vmatpush1.bf16.msra.mxu0 0
  %3368 = vmatprep.subr.bf16.mxu0 0
  %3369 = vmatpush1.bf16.msra.mxu0 0
  %3370 = vmatprep.subr.bf16.mxu0 0
  %3371 = vmatpush1.bf16.msra.mxu0 0
  %3372 = vmatprep.subr.bf16.mxu0 0
  %3373 = vmatpush1.bf16.msra.mxu0 0
  %3374 = vmatprep.subr.bf16.mxu0 0
  %3375 = vmatpush1.bf16.msra.mxu0 0
  %3376 = vmatprep.subr.bf16.mxu0 0
  %3377 = vmatpush1.bf16.msra.mxu0 0
  %3378 = vmatprep.subr.bf16.mxu0 0
  %3379 = vmatpush1.bf16.msra.mxu0 0
  %3380 = vmatprep.subr.bf16.mxu0 0
  %3381 = vmatpush1.bf16.msra.mxu0 0
  %3382 = vmatprep.subr.bf16.mxu0 0
  %3383 = vmatpush1.bf16.msra.mxu0 0
  %3384 = vmatprep.subr.bf16.mxu0 0
  %3385 = vmatpush1.bf16.msra.mxu0 0
  %3386 = vmatprep.subr.bf16.mxu0 0
  %3387 = vmatpush1.bf16.msra.mxu0 0
  %3388 = vmatprep.subr.bf16.mxu0 0
  %3389 = vmatpush1.bf16.msra.mxu0 0
  %3390 = vmatprep.mubr.bf16.mxu0 0
  %3391 = vmatmul.mubr.bf16.gmra.mrb[0].mxu0 %v3353
  %v3392 = vpop.f32.mrb[0].mxu0
  %v3393 = vadd.f32 0.0, %v3392
  %v3394 = vpop.f32.mrb[0].mxu0
  %v3395 = vpop.f32.mrb[0].mxu0
  %v3396 = vadd.f32 0.0, %v3395
  %v3397 = vpop.f32.mrb[0].mxu0
  %3398 = vdwg.mxu0
  %3401 = vrot.lane.b32.xlu0 %v3393, 8
  %v3402 = vpop.permute.xlu0 %3401
  %3403 = vrot.lane.b32.xlu0 %v3396, 8
  %v3404 = vpop.permute.xlu0 %3403
  %3407 = vst.msk [vmem:[#allocation2] sm:$0xff] %vm436, %v3402
  %3408 = vst.msk [vmem:[#allocation2 + $0x8] sm:$0x3] %vm438, %v3404
  %3409 = vrot.lane.b32.xlu0 %v3151, 112
  %v3410 = vpop.permute.xlu0 %3409
  %3411 = vrot.lane.b32.xlu0 %v3151, 80
  %v3412 = vpop.permute.xlu0 %3411
  %v3414 = vsel %vm179, %v3410, 0
  %v3417 = vsel %vm179, %v3412, 0
  %3419 = vmatprep.subr.bf16.mxu0 0
  %3420 = vmatpush1.bf16.xpose.msra.mxu0 %v3417
  %3421 = vmatprep.subr.bf16.mxu0 0
  %3422 = vmatpush1.bf16.xpose.msra.mxu0 0
  %3423 = vmatprep.subr.bf16.mxu0 0
  %3424 = vmatpush1.bf16.xpose.msra.mxu0 0
  %3425 = vmatprep.subr.bf16.mxu0 0
  %3426 = vmatpush1.bf16.xpose.msra.mxu0 0
  %3427 = vmatprep.subr.bf16.mxu0 0
  %3428 = vmatpush1.bf16.xpose.msra.mxu0 0
  %3429 = vmatprep.subr.bf16.mxu0 0
  %3430 = vmatpush1.bf16.xpose.msra.mxu0 0
  %3431 = vmatprep.subr.bf16.mxu0 0
  %3432 = vmatpush1.bf16.xpose.msra.mxu0 0
  %3433 = vmatprep.subr.bf16.mxu0 0
  %3434 = vmatpush1.bf16.xpose.msra.mxu0 0
  %3435 = vmatprep.subr.bf16.mxu0 0
  %3436 = vmatpush1.bf16.xpose.msra.mxu0 0
  %3437 = vmatprep.subr.bf16.mxu0 0
  %3438 = vmatpush1.bf16.xpose.msra.mxu0 0
  %3439 = vmatprep.subr.bf16.mxu0 0
  %3440 = vmatpush1.bf16.xpose.msra.mxu0 0
  %3441 = vmatprep.subr.bf16.mxu0 0
  %3442 = vmatpush1.bf16.xpose.msra.mxu0 0
  %3443 = vmatprep.subr.bf16.mxu0 0
  %3444 = vmatpush1.bf16.xpose.msra.mxu0 0
  %3445 = vmatprep.subr.bf16.mxu0 0
  %3446 = vmatpush1.bf16.xpose.msra.mxu0 0
  %3447 = vmatprep.subr.bf16.mxu0 0
  %3448 = vmatpush1.bf16.xpose.msra.mxu0 0
  %3449 = vmatprep.subr.bf16.mxu0 0
  %3450 = vmatpush1.bf16.xpose.msra.mxu0 0
  %3451 = vmatprep.mubr.bf16.mxu0 0
  %3452 = vmatmul.mubr.bf16.gmra.mrb[0].mxu0 %v3414
  %v3453 = vpop.f32.mrb[0].mxu0
  %v3454 = vadd.f32 %v63, %v3453
  %v3455 = vpop.f32.mrb[0].mxu0
  %v3456 = vpop.f32.mrb[0].mxu0
  %v3457 = vadd.f32 %v64, %v3456
  %v3458 = vpop.f32.mrb[0].mxu0
  %3459 = vdwg.mxu0
  %v3460 = vsel %vm227, %v3454, -inf
  %3461 = vmax.xlane.f32.xlu0 %v3460
  %v3462 = vpop.xlane.xlu0 %3461
  %v3463 = vsel %vm231, %v3457, -inf
  %3464 = vmax.xlane.f32.xlu0 %v3463
  %v3465 = vpop.xlane.xlu0 %3464
  %v3466 = vsub.f32 %v3454, %v3462
  %v3467 = vsub.f32 %v3457, %v3465
  %v3468 = vmul.f32 %v3466, 1.442695
  %v3469 = vpow.pop %v3468
  %v3470 = vmul.f32 %v3467, 1.442695
  %v3471 = vpow.pop %v3470
  %v3472 = vsel %vm227, %v3469, 0.0
  %3473 = vadd.xlane.f32.xlu0 %v3472
  %v3474 = vpop.xlane.xlu0 %3473
  %v3475 = vsel %vm231, %v3471, 0.0
  %3476 = vadd.xlane.f32.xlu0 %v3475
  %v3477 = vpop.xlane.xlu0 %3476
  %v3478 = vrcp.pop %v3474
  %v3479 = vrcp.pop %v3477
  %v3480 = vmul.f32 %v3469, %v3478
  %v3481 = vmul.f32 %v3471, %v3479
  %v3482 = vpack.c.bf16 %v3481, %v3480
  %3483 = vrot.lane.b32.xlu0 %v3151, 48
  %v3484 = vpop.permute.xlu0 %3483
  %v3486 = vsel %vm227, %v3482, 0
  %v3489 = vsel %vm257, %v3484, 0
  %3491 = vmatprep.subr.bf16.mxu0 0
  %3492 = vmatpush1.bf16.msra.mxu0 %v3489
  %3493 = vmatprep.subr.bf16.mxu0 0
  %3494 = vmatpush1.bf16.msra.mxu0 0
  %3495 = vmatprep.subr.bf16.mxu0 0
  %3496 = vmatpush1.bf16.msra.mxu0 0
  %3497 = vmatprep.subr.bf16.mxu0 0
  %3498 = vmatpush1.bf16.msra.mxu0 0
  %3499 = vmatprep.subr.bf16.mxu0 0
  %3500 = vmatpush1.bf16.msra.mxu0 0
  %3501 = vmatprep.subr.bf16.mxu0 0
  %3502 = vmatpush1.bf16.msra.mxu0 0
  %3503 = vmatprep.subr.bf16.mxu0 0
  %3504 = vmatpush1.bf16.msra.mxu0 0
  %3505 = vmatprep.subr.bf16.mxu0 0
  %3506 = vmatpush1.bf16.msra.mxu0 0
  %3507 = vmatprep.subr.bf16.mxu0 0
  %3508 = vmatpush1.bf16.msra.mxu0 0
  %3509 = vmatprep.subr.bf16.mxu0 0
  %3510 = vmatpush1.bf16.msra.mxu0 0
  %3511 = vmatprep.subr.bf16.mxu0 0
  %3512 = vmatpush1.bf16.msra.mxu0 0
  %3513 = vmatprep.subr.bf16.mxu0 0
  %3514 = vmatpush1.bf16.msra.mxu0 0
  %3515 = vmatprep.subr.bf16.mxu0 0
  %3516 = vmatpush1.bf16.msra.mxu0 0
  %3517 = vmatprep.subr.bf16.mxu0 0
  %3518 = vmatpush1.bf16.msra.mxu0 0
  %3519 = vmatprep.subr.bf16.mxu0 0
  %3520 = vmatpush1.bf16.msra.mxu0 0
  %3521 = vmatprep.subr.bf16.mxu0 0
  %3522 = vmatpush1.bf16.msra.mxu0 0
  %3523 = vmatprep.mubr.bf16.mxu0 0
  %3524 = vmatmul.mubr.bf16.gmra.mrb[0].mxu0 %v3486
  %v3525 = vpop.f32.mrb[0].mxu0
  %v3526 = vadd.f32 0.0, %v3525
  %v3527 = vpop.f32.mrb[0].mxu0
  %v3528 = vpop.f32.mrb[0].mxu0
  %v3529 = vadd.f32 0.0, %v3528
  %v3530 = vpop.f32.mrb[0].mxu0
  %3531 = vdwg.mxu0
  %3534 = vrot.lane.b32.xlu0 %v3526, 16
  %v3535 = vpop.permute.xlu0 %3534
  %3536 = vrot.lane.b32.xlu0 %v3529, 16
  %v3537 = vpop.permute.xlu0 %3536
  %3540 = vst.msk [vmem:[#allocation2] sm:$0xff] %vm571, %v3535
  %3541 = vst.msk [vmem:[#allocation2 + $0x8] sm:$0x3] %vm573, %v3537
  %3542 = vrot.lane.b32.xlu0 %v3151, 104
  %v3543 = vpop.permute.xlu0 %3542
  %3544 = vrot.lane.b32.xlu0 %v3151, 72
  %v3545 = vpop.permute.xlu0 %3544
  %v3547 = vsel %vm179, %v3543, 0
  %v3550 = vsel %vm179, %v3545, 0
  %3552 = vmatprep.subr.bf16.mxu0 0
  %3553 = vmatpush1.bf16.xpose.msra.mxu0 %v3550
  %3554 = vmatprep.subr.bf16.mxu0 0
  %3555 = vmatpush1.bf16.xpose.msra.mxu0 0
  %3556 = vmatprep.subr.bf16.mxu0 0
  %3557 = vmatpush1.bf16.xpose.msra.mxu0 0
  %3558 = vmatprep.subr.bf16.mxu0 0
  %3559 = vmatpush1.bf16.xpose.msra.mxu0 0
  %3560 = vmatprep.subr.bf16.mxu0 0
  %3561 = vmatpush1.bf16.xpose.msra.mxu0 0
  %3562 = vmatprep.subr.bf16.mxu0 0
  %3563 = vmatpush1.bf16.xpose.msra.mxu0 0
  %3564 = vmatprep.subr.bf16.mxu0 0
  %3565 = vmatpush1.bf16.xpose.msra.mxu0 0
  %3566 = vmatprep.subr.bf16.mxu0 0
  %3567 = vmatpush1.bf16.xpose.msra.mxu0 0
  %3568 = vmatprep.subr.bf16.mxu0 0
  %3569 = vmatpush1.bf16.xpose.msra.mxu0 0
  %3570 = vmatprep.subr.bf16.mxu0 0
  %3571 = vmatpush1.bf16.xpose.msra.mxu0 0
  %3572 = vmatprep.subr.bf16.mxu0 0
  %3573 = vmatpush1.bf16.xpose.msra.mxu0 0
  %3574 = vmatprep.subr.bf16.mxu0 0
  %3575 = vmatpush1.bf16.xpose.msra.mxu0 0
  %3576 = vmatprep.subr.bf16.mxu0 0
  %3577 = vmatpush1.bf16.xpose.msra.mxu0 0
  %3578 = vmatprep.subr.bf16.mxu0 0
  %3579 = vmatpush1.bf16.xpose.msra.mxu0 0
  %3580 = vmatprep.subr.bf16.mxu0 0
  %3581 = vmatpush1.bf16.xpose.msra.mxu0 0
  %3582 = vmatprep.subr.bf16.mxu0 0
  %3583 = vmatpush1.bf16.xpose.msra.mxu0 0
  %3584 = vmatprep.mubr.bf16.mxu0 0
  %3585 = vmatmul.mubr.bf16.gmra.mrb[0].mxu0 %v3547
  %v3586 = vpop.f32.mrb[0].mxu0
  %v3587 = vadd.f32 %v63, %v3586
  %v3588 = vpop.f32.mrb[0].mxu0
  %v3589 = vpop.f32.mrb[0].mxu0
  %v3590 = vadd.f32 %v64, %v3589
  %v3591 = vpop.f32.mrb[0].mxu0
  %3592 = vdwg.mxu0
  %v3593 = vsel %vm227, %v3587, -inf
  %3594 = vmax.xlane.f32.xlu0 %v3593
  %v3595 = vpop.xlane.xlu0 %3594
  %v3596 = vsel %vm231, %v3590, -inf
  %3597 = vmax.xlane.f32.xlu0 %v3596
  %v3598 = vpop.xlane.xlu0 %3597
  %v3599 = vsub.f32 %v3587, %v3595
  %v3600 = vsub.f32 %v3590, %v3598
  %v3601 = vmul.f32 %v3599, 1.442695
  %v3602 = vpow.pop %v3601
  %v3603 = vmul.f32 %v3600, 1.442695
  %v3604 = vpow.pop %v3603
  %v3605 = vsel %vm227, %v3602, 0.0
  %3606 = vadd.xlane.f32.xlu0 %v3605
  %v3607 = vpop.xlane.xlu0 %3606
  %v3608 = vsel %vm231, %v3604, 0.0
  %3609 = vadd.xlane.f32.xlu0 %v3608
  %v3610 = vpop.xlane.xlu0 %3609
  %v3611 = vrcp.pop %v3607
  %v3612 = vrcp.pop %v3610
  %v3613 = vmul.f32 %v3602, %v3611
  %v3614 = vmul.f32 %v3604, %v3612
  %v3615 = vpack.c.bf16 %v3614, %v3613
  %3616 = vrot.lane.b32.xlu0 %v3151, 40
  %v3617 = vpop.permute.xlu0 %3616
  %v3619 = vsel %vm227, %v3615, 0
  %v3622 = vsel %vm257, %v3617, 0
  %3624 = vmatprep.subr.bf16.mxu0 0
  %3625 = vmatpush1.bf16.msra.mxu0 %v3622
  %3626 = vmatprep.subr.bf16.mxu0 0
  %3627 = vmatpush1.bf16.msra.mxu0 0
  %3628 = vmatprep.subr.bf16.mxu0 0
  %3629 = vmatpush1.bf16.msra.mxu0 0
  %3630 = vmatprep.subr.bf16.mxu0 0
  %3631 = vmatpush1.bf16.msra.mxu0 0
  %3632 = vmatprep.subr.bf16.mxu0 0
  %3633 = vmatpush1.bf16.msra.mxu0 0
  %3634 = vmatprep.subr.bf16.mxu0 0
  %3635 = vmatpush1.bf16.msra.mxu0 0
  %3636 = vmatprep.subr.bf16.mxu0 0
  %3637 = vmatpush1.bf16.msra.mxu0 0
  %3638 = vmatprep.subr.bf16.mxu0 0
  %3639 = vmatpush1.bf16.msra.mxu0 0
  %3640 = vmatprep.subr.bf16.mxu0 0
  %3641 = vmatpush1.bf16.msra.mxu0 0
  %3642 = vmatprep.subr.bf16.mxu0 0
  %3643 = vmatpush1.bf16.msra.mxu0 0
  %3644 = vmatprep.subr.bf16.mxu0 0
  %3645 = vmatpush1.bf16.msra.mxu0 0
  %3646 = vmatprep.subr.bf16.mxu0 0
  %3647 = vmatpush1.bf16.msra.mxu0 0
  %3648 = vmatprep.subr.bf16.mxu0 0
  %3649 = vmatpush1.bf16.msra.mxu0 0
  %3650 = vmatprep.subr.bf16.mxu0 0
  %3651 = vmatpush1.bf16.msra.mxu0 0
  %3652 = vmatprep.subr.bf16.mxu0 0
  %3653 = vmatpush1.bf16.msra.mxu0 0
  %3654 = vmatprep.subr.bf16.mxu0 0
  %3655 = vmatpush1.bf16.msra.mxu0 0
  %3656 = vmatprep.mubr.bf16.mxu0 0
  %3657 = vmatmul.mubr.bf16.gmra.mrb[0].mxu0 %v3619
  %v3658 = vpop.f32.mrb[0].mxu0
  %v3659 = vadd.f32 0.0, %v3658
  %v3660 = vpop.f32.mrb[0].mxu0
  %v3661 = vpop.f32.mrb[0].mxu0
  %v3662 = vadd.f32 0.0, %v3661
  %v3663 = vpop.f32.mrb[0].mxu0
  %3664 = vdwg.mxu0
  %3667 = vrot.lane.b32.xlu0 %v3659, 24
  %v3668 = vpop.permute.xlu0 %3667
  %3669 = vrot.lane.b32.xlu0 %v3662, 24
  %v3670 = vpop.permute.xlu0 %3669
  %3673 = vst.msk [vmem:[#allocation2] sm:$0xff] %vm706, %v3668
  %3674 = vst.msk [vmem:[#allocation2 + $0x8] sm:$0x3] %vm708, %v3670
  %v3675 = vld [vmem:[#allocation2] sm:$0xff]
  %v3676 = vld [vmem:[#allocation2 + $0x8] sm:$0x3]
  %v3677 = vpack.c.bf16 %v3676, %v3675
  %s3678 = scalar_lea.vmem %s3, 48
  %v3679 = vld [vmem:[%s3678] sm:$0xf]
  %v3680 = vld [vmem:[%s3678 + $0x4] sm:$0xf]
  %v3681 = vld [vmem:[%s3678 + $0x8] sm:$0xf]
  %v3682 = vld [vmem:[%s3678 + $0xc] sm:$0xf]
  %v3683 = vlaneseq
  %v3684 = vshrl.u32 %v3683, 7
  %v3685 = vsub.s32 2, %v3684
  %v3686 = vrot.slane %v3042, %v3685
  %v3691 = vunpack.c.l.b16 %v3679
  %v3692 = vunpack.c.l.b16 %v3680
  %v3693 = vunpack.c.l.b16 %v3681
  %v3694 = vunpack.c.l.b16 %v3682
  %v3695 = vpack.c.b16 %v3692, %v3691
  %v3696 = vpack.c.b16 %v3694, %v3693
  %v3700 = vsel %vm66, %v3677, 0
  %3702 = vmatprep.subr.bf16.mxu0 0
  %3703 = vmatpush1.bf16.msra.mxu0 %v3695
  %3704 = vmatprep.subr.bf16.mxu0 0
  %3705 = vmatpush1.bf16.msra.mxu0 %v3696
  %3706 = vmatprep.subr.bf16.mxu0 0
  %3707 = vmatpush1.bf16.msra.mxu0 0
  %3708 = vmatprep.subr.bf16.mxu0 0
  %3709 = vmatpush1.bf16.msra.mxu0 0
  %3710 = vmatprep.subr.bf16.mxu0 0
  %3711 = vmatpush1.bf16.msra.mxu0 0
  %3712 = vmatprep.subr.bf16.mxu0 0
  %3713 = vmatpush1.bf16.msra.mxu0 0
  %3714 = vmatprep.subr.bf16.mxu0 0
  %3715 = vmatpush1.bf16.msra.mxu0 0
  %3716 = vmatprep.subr.bf16.mxu0 0
  %3717 = vmatpush1.bf16.msra.mxu0 0
  %3718 = vmatprep.subr.bf16.mxu0 0
  %3719 = vmatpush1.bf16.msra.mxu0 0
  %3720 = vmatprep.subr.bf16.mxu0 0
  %3721 = vmatpush1.bf16.msra.mxu0 0
  %3722 = vmatprep.subr.bf16.mxu0 0
  %3723 = vmatpush1.bf16.msra.mxu0 0
  %3724 = vmatprep.subr.bf16.mxu0 0
  %3725 = vmatpush1.bf16.msra.mxu0 0
  %3726 = vmatprep.subr.bf16.mxu0 0
  %3727 = vmatpush1.bf16.msra.mxu0 0
  %3728 = vmatprep.subr.bf16.mxu0 0
  %3729 = vmatpush1.bf16.msra.mxu0 0
  %3730 = vmatprep.subr.bf16.mxu0 0
  %3731 = vmatpush1.bf16.msra.mxu0 0
  %3732 = vmatprep.subr.bf16.mxu0 0
  %3733 = vmatpush1.bf16.msra.mxu0 0
  %3734 = vmatprep.mubr.bf16.mxu0 0
  %3735 = vmatmul.mubr.bf16.gmra.mrb[0].mxu0 %v3700
  %v3736 = vpop.f32.mrb[0].mxu0
  %v3737 = vadd.f32 %v3686, %v3736
  %v3738 = vpop.f32.mrb[0].mxu0
  %v3739 = vpop.f32.mrb[0].mxu0
  %v3740 = vadd.f32 %v3686, %v3739
  %v3741 = vpop.f32.mrb[0].mxu0
  %3742 = vdwg.mxu0
  %v3743 = vadd.f32 %v3027, %v3737
  %v3744 = vadd.f32 %v3028, %v3740
  %v3745 = vsel %vm66, %v3743, 0.0
  %3746 = vadd.xlane.f32.xlu0 %v3745
  %v3747 = vpop.xlane.xlu0 %3746
  %v3748 = vsel %vm70, %v3744, 0.0
  %3749 = vadd.xlane.f32.xlu0 %v3748
  %v3750 = vpop.xlane.xlu0 %3749
  %v3751 = vmul.f32 %v3747, %v74
  %v3752 = vmul.f32 %v3750, %v74
  %v3753 = vsub.f32 %v3743, %v3751
  %v3754 = vsub.f32 %v3744, %v3752
  %v3755 = vmul.f32 %v3753, %v3753
  %v3756 = vmul.f32 %v3754, %v3754
  %v3757 = vsel %vm66, %v3755, 0.0
  %3758 = vadd.xlane.f32.xlu0 %v3757
  %v3759 = vpop.xlane.xlu0 %3758
  %v3760 = vsel %vm70, %v3756, 0.0
  %3761 = vadd.xlane.f32.xlu0 %v3760
  %v3762 = vpop.xlane.xlu0 %3761
  %v3763 = vmul.f32 %v3759, %v74
  %v3764 = vmul.f32 %v3762, %v74
  %v3765 = vadd.f32 %v3763, 1e-06
  %v3766 = vadd.f32 %v3764, 1e-06
  %v3767 = vrsqrt.pop %v3765
  %v3768 = vrsqrt.pop %v3766
  %v3769 = vmul.f32 %v3753, %v3767
  %v3770 = vmul.f32 %v3754, %v3768
  %v3771 = vlaneseq
  %v3772 = vshrl.u32 %v3771, 7
  %v3773 = vsub.s32 3, %v3772
  %v3774 = vrot.slane %v3042, %v3773
  %v3775 = vmul.f32 %v3769, %v3774
  %v3776 = vmul.f32 %v3770, %v3774
  %v3777 = vlaneseq
  %v3778 = vshrl.u32 %v3777, 7
  %v3779 = vsub.s32 4, %v3778
  %v3780 = vrot.slane %v3042, %v3779
  %v3781 = vadd.f32 %v3775, %v3780
  %v3782 = vadd.f32 %v3776, %v3780
  %v3783 = vpack.c.bf16 %v3782, %v3781
  %s3784 = scalar_lea.vmem %s4, 48
  %v3785 = vld [vmem:[%s3784] sm:$0xf]
  %v3786 = vld [vmem:[%s3784 + $0x4] sm:$0xf]
  %v3787 = vld [vmem:[%s3784 + $0x8] sm:$0xf]
  %v3788 = vld [vmem:[%s3784 + $0xc] sm:$0xf]
  %s3789 = scalar_lea.vmem %s5, 3
  %v3790 = vld [vmem:[%s3789] sm:$0x1]
  %v3792 = vlaneseq
  %v3793 = vshrl.u32 %v3792, 7
  %v3794 = vsub.s32 0, %v3793
  %v3795 = vrot.slane %v3790, %v3794
  %v3801 = vunpack.c.l.b16 %v3785
  %v3802 = vunpack.c.l.b16 %v3786
  %v3803 = vunpack.c.l.b16 %v3787
  %v3804 = vunpack.c.l.b16 %v3788
  %v3805 = vpack.c.b16 %v3802, %v3801
  %v3806 = vpack.c.b16 %v3804, %v3803
  %v3810 = vsel %vm66, %v3783, 0
  %3812 = vmatprep.subr.bf16.mxu0 0
  %3813 = vmatpush1.bf16.msra.mxu0 %v3805
  %3814 = vmatprep.subr.bf16.mxu0 0
  %3815 = vmatpush1.bf16.msra.mxu0 %v3806
  %3816 = vmatprep.subr.bf16.mxu0 0
  %3817 = vmatpush1.bf16.msra.mxu0 0
  %3818 = vmatprep.subr.bf16.mxu0 0
  %3819 = vmatpush1.bf16.msra.mxu0 0
  %3820 = vmatprep.subr.bf16.mxu0 0
  %3821 = vmatpush1.bf16.msra.mxu0 0
  %3822 = vmatprep.subr.bf16.mxu0 0
  %3823 = vmatpush1.bf16.msra.mxu0 0
  %3824 = vmatprep.subr.bf16.mxu0 0
  %3825 = vmatpush1.bf16.msra.mxu0 0
  %3826 = vmatprep.subr.bf16.mxu0 0
  %3827 = vmatpush1.bf16.msra.mxu0 0
  %3828 = vmatprep.subr.bf16.mxu0 0
  %3829 = vmatpush1.bf16.msra.mxu0 0
  %3830 = vmatprep.subr.bf16.mxu0 0
  %3831 = vmatpush1.bf16.msra.mxu0 0
  %3832 = vmatprep.subr.bf16.mxu0 0
  %3833 = vmatpush1.bf16.msra.mxu0 0
  %3834 = vmatprep.subr.bf16.mxu0 0
  %3835 = vmatpush1.bf16.msra.mxu0 0
  %3836 = vmatprep.subr.bf16.mxu0 0
  %3837 = vmatpush1.bf16.msra.mxu0 0
  %3838 = vmatprep.subr.bf16.mxu0 0
  %3839 = vmatpush1.bf16.msra.mxu0 0
  %3840 = vmatprep.subr.bf16.mxu0 0
  %3841 = vmatpush1.bf16.msra.mxu0 0
  %3842 = vmatprep.subr.bf16.mxu0 0
  %3843 = vmatpush1.bf16.msra.mxu0 0
  %3844 = vmatprep.mubr.bf16.mxu0 0
  %3845 = vmatmul.mubr.bf16.gmra.mrb[0].mxu0 %v3810
  %v3846 = vpop.f32.mrb[0].mxu0
  %v3847 = vadd.f32 %v3795, %v3846
  %v3848 = vpop.f32.mrb[0].mxu0
  %v3849 = vpop.f32.mrb[0].mxu0
  %v3850 = vadd.f32 %v3795, %v3849
  %v3851 = vpop.f32.mrb[0].mxu0
  %3852 = vdwg.mxu0
  %v3853 = vmul.f32 %v3847, 0.5
  %v3854 = vmul.f32 %v3850, 0.5
  %v3855 = vmul.f32 %v3847, 0.70710677
  %v3856 = vmul.f32 %v3850, 0.70710677
  %vm3857 = vcmp.ge.f32.partialorder %v3855, 0.0
  %vm3858 = vcmp.ge.f32.partialorder %v3856, 0.0
  %v3859 = vsel %vm3857, 1.0, -1.0
  %v3860 = vsel %vm3858, 1.0, -1.0
  %v3861 = vand.u32 2147483647, %v3855
  %v3862 = vand.u32 2147483647, %v3856
  %v3863 = vmul.f32 %v3861, 0.3275911
  %v3864 = vmul.f32 %v3862, 0.3275911
  %v3865 = vadd.f32 %v3863, 1.0
  %v3866 = vadd.f32 %v3864, 1.0
  %v3867 = vrcp.pop %v3865
  %v3868 = vmul.f32 1.0, %v3867
  %v3869 = vrcp.pop %v3866
  %v3870 = vmul.f32 1.0, %v3869
  %v3871 = vmul.f32 %v3868, 1.0614054
  %v3872 = vmul.f32 %v3870, 1.0614054
  %v3873 = vadd.f32 %v3871, -1.4531521
  %v3874 = vadd.f32 %v3872, -1.4531521
  %v3875 = vmul.f32 %v3873, %v3868
  %v3876 = vmul.f32 %v3874, %v3870
  %v3877 = vadd.f32 %v3875, 1.4214138
  %v3878 = vadd.f32 %v3876, 1.4214138
  %v3879 = vmul.f32 %v3877, %v3868
  %v3880 = vmul.f32 %v3878, %v3870
  %v3881 = vadd.f32 %v3879, -0.28449672
  %v3882 = vadd.f32 %v3880, -0.28449672
  %v3883 = vmul.f32 %v3881, %v3868
  %v3884 = vmul.f32 %v3882, %v3870
  %v3885 = vadd.f32 %v3883, 0.2548296
  %v3886 = vadd.f32 %v3884, 0.2548296
  %v3887 = vmul.f32 %v3885, %v3868
  %v3888 = vmul.f32 %v3886, %v3870
  %v3889 = vsub.f32 0.0, %v3861
  %v3890 = vsub.f32 0.0, %v3862
  %v3891 = vmul.f32 %v3889, %v3861
  %v3892 = vmul.f32 %v3890, %v3862
  %v3893 = vmul.f32 %v3891, 1.442695
  %v3894 = vpow.pop %v3893
  %v3895 = vmul.f32 %v3892, 1.442695
  %v3896 = vpow.pop %v3895
  %v3897 = vmul.f32 %v3887, %v3894
  %v3898 = vmul.f32 %v3888, %v3896
  %v3899 = vsub.f32 1.0, %v3897
  %v3900 = vsub.f32 1.0, %v3898
  %v3901 = vmul.f32 %v3859, %v3899
  %v3902 = vmul.f32 %v3860, %v3900
  %v3903 = vadd.f32 %v3901, 1.0
  %v3904 = vadd.f32 %v3902, 1.0
  %v3905 = vmul.f32 %v3853, %v3903
  %v3906 = vmul.f32 %v3854, %v3904
  %v3907 = vpack.c.bf16 %v3906, %v3905
  %s3908 = scalar_lea.vmem %s6, 192
  %v3909 = vld [vmem:[%s3908] sm:$0xf]
  %v3910 = vld [vmem:[%s3908 + $0x4] sm:$0xf]
  %v3911 = vld [vmem:[%s3908 + $0x8] sm:$0xf]
  %v3912 = vld [vmem:[%s3908 + $0xc] sm:$0xf]
  %v3913 = vld [vmem:[%s3908 + $0x10] sm:$0xf]
  %v3914 = vld [vmem:[%s3908 + $0x14] sm:$0xf]
  %v3915 = vld [vmem:[%s3908 + $0x18] sm:$0xf]
  %v3916 = vld [vmem:[%s3908 + $0x1c] sm:$0xf]
  %v3917 = vld [vmem:[%s3908 + $0x20] sm:$0xf]
  %v3918 = vld [vmem:[%s3908 + $0x24] sm:$0xf]
  %v3919 = vld [vmem:[%s3908 + $0x28] sm:$0xf]
  %v3920 = vld [vmem:[%s3908 + $0x2c] sm:$0xf]
  %v3921 = vld [vmem:[%s3908 + $0x30] sm:$0xf]
  %v3922 = vld [vmem:[%s3908 + $0x34] sm:$0xf]
  %v3923 = vld [vmem:[%s3908 + $0x38] sm:$0xf]
  %v3924 = vld [vmem:[%s3908 + $0x3c] sm:$0xf]
  %v3941 = vunpack.c.l.b16 %v3909
  %v3942 = vunpack.c.l.b16 %v3910
  %v3943 = vunpack.c.l.b16 %v3911
  %v3944 = vunpack.c.l.b16 %v3912
  %v3945 = vunpack.c.l.b16 %v3913
  %v3946 = vunpack.c.l.b16 %v3914
  %v3947 = vunpack.c.l.b16 %v3915
  %v3948 = vunpack.c.l.b16 %v3916
  %v3949 = vunpack.c.l.b16 %v3917
  %v3950 = vunpack.c.l.b16 %v3918
  %v3951 = vunpack.c.l.b16 %v3919
  %v3952 = vunpack.c.l.b16 %v3920
  %v3953 = vunpack.c.l.b16 %v3921
  %v3954 = vunpack.c.l.b16 %v3922
  %v3955 = vunpack.c.l.b16 %v3923
  %v3956 = vunpack.c.l.b16 %v3924
  %v3957 = vpack.c.b16 %v3942, %v3941
  %v3958 = vpack.c.b16 %v3944, %v3943
  %v3959 = vpack.c.b16 %v3946, %v3945
  %v3960 = vpack.c.b16 %v3948, %v3947
  %v3961 = vpack.c.b16 %v3950, %v3949
  %v3962 = vpack.c.b16 %v3952, %v3951
  %v3963 = vpack.c.b16 %v3954, %v3953
  %v3964 = vpack.c.b16 %v3956, %v3955
  %3973 = vmatprep.subr.bf16.mxu0 0
  %3974 = vmatpush1.bf16.msra.mxu0 %v3957
  %3975 = vmatprep.subr.bf16.mxu0 0
  %3976 = vmatpush1.bf16.msra.mxu0 %v3958
  %3977 = vmatprep.subr.bf16.mxu0 0
  %3978 = vmatpush1.bf16.msra.mxu0 %v3959
  %3979 = vmatprep.subr.bf16.mxu0 0
  %3980 = vmatpush1.bf16.msra.mxu0 %v3960
  %3981 = vmatprep.subr.bf16.mxu0 0
  %3982 = vmatpush1.bf16.msra.mxu0 %v3961
  %3983 = vmatprep.subr.bf16.mxu0 0
  %3984 = vmatpush1.bf16.msra.mxu0 %v3962
  %3985 = vmatprep.subr.bf16.mxu0 0
  %3986 = vmatpush1.bf16.msra.mxu0 %v3963
  %3987 = vmatprep.subr.bf16.mxu0 0
  %3988 = vmatpush1.bf16.msra.mxu0 %v3964
  %3989 = vmatprep.subr.bf16.mxu0 0
  %3990 = vmatpush1.bf16.msra.mxu0 0
  %3991 = vmatprep.subr.bf16.mxu0 0
  %3992 = vmatpush1.bf16.msra.mxu0 0
  %3993 = vmatprep.subr.bf16.mxu0 0
  %3994 = vmatpush1.bf16.msra.mxu0 0
  %3995 = vmatprep.subr.bf16.mxu0 0
  %3996 = vmatpush1.bf16.msra.mxu0 0
  %3997 = vmatprep.subr.bf16.mxu0 0
  %3998 = vmatpush1.bf16.msra.mxu0 0
  %3999 = vmatprep.subr.bf16.mxu0 0
  %4000 = vmatpush1.bf16.msra.mxu0 0
  %4001 = vmatprep.subr.bf16.mxu0 0
  %4002 = vmatpush1.bf16.msra.mxu0 0
  %4003 = vmatprep.subr.bf16.mxu0 0
  %4004 = vmatpush1.bf16.msra.mxu0 0
  %4005 = vmatprep.mubr.bf16.mxu0 0
  %4006 = vmatmul.mubr.bf16.gmra.mrb[0].mxu0 %v3907
  %v4007 = vpop.f32.mrb[0].mxu0
  %v4008 = vadd.f32 0.0, %v4007
  %v4009 = vpop.f32.mrb[0].mxu0
  %v4010 = vpop.f32.mrb[0].mxu0
  %v4011 = vadd.f32 0.0, %v4010
  %v4012 = vpop.f32.mrb[0].mxu0
  %4013 = vdwg.mxu0
  %v4014 = vadd.f32 %v3743, %v4008
  %v4015 = vadd.f32 %v3744, %v4011
  %v4016 = vlaneseq
  %v4017 = vshrl.u32 %v4016, 7
  %v4018 = vsub.s32 5, %v4017
  %v4019 = vrot.slane %v3042, %v4018
  %v4020 = vadd.f32 %v4014, %v4019
  %v4021 = vadd.f32 %v4015, %v4019
  %4024 = vrot.lane.b32.xlu0 %v4020, 96
  %v4025 = vpop.permute.xlu0 %4024
  %4026 = vrot.lane.b32.xlu0 %v4021, 96
  %v4027 = vpop.permute.xlu0 %4026
  %vm4030 = vcmask 1048320
  %4031 = vst.msk [vmem:[%s8] sm:$0xff] %vm4030, %v4025
  %vm4032 = vcmask 1042176
  %4033 = vst.msk [vmem:[%s8 + $0x8] sm:$0x3] %vm4032, %v4027
  // Predicated region
  $region34: #{_lambda_.1} parent=0 // pred_check
    _
  $region35: #{_lambda_.1} parent=0 // pred_check_branch
    %4035 = sbr.rel (0) target = $region37
  $region36: #{_lambda_.1} parent=0 // pred_region
    _
  $region37: #{_lambda_.1} parent=0 // pred_fallthru
    _
  // Predicated region
  $region38: #{_lambda_.1} parent=0 // pred_check
    _
  $region39: #{_lambda_.1} parent=0 // pred_check_branch
    %4037 = sbr.rel (0) target = $region41
  $region40: #{_lambda_.1} parent=0 // pred_region
    _
  $region41: #{_lambda_.1} parent=0 // pred_fallthru
    _

</llo_original>
